<compile_context>
chip_gen: v6e
topology: v6e:2x2x1
jax: 0.10.0
libtpu: 0.0.40
codegen_flags: <defaults>
</compile_context>

<pallas_src>
import functools

import jax
import jax.numpy as jnp
from jax import lax
from jax.experimental import pallas as pl
from jax.experimental.pallas import tpu as pltpu

N_EMBED = 264
BLOCK_SIZE = 128  # max context; we only require T <= BLOCK_SIZE


def _mha_kernel(x_ref, wqkv_ref, wp_ref, bp_ref, o_ref, qkv_ref, *,
                num_heads, hs_pad, b_blk):
    # x_ref:    (b_blk, T, C)        f32
    # wqkv_ref: (C, 3*H*hs_pad)      bf16  (q-scale folded in; pad lanes = 0)
    # wp_ref:   (H*hs_pad, C)        bf16  (pad rows = 0)
    # bp_ref:   (1, C)               f32
    # o_ref:    (b_blk, T, C)        f32
    # qkv_ref:  (b_blk*T, 3*H*hs_pad) bf16 VMEM scratch
    H, Dp = num_heads, hs_pad
    T = x_ref.shape[1]
    C = x_ref.shape[2]

    # One fused, lane-dense QKV projection for every head and every batch in
    # the block; cast the whole slab to bf16 once and park it in VMEM scratch.
    x2d = x_ref[...].reshape(b_blk * T, C).astype(jnp.bfloat16)
    qkv = jnp.dot(x2d, wqkv_ref[...], preferred_element_type=jnp.float32)
    qkv_ref[...] = qkv.astype(jnp.bfloat16)

    # Static causal mask as an additive bias (large finite negative -> no NaN
    # even if a row were fully masked); built once, reused by every head.
    rows = lax.broadcasted_iota(jnp.int32, (T, T), 0)
    cols = lax.broadcasted_iota(jnp.int32, (T, T), 1)
    neg = jnp.where(cols <= rows, 0.0, -1e30).astype(jnp.float32)

    wp = wp_ref[...]                      # (H*Dp, C) bf16
    bias = bp_ref[...].astype(jnp.float32)  # (1, C)

    def per_batch(b):
        if isinstance(b, int):
            base = b * T
        else:
            base = pl.multiple_of(b * T, 8)   # T is a multiple of 8
        qkv_b = qkv_ref[pl.ds(base, T), :]    # (T, 3*H*Dp) bf16

        pv_heads = []
        for h in range(H):                    # small, static, unrolled
            # 128-aligned lane slices -> free address arithmetic, no relayout.
            q = qkv_b[:, h * Dp:(h + 1) * Dp]
            k = qkv_b[:, (H + h) * Dp:(H + h + 1) * Dp]
            v = qkv_b[:, (2 * H + h) * Dp:(2 * H + h + 1) * Dp]

            # q @ k.T without materializing a transpose.
            aff = lax.dot_general(q, k, (((1,), (1,)), ((), ())),
                                  preferred_element_type=jnp.float32) + neg
            aff = aff - jnp.max(aff, axis=-1, keepdims=True)
            p = jnp.exp(aff)
            p = p * pl.reciprocal(jnp.sum(p, axis=-1, keepdims=True),
                                  approx=True)
            # (dropout on attention probs: identity in eval mode)

            pv = jnp.dot(p.astype(jnp.bfloat16), v,
                         preferred_element_type=jnp.float32)      # (T, Dp)
            pv_heads.append(pv)

        # Lane-aligned concat of (T,128) chunks, then ONE output-projection
        # matmul (T, H*Dp) @ (H*Dp, C); pad rows of wp are zero.
        pv_slab = jnp.concatenate(pv_heads, axis=1).astype(jnp.bfloat16)
        out = jnp.dot(pv_slab, wp, preferred_element_type=jnp.float32) + bias
        # (final dropout: identity in eval mode)
        o_ref[b, :, :] = out.astype(o_ref.dtype)

    if b_blk <= 8:
        for b in range(b_blk):                # short: unroll statically
            per_batch(b)
    else:
        @pl.loop(0, b_blk)                    # bounded live ranges
        def _(b):
            per_batch(b)


def _pick_batch_block(B, T, m_target=256):
    """Pick b_blk so b_blk*T approaches >=256 MXU rows per step (fills the
    256-wide MXU on v6e/v7x, >=128 on v5e), while only keeping >=2 grid steps
    when that does not starve the MXU (v7x dual-TC)."""
    cap = max(1, m_target // T)
    best = 1
    for d in range(1, min(B, cap) + 1):
        if B % d == 0:
            best = d
    # If a single grid step remains but we can split into 2 steps without
    # dropping below the MXU-fill target, prefer 2 steps (v7x has 2 TCs).
    if B // best == 1 and best % 2 == 0 and (best // 2) * T >= m_target:
        best //= 2
    return best


def multi_head_attention(x, wq, wk, wv, wp, bp, *, num_heads, head_size):
    """x: (B, T, N_EMBED) -> (B, T, N_EMBED).

    wq/wk/wv: (H, N_EMBED, head_size)  (PyTorch Linear.weight transposed)
    wp: (H*head_size, N_EMBED), bp: (1, N_EMBED)
    """
    B, T, C = x.shape
    H, _, hs = wq.shape
    assert H == num_heads and hs == head_size and C == N_EMBED
    assert T <= BLOCK_SIZE and T % 8 == 0, "T must be a multiple of 8, <= 128"

    Dp = ((hs + 127) // 128) * 128            # per-head lane-padded size

    # Fold the 1/sqrt(hs) attention scale into the query weights (free).
    wq = wq * (float(head_size) ** -0.5)

    # Fuse per-head Q/K/V weights into one lane-dense (C, 3*H*Dp) bf16 matrix,
    # zero-padding each head chunk from hs to Dp lanes (pad lanes contribute
    # nothing to any contraction).
    def _flat_pad(w):  # (H, C, hs) -> (C, H*Dp)
        wpad = jnp.zeros((H, C, Dp), w.dtype).at[:, :, :hs].set(w)
        return jnp.transpose(wpad, (1, 0, 2)).reshape(C, H * Dp)

    wqkv = jnp.concatenate([_flat_pad(wq), _flat_pad(wk), _flat_pad(wv)],
                           axis=1).astype(jnp.bfloat16)

    # Output projection: zero-pad per-head rows hs -> Dp, flatten to (H*Dp, C).
    wp_pad = (jnp.zeros((H, Dp, C), wp.dtype)
              .at[:, :hs, :].set(wp.reshape(H, hs, C))
              .reshape(H * Dp, C).astype(jnp.bfloat16))

    b_blk = _pick_batch_block(B, T)
    grid = (B // b_blk,)

    kernel = functools.partial(_mha_kernel, num_heads=H, hs_pad=Dp,
                               b_blk=b_blk)

    flops = (2 * B * T * C * 3 * H * Dp          # fused QKV projection
             + 4 * B * H * T * T * Dp            # q@k.T and p@v
             + 2 * B * T * H * Dp * C)           # output projection
    bytes_accessed = (B * T * C * 4              # x
                      + C * 3 * H * Dp * 2       # wqkv (bf16)
                      + H * Dp * C * 2           # wp   (bf16)
                      + C * 4                    # bp
                      + B * T * C * 4)           # out

    return pl.pallas_call(
        kernel,
        out_shape=jax.ShapeDtypeStruct((B, T, C), jnp.float32),
        grid_spec=pltpu.PrefetchScalarGridSpec(
            num_scalar_prefetch=0,
            grid=grid,
            in_specs=[
                # per-step batch block of x
                pl.BlockSpec((b_blk, T, C), lambda i: (i, 0, 0)),
                # weights / bias: full arrays, same block every grid step
                pl.BlockSpec((C, 3 * H * Dp), lambda i: (0, 0)),
                pl.BlockSpec((H * Dp, C), lambda i: (0, 0)),
                pl.BlockSpec((1, C), lambda i: (0, 0)),
            ],
            out_specs=pl.BlockSpec((b_blk, T, C), lambda i: (i, 0, 0)),
            scratch_shapes=[
                pltpu.VMEM((b_blk * T, 3 * H * Dp), jnp.bfloat16),
            ],
        ),
        compiler_params=pltpu.CompilerParams(
            dimension_semantics=("parallel",)),
        cost_estimate=pl.CostEstimate(
            flops=flops,
            transcendentals=B * H * T * (T + 1),
            bytes_accessed=bytes_accessed),
    )(x, wqkv, wp_pad, bp)


def _reference(x, wq, wk, wv, wp, bp, *, num_heads, head_size):
    """Pure-JAX f32 reference matching the PyTorch forward (eval mode)."""
    B, T, C = x.shape
    outs = []
    scale = float(head_size) ** -0.5
    mask = jnp.tril(jnp.ones((T, T), dtype=bool))
    for h in range(num_heads):
        q = x @ wq[h]
        k = x @ wk[h]
        v = x @ wv[h]
        aff = (q @ jnp.swapaxes(k, -2, -1)) * scale
        aff = jnp.where(mask, aff, -jnp.inf)
        aff = jax.nn.softmax(aff, axis=-1)
        outs.append(aff @ v)
    cat = jnp.concatenate(outs, axis=-1)
    return cat @ wp + bp[0]


if __name__ == "__main__":
    B = 2
    T = 8
    NUM_HEADS = 4
    HEAD_SIZE = N_EMBED // NUM_HEADS  # 66

    key = jax.random.PRNGKey(0)
    kx, kq, kk, kv, kp, kb = jax.random.split(key, 6)

    # Deterministic parameter init (PyTorch Linear-style uniform ±1/sqrt(fan_in)).
    bound_in = 1.0 / (N_EMBED ** 0.5)
    bound_proj = 1.0 / ((NUM_HEADS * HEAD_SIZE) ** 0.5)

    x = jax.random.normal(kx, (B, T, N_EMBED), dtype=jnp.float32)
    wq = jax.random.uniform(kq, (NUM_HEADS, N_EMBED, HEAD_SIZE),
                            minval=-bound_in, maxval=bound_in, dtype=jnp.float32)
    wk = jax.random.uniform(kk, (NUM_HEADS, N_EMBED, HEAD_SIZE),
                            minval=-bound_in, maxval=bound_in, dtype=jnp.float32)
    wv = jax.random.uniform(kv, (NUM_HEADS, N_EMBED, HEAD_SIZE),
                            minval=-bound_in, maxval=bound_in, dtype=jnp.float32)
    wp = jax.random.uniform(kp, (NUM_HEADS * HEAD_SIZE, N_EMBED),
                            minval=-bound_proj, maxval=bound_proj, dtype=jnp.float32)
    bp = jax.random.uniform(kb, (1, N_EMBED),
                            minval=-bound_proj, maxval=bound_proj, dtype=jnp.float32)

    out = multi_head_attention(x, wq, wk, wv, wp, bp,
                               num_heads=NUM_HEADS, head_size=HEAD_SIZE)
    out = jax.block_until_ready(out)

    ref = _reference(x, wq, wk, wv, wp, bp,
                     num_heads=NUM_HEADS, head_size=HEAD_SIZE)
    assert out.shape == (B, T, N_EMBED)
    # bf16 matmul inputs (f32 accumulation) + approx reciprocal -> loosen tol.
    assert jnp.allclose(out, ref, atol=2e-2, rtol=2e-2), "mismatch vs reference"

    print("KERNEL_OK")
</pallas_src>

<mosaic_0001>
module attributes {stable_mosaic.version = 11 : i64} {
  func.func @_mha_kernel(%arg0: i32, %arg1: memref<2x8x264xf32, #tpu.memory_space<vmem>>, %arg2: memref<264x1536xbf16, #tpu.memory_space<vmem>>, %arg3: memref<512x264xbf16, #tpu.memory_space<vmem>>, %arg4: memref<1x264xf32, #tpu.memory_space<vmem>>, %arg5: memref<2x8x264xf32, #tpu.memory_space<vmem>>, %arg6: memref<16x1536xbf16, #tpu.memory_space<vmem>>) attributes {dimension_semantics = [#tpu.dimension_semantics<parallel>], iteration_bounds = array<i64: 1>, scalar_prefetch = 0 : i64, scratch_operands = 1 : i64, tpu.core_type = #tpu.core_type<tc>, window_params = [{transform_indices = @transform_0, window_bounds = array<i64: 2, 8, 264>}, {pipeline_mode = #tpu.pipeline_mode<synchronous>, transform_indices = @transform_1, window_bounds = array<i64: 264, 1536>}, {pipeline_mode = #tpu.pipeline_mode<synchronous>, transform_indices = @transform_2, window_bounds = array<i64: 512, 264>}, {pipeline_mode = #tpu.pipeline_mode<synchronous>, transform_indices = @transform_3, window_bounds = array<i64: 1, 264>}, {transform_indices = @transform_4, window_bounds = array<i64: 2, 8, 264>}]} {
    %c0 = arith.constant 0 : index
    %c0_0 = arith.constant 0 : index
    %c0_1 = arith.constant 0 : index
    %0 = vector.load %arg1[%c0, %c0_0, %c0_1] : memref<2x8x264xf32, #tpu.memory_space<vmem>>, vector<2x8x264xf32>
    %1 = vector.shape_cast %0 : vector<2x8x264xf32> to vector<16x264xf32>
    %2 = arith.truncf %1 : vector<16x264xf32> to vector<16x264xbf16>
    %c0_2 = arith.constant 0 : index
    %c0_3 = arith.constant 0 : index
    %3 = vector.load %arg2[%c0_2, %c0_3] : memref<264x1536xbf16, #tpu.memory_space<vmem>>, vector<264x1536xbf16>
    %cst = arith.constant dense<0.000000e+00> : vector<16x1536xf32>
    %4 = tpu.matmul %2, %3, %cst {dimension_numbers = #tpu.dot_dimension_numbers<[1], [0], [0], [1], [0, 0, 1, 1], [], []>} : vector<16x264xbf16>, vector<264x1536xbf16>, vector<16x1536xf32> -> vector<16x1536xf32>
    %5 = arith.truncf %4 : vector<16x1536xf32> to vector<16x1536xbf16>
    %c0_4 = arith.constant 0 : index
    %c0_5 = arith.constant 0 : index
    %6 = vector.load %arg6[%c0_4, %c0_5] : memref<16x1536xbf16, #tpu.memory_space<vmem>>, vector<16x1536xbf16>
    tpu.vector_store %arg6[%c0_4, %c0_5], %5 {strides = array<i32>} : memref<16x1536xbf16, #tpu.memory_space<vmem>>, vector<16x1536xbf16>,
    %7 = tpu.iota {dimensions = array<i32: 0>} : vector<8x8xi32>
    %8 = tpu.iota {dimensions = array<i32: 1>} : vector<8x8xi32>
    %9 = arith.cmpi sle, %8, %7 : vector<8x8xi32>
    %cst_6 = arith.constant 0.000000e+00 : f32
    %cst_7 = arith.constant -1.000000e+30 : f32
    %10 = vector.broadcast %cst_6 : f32 to vector<8x8xf32>
    %11 = vector.broadcast %cst_7 : f32 to vector<8x8xf32>
    %12 = arith.select %9, %10, %11 : vector<8x8xi1>, vector<8x8xf32>
    %c0_8 = arith.constant 0 : index
    %c0_9 = arith.constant 0 : index
    %13 = vector.load %arg3[%c0_8, %c0_9] : memref<512x264xbf16, #tpu.memory_space<vmem>>, vector<512x264xbf16>
    %c0_10 = arith.constant 0 : index
    %c0_11 = arith.constant 0 : index
    %14 = vector.load %arg4[%c0_10, %c0_11] : memref<1x264xf32, #tpu.memory_space<vmem>>, vector<1x264xf32>
    %c0_12 = arith.constant 0 : index
    %c0_13 = arith.constant 0 : index
    %15 = vector.load %arg6[%c0_12, %c0_13] : memref<16x1536xbf16, #tpu.memory_space<vmem>>, vector<8x1536xbf16>
    %16 = vector.extract_strided_slice %15 {offsets = [0, 0], sizes = [8, 128], strides = [1, 1]} : vector<8x1536xbf16> to vector<8x128xbf16>
    %17 = vector.extract_strided_slice %15 {offsets = [0, 512], sizes = [8, 128], strides = [1, 1]} : vector<8x1536xbf16> to vector<8x128xbf16>
    %18 = vector.extract_strided_slice %15 {offsets = [0, 1024], sizes = [8, 128], strides = [1, 1]} : vector<8x1536xbf16> to vector<8x128xbf16>
    %cst_14 = arith.constant dense<0.000000e+00> : vector<8x8xf32>
    %19 = tpu.matmul %16, %17, %cst_14 {dimension_numbers = #tpu.dot_dimension_numbers<[1], [1], [0], [0], [0, 0, 1, 0], [], []>} : vector<8x128xbf16>, vector<8x128xbf16>, vector<8x8xf32> -> vector<8x8xf32>
    %20 = arith.addf %19, %12 : vector<8x8xf32>
    %cst_15 = arith.constant dense<0xFF800000> : vector<8xf32>
    %21 = vector.multi_reduction <maximumf>, %20, %cst_15 [1] : vector<8x8xf32> to vector<8xf32>
    %22 = vector.shape_cast %21 : vector<8xf32> to vector<8x1xf32>
    %23 = vector.broadcast %22 : vector<8x1xf32> to vector<8x8xf32>
    %24 = arith.subf %20, %23 : vector<8x8xf32>
    %25 = math.exp %24 : vector<8x8xf32>
    %cst_16 = arith.constant dense<0.000000e+00> : vector<8xf32>
    %26 = vector.multi_reduction <add>, %25, %cst_16 [1] : vector<8x8xf32> to vector<8xf32>
    %27 = vector.shape_cast %26 : vector<8xf32> to vector<8x1xf32>
    %28 = tpu.reciprocal %27 {approx = true} : vector<8x1xf32> -> vector<8x1xf32>
    %29 = vector.broadcast %28 : vector<8x1xf32> to vector<8x8xf32>
    %30 = arith.mulf %25, %29 : vector<8x8xf32>
    %31 = arith.truncf %30 : vector<8x8xf32> to vector<8x8xbf16>
    %cst_17 = arith.constant dense<0.000000e+00> : vector<8x128xf32>
    %32 = tpu.matmul %31, %18, %cst_17 {dimension_numbers = #tpu.dot_dimension_numbers<[1], [0], [0], [1], [0, 0, 1, 1], [], []>} : vector<8x8xbf16>, vector<8x128xbf16>, vector<8x128xf32> -> vector<8x128xf32>
    %33 = vector.extract_strided_slice %15 {offsets = [0, 128], sizes = [8, 128], strides = [1, 1]} : vector<8x1536xbf16> to vector<8x128xbf16>
    %34 = vector.extract_strided_slice %15 {offsets = [0, 640], sizes = [8, 128], strides = [1, 1]} : vector<8x1536xbf16> to vector<8x128xbf16>
    %35 = vector.extract_strided_slice %15 {offsets = [0, 1152], sizes = [8, 128], strides = [1, 1]} : vector<8x1536xbf16> to vector<8x128xbf16>
    %cst_18 = arith.constant dense<0.000000e+00> : vector<8x8xf32>
    %36 = tpu.matmul %33, %34, %cst_18 {dimension_numbers = #tpu.dot_dimension_numbers<[1], [1], [0], [0], [0, 0, 1, 0], [], []>} : vector<8x128xbf16>, vector<8x128xbf16>, vector<8x8xf32> -> vector<8x8xf32>
    %37 = arith.addf %36, %12 : vector<8x8xf32>
    %cst_19 = arith.constant dense<0xFF800000> : vector<8xf32>
    %38 = vector.multi_reduction <maximumf>, %37, %cst_19 [1] : vector<8x8xf32> to vector<8xf32>
    %39 = vector.shape_cast %38 : vector<8xf32> to vector<8x1xf32>
    %40 = vector.broadcast %39 : vector<8x1xf32> to vector<8x8xf32>
    %41 = arith.subf %37, %40 : vector<8x8xf32>
    %42 = math.exp %41 : vector<8x8xf32>
    %cst_20 = arith.constant dense<0.000000e+00> : vector<8xf32>
    %43 = vector.multi_reduction <add>, %42, %cst_20 [1] : vector<8x8xf32> to vector<8xf32>
    %44 = vector.shape_cast %43 : vector<8xf32> to vector<8x1xf32>
    %45 = tpu.reciprocal %44 {approx = true} : vector<8x1xf32> -> vector<8x1xf32>
    %46 = vector.broadcast %45 : vector<8x1xf32> to vector<8x8xf32>
    %47 = arith.mulf %42, %46 : vector<8x8xf32>
    %48 = arith.truncf %47 : vector<8x8xf32> to vector<8x8xbf16>
    %cst_21 = arith.constant dense<0.000000e+00> : vector<8x128xf32>
    %49 = tpu.matmul %48, %35, %cst_21 {dimension_numbers = #tpu.dot_dimension_numbers<[1], [0], [0], [1], [0, 0, 1, 1], [], []>} : vector<8x8xbf16>, vector<8x128xbf16>, vector<8x128xf32> -> vector<8x128xf32>
    %50 = vector.extract_strided_slice %15 {offsets = [0, 256], sizes = [8, 128], strides = [1, 1]} : vector<8x1536xbf16> to vector<8x128xbf16>
    %51 = vector.extract_strided_slice %15 {offsets = [0, 768], sizes = [8, 128], strides = [1, 1]} : vector<8x1536xbf16> to vector<8x128xbf16>
    %52 = vector.extract_strided_slice %15 {offsets = [0, 1280], sizes = [8, 128], strides = [1, 1]} : vector<8x1536xbf16> to vector<8x128xbf16>
    %cst_22 = arith.constant dense<0.000000e+00> : vector<8x8xf32>
    %53 = tpu.matmul %50, %51, %cst_22 {dimension_numbers = #tpu.dot_dimension_numbers<[1], [1], [0], [0], [0, 0, 1, 0], [], []>} : vector<8x128xbf16>, vector<8x128xbf16>, vector<8x8xf32> -> vector<8x8xf32>
    %54 = arith.addf %53, %12 : vector<8x8xf32>
    %cst_23 = arith.constant dense<0xFF800000> : vector<8xf32>
    %55 = vector.multi_reduction <maximumf>, %54, %cst_23 [1] : vector<8x8xf32> to vector<8xf32>
    %56 = vector.shape_cast %55 : vector<8xf32> to vector<8x1xf32>
    %57 = vector.broadcast %56 : vector<8x1xf32> to vector<8x8xf32>
    %58 = arith.subf %54, %57 : vector<8x8xf32>
    %59 = math.exp %58 : vector<8x8xf32>
    %cst_24 = arith.constant dense<0.000000e+00> : vector<8xf32>
    %60 = vector.multi_reduction <add>, %59, %cst_24 [1] : vector<8x8xf32> to vector<8xf32>
    %61 = vector.shape_cast %60 : vector<8xf32> to vector<8x1xf32>
    %62 = tpu.reciprocal %61 {approx = true} : vector<8x1xf32> -> vector<8x1xf32>
    %63 = vector.broadcast %62 : vector<8x1xf32> to vector<8x8xf32>
    %64 = arith.mulf %59, %63 : vector<8x8xf32>
    %65 = arith.truncf %64 : vector<8x8xf32> to vector<8x8xbf16>
    %cst_25 = arith.constant dense<0.000000e+00> : vector<8x128xf32>
    %66 = tpu.matmul %65, %52, %cst_25 {dimension_numbers = #tpu.dot_dimension_numbers<[1], [0], [0], [1], [0, 0, 1, 1], [], []>} : vector<8x8xbf16>, vector<8x128xbf16>, vector<8x128xf32> -> vector<8x128xf32>
    %67 = vector.extract_strided_slice %15 {offsets = [0, 384], sizes = [8, 128], strides = [1, 1]} : vector<8x1536xbf16> to vector<8x128xbf16>
    %68 = vector.extract_strided_slice %15 {offsets = [0, 896], sizes = [8, 128], strides = [1, 1]} : vector<8x1536xbf16> to vector<8x128xbf16>
    %69 = vector.extract_strided_slice %15 {offsets = [0, 1408], sizes = [8, 128], strides = [1, 1]} : vector<8x1536xbf16> to vector<8x128xbf16>
    %cst_26 = arith.constant dense<0.000000e+00> : vector<8x8xf32>
    %70 = tpu.matmul %67, %68, %cst_26 {dimension_numbers = #tpu.dot_dimension_numbers<[1], [1], [0], [0], [0, 0, 1, 0], [], []>} : vector<8x128xbf16>, vector<8x128xbf16>, vector<8x8xf32> -> vector<8x8xf32>
    %71 = arith.addf %70, %12 : vector<8x8xf32>
    %cst_27 = arith.constant dense<0xFF800000> : vector<8xf32>
    %72 = vector.multi_reduction <maximumf>, %71, %cst_27 [1] : vector<8x8xf32> to vector<8xf32>
    %73 = vector.shape_cast %72 : vector<8xf32> to vector<8x1xf32>
    %74 = vector.broadcast %73 : vector<8x1xf32> to vector<8x8xf32>
    %75 = arith.subf %71, %74 : vector<8x8xf32>
    %76 = math.exp %75 : vector<8x8xf32>
    %cst_28 = arith.constant dense<0.000000e+00> : vector<8xf32>
    %77 = vector.multi_reduction <add>, %76, %cst_28 [1] : vector<8x8xf32> to vector<8xf32>
    %78 = vector.shape_cast %77 : vector<8xf32> to vector<8x1xf32>
    %79 = tpu.reciprocal %78 {approx = true} : vector<8x1xf32> -> vector<8x1xf32>
    %80 = vector.broadcast %79 : vector<8x1xf32> to vector<8x8xf32>
    %81 = arith.mulf %76, %80 : vector<8x8xf32>
    %82 = arith.truncf %81 : vector<8x8xf32> to vector<8x8xbf16>
    %cst_29 = arith.constant dense<0.000000e+00> : vector<8x128xf32>
    %83 = tpu.matmul %82, %69, %cst_29 {dimension_numbers = #tpu.dot_dimension_numbers<[1], [0], [0], [1], [0, 0, 1, 1], [], []>} : vector<8x8xbf16>, vector<8x128xbf16>, vector<8x128xf32> -> vector<8x128xf32>
    %84 = tpu.concatenate %32, %49, %66, %83 in 1 : vector<8x128xf32>, vector<8x128xf32>, vector<8x128xf32>, vector<8x128xf32> -> vector<8x512xf32>
    %85 = arith.truncf %84 : vector<8x512xf32> to vector<8x512xbf16>
    %cst_30 = arith.constant dense<0.000000e+00> : vector<8x264xf32>
    %86 = tpu.matmul %85, %13, %cst_30 {dimension_numbers = #tpu.dot_dimension_numbers<[1], [0], [0], [1], [0, 0, 1, 1], [], []>} : vector<8x512xbf16>, vector<512x264xbf16>, vector<8x264xf32> -> vector<8x264xf32>
    %87 = vector.broadcast %14 : vector<1x264xf32> to vector<8x264xf32>
    %88 = arith.addf %86, %87 : vector<8x264xf32>
    %c0_31 = arith.constant 0 : index
    %c0_32 = arith.constant 0 : index
    %c0_33 = arith.constant 0 : index
    %89 = vector.load %arg5[%c0_31, %c0_32, %c0_33] : memref<2x8x264xf32, #tpu.memory_space<vmem>>, vector<1x8x264xf32>
    %90 = vector.shape_cast %89 : vector<1x8x264xf32> to vector<8x264xf32>
    %91 = vector.shape_cast %88 : vector<8x264xf32> to vector<1x8x264xf32>
    tpu.vector_store %arg5[%c0_31, %c0_32, %c0_33], %91 {strides = array<i32>} : memref<2x8x264xf32, #tpu.memory_space<vmem>>, vector<1x8x264xf32>,
    %c8 = arith.constant 8 : index
    %c0_34 = arith.constant 0 : index
    %92 = vector.load %arg6[%c8, %c0_34] : memref<16x1536xbf16, #tpu.memory_space<vmem>>, vector<8x1536xbf16>
    %93 = vector.extract_strided_slice %92 {offsets = [0, 0], sizes = [8, 128], strides = [1, 1]} : vector<8x1536xbf16> to vector<8x128xbf16>
    %94 = vector.extract_strided_slice %92 {offsets = [0, 512], sizes = [8, 128], strides = [1, 1]} : vector<8x1536xbf16> to vector<8x128xbf16>
    %95 = vector.extract_strided_slice %92 {offsets = [0, 1024], sizes = [8, 128], strides = [1, 1]} : vector<8x1536xbf16> to vector<8x128xbf16>
    %cst_35 = arith.constant dense<0.000000e+00> : vector<8x8xf32>
    %96 = tpu.matmul %93, %94, %cst_35 {dimension_numbers = #tpu.dot_dimension_numbers<[1], [1], [0], [0], [0, 0, 1, 0], [], []>} : vector<8x128xbf16>, vector<8x128xbf16>, vector<8x8xf32> -> vector<8x8xf32>
    %97 = arith.addf %96, %12 : vector<8x8xf32>
    %cst_36 = arith.constant dense<0xFF800000> : vector<8xf32>
    %98 = vector.multi_reduction <maximumf>, %97, %cst_36 [1] : vector<8x8xf32> to vector<8xf32>
    %99 = vector.shape_cast %98 : vector<8xf32> to vector<8x1xf32>
    %100 = vector.broadcast %99 : vector<8x1xf32> to vector<8x8xf32>
    %101 = arith.subf %97, %100 : vector<8x8xf32>
    %102 = math.exp %101 : vector<8x8xf32>
    %cst_37 = arith.constant dense<0.000000e+00> : vector<8xf32>
    %103 = vector.multi_reduction <add>, %102, %cst_37 [1] : vector<8x8xf32> to vector<8xf32>
    %104 = vector.shape_cast %103 : vector<8xf32> to vector<8x1xf32>
    %105 = tpu.reciprocal %104 {approx = true} : vector<8x1xf32> -> vector<8x1xf32>
    %106 = vector.broadcast %105 : vector<8x1xf32> to vector<8x8xf32>
    %107 = arith.mulf %102, %106 : vector<8x8xf32>
    %108 = arith.truncf %107 : vector<8x8xf32> to vector<8x8xbf16>
    %cst_38 = arith.constant dense<0.000000e+00> : vector<8x128xf32>
    %109 = tpu.matmul %108, %95, %cst_38 {dimension_numbers = #tpu.dot_dimension_numbers<[1], [0], [0], [1], [0, 0, 1, 1], [], []>} : vector<8x8xbf16>, vector<8x128xbf16>, vector<8x128xf32> -> vector<8x128xf32>
    %110 = vector.extract_strided_slice %92 {offsets = [0, 128], sizes = [8, 128], strides = [1, 1]} : vector<8x1536xbf16> to vector<8x128xbf16>
    %111 = vector.extract_strided_slice %92 {offsets = [0, 640], sizes = [8, 128], strides = [1, 1]} : vector<8x1536xbf16> to vector<8x128xbf16>
    %112 = vector.extract_strided_slice %92 {offsets = [0, 1152], sizes = [8, 128], strides = [1, 1]} : vector<8x1536xbf16> to vector<8x128xbf16>
    %cst_39 = arith.constant dense<0.000000e+00> : vector<8x8xf32>
    %113 = tpu.matmul %110, %111, %cst_39 {dimension_numbers = #tpu.dot_dimension_numbers<[1], [1], [0], [0], [0, 0, 1, 0], [], []>} : vector<8x128xbf16>, vector<8x128xbf16>, vector<8x8xf32> -> vector<8x8xf32>
    %114 = arith.addf %113, %12 : vector<8x8xf32>
    %cst_40 = arith.constant dense<0xFF800000> : vector<8xf32>
    %115 = vector.multi_reduction <maximumf>, %114, %cst_40 [1] : vector<8x8xf32> to vector<8xf32>
    %116 = vector.shape_cast %115 : vector<8xf32> to vector<8x1xf32>
    %117 = vector.broadcast %116 : vector<8x1xf32> to vector<8x8xf32>
    %118 = arith.subf %114, %117 : vector<8x8xf32>
    %119 = math.exp %118 : vector<8x8xf32>
    %cst_41 = arith.constant dense<0.000000e+00> : vector<8xf32>
    %120 = vector.multi_reduction <add>, %119, %cst_41 [1] : vector<8x8xf32> to vector<8xf32>
    %121 = vector.shape_cast %120 : vector<8xf32> to vector<8x1xf32>
    %122 = tpu.reciprocal %121 {approx = true} : vector<8x1xf32> -> vector<8x1xf32>
    %123 = vector.broadcast %122 : vector<8x1xf32> to vector<8x8xf32>
    %124 = arith.mulf %119, %123 : vector<8x8xf32>
    %125 = arith.truncf %124 : vector<8x8xf32> to vector<8x8xbf16>
    %cst_42 = arith.constant dense<0.000000e+00> : vector<8x128xf32>
    %126 = tpu.matmul %125, %112, %cst_42 {dimension_numbers = #tpu.dot_dimension_numbers<[1], [0], [0], [1], [0, 0, 1, 1], [], []>} : vector<8x8xbf16>, vector<8x128xbf16>, vector<8x128xf32> -> vector<8x128xf32>
    %127 = vector.extract_strided_slice %92 {offsets = [0, 256], sizes = [8, 128], strides = [1, 1]} : vector<8x1536xbf16> to vector<8x128xbf16>
    %128 = vector.extract_strided_slice %92 {offsets = [0, 768], sizes = [8, 128], strides = [1, 1]} : vector<8x1536xbf16> to vector<8x128xbf16>
    %129 = vector.extract_strided_slice %92 {offsets = [0, 1280], sizes = [8, 128], strides = [1, 1]} : vector<8x1536xbf16> to vector<8x128xbf16>
    %cst_43 = arith.constant dense<0.000000e+00> : vector<8x8xf32>
    %130 = tpu.matmul %127, %128, %cst_43 {dimension_numbers = #tpu.dot_dimension_numbers<[1], [1], [0], [0], [0, 0, 1, 0], [], []>} : vector<8x128xbf16>, vector<8x128xbf16>, vector<8x8xf32> -> vector<8x8xf32>
    %131 = arith.addf %130, %12 : vector<8x8xf32>
    %cst_44 = arith.constant dense<0xFF800000> : vector<8xf32>
    %132 = vector.multi_reduction <maximumf>, %131, %cst_44 [1] : vector<8x8xf32> to vector<8xf32>
    %133 = vector.shape_cast %132 : vector<8xf32> to vector<8x1xf32>
    %134 = vector.broadcast %133 : vector<8x1xf32> to vector<8x8xf32>
    %135 = arith.subf %131, %134 : vector<8x8xf32>
    %136 = math.exp %135 : vector<8x8xf32>
    %cst_45 = arith.constant dense<0.000000e+00> : vector<8xf32>
    %137 = vector.multi_reduction <add>, %136, %cst_45 [1] : vector<8x8xf32> to vector<8xf32>
    %138 = vector.shape_cast %137 : vector<8xf32> to vector<8x1xf32>
    %139 = tpu.reciprocal %138 {approx = true} : vector<8x1xf32> -> vector<8x1xf32>
    %140 = vector.broadcast %139 : vector<8x1xf32> to vector<8x8xf32>
    %141 = arith.mulf %136, %140 : vector<8x8xf32>
    %142 = arith.truncf %141 : vector<8x8xf32> to vector<8x8xbf16>
    %cst_46 = arith.constant dense<0.000000e+00> : vector<8x128xf32>
    %143 = tpu.matmul %142, %129, %cst_46 {dimension_numbers = #tpu.dot_dimension_numbers<[1], [0], [0], [1], [0, 0, 1, 1], [], []>} : vector<8x8xbf16>, vector<8x128xbf16>, vector<8x128xf32> -> vector<8x128xf32>
    %144 = vector.extract_strided_slice %92 {offsets = [0, 384], sizes = [8, 128], strides = [1, 1]} : vector<8x1536xbf16> to vector<8x128xbf16>
    %145 = vector.extract_strided_slice %92 {offsets = [0, 896], sizes = [8, 128], strides = [1, 1]} : vector<8x1536xbf16> to vector<8x128xbf16>
    %146 = vector.extract_strided_slice %92 {offsets = [0, 1408], sizes = [8, 128], strides = [1, 1]} : vector<8x1536xbf16> to vector<8x128xbf16>
    %cst_47 = arith.constant dense<0.000000e+00> : vector<8x8xf32>
    %147 = tpu.matmul %144, %145, %cst_47 {dimension_numbers = #tpu.dot_dimension_numbers<[1], [1], [0], [0], [0, 0, 1, 0], [], []>} : vector<8x128xbf16>, vector<8x128xbf16>, vector<8x8xf32> -> vector<8x8xf32>
    %148 = arith.addf %147, %12 : vector<8x8xf32>
    %cst_48 = arith.constant dense<0xFF800000> : vector<8xf32>
    %149 = vector.multi_reduction <maximumf>, %148, %cst_48 [1] : vector<8x8xf32> to vector<8xf32>
    %150 = vector.shape_cast %149 : vector<8xf32> to vector<8x1xf32>
    %151 = vector.broadcast %150 : vector<8x1xf32> to vector<8x8xf32>
    %152 = arith.subf %148, %151 : vector<8x8xf32>
    %153 = math.exp %152 : vector<8x8xf32>
    %cst_49 = arith.constant dense<0.000000e+00> : vector<8xf32>
    %154 = vector.multi_reduction <add>, %153, %cst_49 [1] : vector<8x8xf32> to vector<8xf32>
    %155 = vector.shape_cast %154 : vector<8xf32> to vector<8x1xf32>
    %156 = tpu.reciprocal %155 {approx = true} : vector<8x1xf32> -> vector<8x1xf32>
    %157 = vector.broadcast %156 : vector<8x1xf32> to vector<8x8xf32>
    %158 = arith.mulf %153, %157 : vector<8x8xf32>
    %159 = arith.truncf %158 : vector<8x8xf32> to vector<8x8xbf16>
    %cst_50 = arith.constant dense<0.000000e+00> : vector<8x128xf32>
    %160 = tpu.matmul %159, %146, %cst_50 {dimension_numbers = #tpu.dot_dimension_numbers<[1], [0], [0], [1], [0, 0, 1, 1], [], []>} : vector<8x8xbf16>, vector<8x128xbf16>, vector<8x128xf32> -> vector<8x128xf32>
    %161 = tpu.concatenate %109, %126, %143, %160 in 1 : vector<8x128xf32>, vector<8x128xf32>, vector<8x128xf32>, vector<8x128xf32> -> vector<8x512xf32>
    %162 = arith.truncf %161 : vector<8x512xf32> to vector<8x512xbf16>
    %cst_51 = arith.constant dense<0.000000e+00> : vector<8x264xf32>
    %163 = tpu.matmul %162, %13, %cst_51 {dimension_numbers = #tpu.dot_dimension_numbers<[1], [0], [0], [1], [0, 0, 1, 1], [], []>} : vector<8x512xbf16>, vector<512x264xbf16>, vector<8x264xf32> -> vector<8x264xf32>
    %164 = vector.broadcast %14 : vector<1x264xf32> to vector<8x264xf32>
    %165 = arith.addf %163, %164 : vector<8x264xf32>
    %c1 = arith.constant 1 : index
    %c0_52 = arith.constant 0 : index
    %c0_53 = arith.constant 0 : index
    %166 = vector.load %arg5[%c1, %c0_52, %c0_53] : memref<2x8x264xf32, #tpu.memory_space<vmem>>, vector<1x8x264xf32>
    %167 = vector.shape_cast %166 : vector<1x8x264xf32> to vector<8x264xf32>
    %168 = vector.shape_cast %165 : vector<8x264xf32> to vector<1x8x264xf32>
    tpu.vector_store %arg5[%c1, %c0_52, %c0_53], %168 {strides = array<i32>} : memref<2x8x264xf32, #tpu.memory_space<vmem>>, vector<1x8x264xf32>,
    return
  }
  func.func @transform_0(%arg0: i32) -> (i32, i32, i32) {
    %c0_i32 = arith.constant 0 : i32
    %c0_i32_0 = arith.constant 0 : i32
    %c0_i32_1 = arith.constant 0 : i32
    return %arg0, %c0_i32, %c0_i32_0 : i32, i32, i32
  }
  func.func @transform_1(%arg0: i32) -> (i32, i32) {
    %c0_i32 = arith.constant 0 : i32
    %c0_i32_0 = arith.constant 0 : i32
    %c0_i32_1 = arith.constant 0 : i32
    return %c0_i32, %c0_i32_0 : i32, i32
  }
  func.func @transform_2(%arg0: i32) -> (i32, i32) {
    %c0_i32 = arith.constant 0 : i32
    %c0_i32_0 = arith.constant 0 : i32
    %c0_i32_1 = arith.constant 0 : i32
    return %c0_i32, %c0_i32_0 : i32, i32
  }
  func.func @transform_3(%arg0: i32) -> (i32, i32) {
    %c0_i32 = arith.constant 0 : i32
    %c0_i32_0 = arith.constant 0 : i32
    %c0_i32_1 = arith.constant 0 : i32
    return %c0_i32, %c0_i32_0 : i32, i32
  }
  func.func @transform_4(%arg0: i32) -> (i32, i32, i32) {
    %c0_i32 = arith.constant 0 : i32
    %c0_i32_0 = arith.constant 0 : i32
    %c0_i32_1 = arith.constant 0 : i32
    return %arg0, %c0_i32, %c0_i32_0 : i32, i32, i32
  }
}

</mosaic_0001>

<llo_original>
// kernel: tpu_custom_call.1
$region0: #{tpu_custom_call.1}
  #allocation0 [shape = 'u32[]', space=smem, size = 0x4, offset = 0x4, fixed_abs, tag = 'smem constant byte address 0x4 - core index']
  #allocation1 [shape = 'u32[144,128]{1,0:T(1,128)}', space=vmem, size = 0x12000, scoped, tag = 'internal scratch']
  #allocation2 [shape = 'bf16[16,1536]{1,0:T(8,128)(2,1)}', space=vmem, size = 0xc000, scoped, tag = 'scratch operand']
  %s0 = inlined_call_operand.vmem [shape: f32[2,8,264], index: 0, kind: input, shape index: {}]
  %s1 = inlined_call_operand.hbm [shape: bf16[264,1536], index: 1, kind: input, shape index: {}]
  %s2 = inlined_call_operand.vmem [shape: bf16[512,264], index: 2, kind: input, shape index: {}]
  %s3 = inlined_call_operand.vmem [shape: f32[1,264], index: 3, kind: input, shape index: {}]
  %s4 = inlined_call_operand.hbm [shape: f32[2,8,264], index: 4, kind: output, shape index: {}]
  %s5 = sld [smem:[#allocation0]]
  $region30: #{tpu_custom_call.1} parent=0
    _
  %s7 = ssub.s32 1, %s5
  %s8 = scalar_select 0, %s7, %s5
  $region1: #{tpu_custom_call.1} parent=0
    #allocation3 [shape = 'u8[811008]{0}', space=vmem, size = 0xc6000, scoped, tag = 'input window, operand 1, single buffered']
    #allocation4 [shape = 's32[1]{0}', space=sflag, size = 0x4, scoped, tag = 'scoped memory for tpu_custom_call.1']
    #allocation5 [shape = 's32[1]{0}', space=sflag, size = 0x4, scoped, tag = 'scoped memory for tpu_custom_call.1']
    #allocation6 [shape = 'u8[24576]{0}', space=vmem, size = 0x6000, scoped, tag = 'output window, operand 0, single buffered']
    %9 = vsyncpa [#allocation4], 0
    %10 = vsyncpa [#allocation5], 0
    // Predicated region
    $region2: #{tpu_custom_call.1} parent=1 // pred_check
      _
    $region3: #{tpu_custom_call.1} parent=1 // pred_check_branch
      %12 = sbr.rel (0) target = $region5
    $region4: #{tpu_custom_call.1} parent=1 // pred_region
      _
    $region5: #{tpu_custom_call.1} parent=1 // pred_fallthru
      _
    // Predicated region
    $region6: #{tpu_custom_call.1} parent=1 // pred_check
      _
    $region7: #{tpu_custom_call.1} parent=1 // pred_check_branch
      %14 = sbr.rel (0) target = $region9
    $region8: #{tpu_custom_call.1} parent=1 // pred_region
      %s16 = ssub.s32 25344, 25344
      %17 = vsyncadd [#allocation4], %s16
      %s18 = sshll.u32 [#allocation3], 4
      %s19 = int_to_ptr.vmem [resolvable:$true] %s18
      %24 = dma.hbm_to_vmem [thread:$0]  %s1, 25344, %s19, [#allocation4], 768, 768, 48
    $region9: #{tpu_custom_call.1} parent=1 // pred_fallthru
      _
    // Predicated region
    $region10: #{tpu_custom_call.1} parent=1 // pred_check
      _
    $region11: #{tpu_custom_call.1} parent=1 // pred_check_branch
      %26 = sbr.rel (0) target = $region13
    $region12: #{tpu_custom_call.1} parent=1 // pred_region
      _
    $region13: #{tpu_custom_call.1} parent=1 // pred_fallthru
      _
    // Predicated region
    $region14: #{tpu_custom_call.1} parent=1 // pred_check
      _
    $region15: #{tpu_custom_call.1} parent=1 // pred_check_branch
      %28 = sbr.rel (0) target = $region17
    $region16: #{tpu_custom_call.1} parent=1 // pred_region
      _
    $region17: #{tpu_custom_call.1} parent=1 // pred_fallthru
      _
    // Predicated region
    $region18: #{tpu_custom_call.1} parent=1 // pred_check
      _
    $region19: #{tpu_custom_call.1} parent=1 // pred_check_branch
      %30 = sbr.rel (0) target = $region21
    $region20: #{tpu_custom_call.1} parent=1 // pred_region
      %31 = dma.done [#allocation4], 25344
    $region21: #{tpu_custom_call.1} parent=1 // pred_fallthru
      _
    %v33 = vld [vmem:[%s0] sm:$0xff]
    %v34 = vld [vmem:[%s0 + $0x8] sm:$0xff]
    %v35 = vld [vmem:[%s0 + $0x10] sm:$0xff]
    %v36 = vld [vmem:[%s0 + $0x18] sm:$0xff]
    %v37 = vld [vmem:[%s0 + $0x20] sm:$0xff]
    %v38 = vld [vmem:[%s0 + $0x28] sm:$0xff]
    %v39 = vpack.c.bf16 %v36, %v33
    %v40 = vpack.c.bf16 %v37, %v34
    %v41 = vpack.c.bf16 %v38, %v35
    %v42 = vld [vmem:[#allocation3] sm:$0xff]
    %v43 = vld [vmem:[#allocation3 + $0x8] sm:$0xff]
    %v44 = vld [vmem:[#allocation3 + $0x10] sm:$0xff]
    %v45 = vld [vmem:[#allocation3 + $0x18] sm:$0xff]
    %v46 = vld [vmem:[#allocation3 + $0x20] sm:$0xff]
    %v47 = vld [vmem:[#allocation3 + $0x28] sm:$0xff]
    %v48 = vld [vmem:[#allocation3 + $0x30] sm:$0xff]
    %v49 = vld [vmem:[#allocation3 + $0x38] sm:$0xff]
    %v50 = vld [vmem:[#allocation3 + $0x40] sm:$0xff]
    %v51 = vld [vmem:[#allocation3 + $0x48] sm:$0xff]
    %v52 = vld [vmem:[#allocation3 + $0x50] sm:$0xff]
    %v53 = vld [vmem:[#allocation3 + $0x58] sm:$0xff]
    %v54 = vld [vmem:[#allocation3 + $0x60] sm:$0xff]
    %v55 = vld [vmem:[#allocation3 + $0x68] sm:$0xff]
    %v56 = vld [vmem:[#allocation3 + $0x70] sm:$0xff]
    %v57 = vld [vmem:[#allocation3 + $0x78] sm:$0xff]
    %v58 = vld [vmem:[#allocation3 + $0x80] sm:$0xff]
    %v59 = vld [vmem:[#allocation3 + $0x88] sm:$0xff]
    %v60 = vld [vmem:[#allocation3 + $0x90] sm:$0xff]
    %v61 = vld [vmem:[#allocation3 + $0x98] sm:$0xff]
    %v62 = vld [vmem:[#allocation3 + $0xa0] sm:$0xff]
    %v63 = vld [vmem:[#allocation3 + $0xa8] sm:$0xff]
    %v64 = vld [vmem:[#allocation3 + $0xb0] sm:$0xff]
    %v65 = vld [vmem:[#allocation3 + $0xb8] sm:$0xff]
    %v66 = vld [vmem:[#allocation3 + $0xc0] sm:$0xff]
    %v67 = vld [vmem:[#allocation3 + $0xc8] sm:$0xff]
    %v68 = vld [vmem:[#allocation3 + $0xd0] sm:$0xff]
    %v69 = vld [vmem:[#allocation3 + $0xd8] sm:$0xff]
    %v70 = vld [vmem:[#allocation3 + $0xe0] sm:$0xff]
    %v71 = vld [vmem:[#allocation3 + $0xe8] sm:$0xff]
    %v72 = vld [vmem:[#allocation3 + $0xf0] sm:$0xff]
    %v73 = vld [vmem:[#allocation3 + $0xf8] sm:$0xff]
    %v74 = vld [vmem:[#allocation3 + $0x100] sm:$0xff]
    %v75 = vld [vmem:[#allocation3 + $0x108] sm:$0xff]
    %v76 = vld [vmem:[#allocation3 + $0x110] sm:$0xff]
    %v77 = vld [vmem:[#allocation3 + $0x118] sm:$0xff]
    %v78 = vld [vmem:[#allocation3 + $0x120] sm:$0xff]
    %v79 = vld [vmem:[#allocation3 + $0x128] sm:$0xff]
    %v80 = vld [vmem:[#allocation3 + $0x130] sm:$0xff]
    %v81 = vld [vmem:[#allocation3 + $0x138] sm:$0xff]
    %v82 = vld [vmem:[#allocation3 + $0x140] sm:$0xff]
    %v83 = vld [vmem:[#allocation3 + $0x148] sm:$0xff]
    %v84 = vld [vmem:[#allocation3 + $0x150] sm:$0xff]
    %v85 = vld [vmem:[#allocation3 + $0x158] sm:$0xff]
    %v86 = vld [vmem:[#allocation3 + $0x160] sm:$0xff]
    %v87 = vld [vmem:[#allocation3 + $0x168] sm:$0xff]
    %v88 = vld [vmem:[#allocation3 + $0x170] sm:$0xff]
    %v89 = vld [vmem:[#allocation3 + $0x178] sm:$0xff]
    %v90 = vld [vmem:[#allocation3 + $0x180] sm:$0xff]
    %v91 = vld [vmem:[#allocation3 + $0x188] sm:$0xff]
    %v92 = vld [vmem:[#allocation3 + $0x190] sm:$0xff]
    %v93 = vld [vmem:[#allocation3 + $0x198] sm:$0xff]
    %v94 = vld [vmem:[#allocation3 + $0x1a0] sm:$0xff]
    %v95 = vld [vmem:[#allocation3 + $0x1a8] sm:$0xff]
    %v96 = vld [vmem:[#allocation3 + $0x1b0] sm:$0xff]
    %v97 = vld [vmem:[#allocation3 + $0x1b8] sm:$0xff]
    %v98 = vld [vmem:[#allocation3 + $0x1c0] sm:$0xff]
    %v99 = vld [vmem:[#allocation3 + $0x1c8] sm:$0xff]
    %v100 = vld [vmem:[#allocation3 + $0x1d0] sm:$0xff]
    %v101 = vld [vmem:[#allocation3 + $0x1d8] sm:$0xff]
    %v102 = vld [vmem:[#allocation3 + $0x1e0] sm:$0xff]
    %v103 = vld [vmem:[#allocation3 + $0x1e8] sm:$0xff]
    %v104 = vld [vmem:[#allocation3 + $0x1f0] sm:$0xff]
    %v105 = vld [vmem:[#allocation3 + $0x1f8] sm:$0xff]
    %v106 = vld [vmem:[#allocation3 + $0x200] sm:$0xff]
    %v107 = vld [vmem:[#allocation3 + $0x208] sm:$0xff]
    %v108 = vld [vmem:[#allocation3 + $0x210] sm:$0xff]
    %v109 = vld [vmem:[#allocation3 + $0x218] sm:$0xff]
    %v110 = vld [vmem:[#allocation3 + $0x220] sm:$0xff]
    %v111 = vld [vmem:[#allocation3 + $0x228] sm:$0xff]
    %v112 = vld [vmem:[#allocation3 + $0x230] sm:$0xff]
    %v113 = vld [vmem:[#allocation3 + $0x238] sm:$0xff]
    %v114 = vld [vmem:[#allocation3 + $0x240] sm:$0xff]
    %v115 = vld [vmem:[#allocation3 + $0x248] sm:$0xff]
    %v116 = vld [vmem:[#allocation3 + $0x250] sm:$0xff]
    %v117 = vld [vmem:[#allocation3 + $0x258] sm:$0xff]
    %v118 = vld [vmem:[#allocation3 + $0x260] sm:$0xff]
    %v119 = vld [vmem:[#allocation3 + $0x268] sm:$0xff]
    %v120 = vld [vmem:[#allocation3 + $0x270] sm:$0xff]
    %v121 = vld [vmem:[#allocation3 + $0x278] sm:$0xff]
    %v122 = vld [vmem:[#allocation3 + $0x280] sm:$0xff]
    %v123 = vld [vmem:[#allocation3 + $0x288] sm:$0xff]
    %v124 = vld [vmem:[#allocation3 + $0x290] sm:$0xff]
    %v125 = vld [vmem:[#allocation3 + $0x298] sm:$0xff]
    %v126 = vld [vmem:[#allocation3 + $0x2a0] sm:$0xff]
    %v127 = vld [vmem:[#allocation3 + $0x2a8] sm:$0xff]
    %v128 = vld [vmem:[#allocation3 + $0x2b0] sm:$0xff]
    %v129 = vld [vmem:[#allocation3 + $0x2b8] sm:$0xff]
    %v130 = vld [vmem:[#allocation3 + $0x2c0] sm:$0xff]
    %v131 = vld [vmem:[#allocation3 + $0x2c8] sm:$0xff]
    %v132 = vld [vmem:[#allocation3 + $0x2d0] sm:$0xff]
    %v133 = vld [vmem:[#allocation3 + $0x2d8] sm:$0xff]
    %v134 = vld [vmem:[#allocation3 + $0x2e0] sm:$0xff]
    %v135 = vld [vmem:[#allocation3 + $0x2e8] sm:$0xff]
    %v136 = vld [vmem:[#allocation3 + $0x2f0] sm:$0xff]
    %v137 = vld [vmem:[#allocation3 + $0x2f8] sm:$0xff]
    %v138 = vld [vmem:[#allocation3 + $0x300] sm:$0xff]
    %v139 = vld [vmem:[#allocation3 + $0x308] sm:$0xff]
    %v140 = vld [vmem:[#allocation3 + $0x310] sm:$0xff]
    %v141 = vld [vmem:[#allocation3 + $0x318] sm:$0xff]
    %v142 = vld [vmem:[#allocation3 + $0x320] sm:$0xff]
    %v143 = vld [vmem:[#allocation3 + $0x328] sm:$0xff]
    %v144 = vld [vmem:[#allocation3 + $0x330] sm:$0xff]
    %v145 = vld [vmem:[#allocation3 + $0x338] sm:$0xff]
    %v146 = vld [vmem:[#allocation3 + $0x340] sm:$0xff]
    %v147 = vld [vmem:[#allocation3 + $0x348] sm:$0xff]
    %v148 = vld [vmem:[#allocation3 + $0x350] sm:$0xff]
    %v149 = vld [vmem:[#allocation3 + $0x358] sm:$0xff]
    %v150 = vld [vmem:[#allocation3 + $0x360] sm:$0xff]
    %v151 = vld [vmem:[#allocation3 + $0x368] sm:$0xff]
    %v152 = vld [vmem:[#allocation3 + $0x370] sm:$0xff]
    %v153 = vld [vmem:[#allocation3 + $0x378] sm:$0xff]
    %v154 = vld [vmem:[#allocation3 + $0x380] sm:$0xff]
    %v155 = vld [vmem:[#allocation3 + $0x388] sm:$0xff]
    %v156 = vld [vmem:[#allocation3 + $0x390] sm:$0xff]
    %v157 = vld [vmem:[#allocation3 + $0x398] sm:$0xff]
    %v158 = vld [vmem:[#allocation3 + $0x3a0] sm:$0xff]
    %v159 = vld [vmem:[#allocation3 + $0x3a8] sm:$0xff]
    %v160 = vld [vmem:[#allocation3 + $0x3b0] sm:$0xff]
    %v161 = vld [vmem:[#allocation3 + $0x3b8] sm:$0xff]
    %v162 = vld [vmem:[#allocation3 + $0x3c0] sm:$0xff]
    %v163 = vld [vmem:[#allocation3 + $0x3c8] sm:$0xff]
    %v164 = vld [vmem:[#allocation3 + $0x3d0] sm:$0xff]
    %v165 = vld [vmem:[#allocation3 + $0x3d8] sm:$0xff]
    %v166 = vld [vmem:[#allocation3 + $0x3e0] sm:$0xff]
    %v167 = vld [vmem:[#allocation3 + $0x3e8] sm:$0xff]
    %v168 = vld [vmem:[#allocation3 + $0x3f0] sm:$0xff]
    %v169 = vld [vmem:[#allocation3 + $0x3f8] sm:$0xff]
    %v170 = vld [vmem:[#allocation3 + $0x400] sm:$0xff]
    %v171 = vld [vmem:[#allocation3 + $0x408] sm:$0xff]
    %v172 = vld [vmem:[#allocation3 + $0x410] sm:$0xff]
    %v173 = vld [vmem:[#allocation3 + $0x418] sm:$0xff]
    %v174 = vld [vmem:[#allocation3 + $0x420] sm:$0xff]
    %v175 = vld [vmem:[#allocation3 + $0x428] sm:$0xff]
    %v176 = vld [vmem:[#allocation3 + $0x430] sm:$0xff]
    %v177 = vld [vmem:[#allocation3 + $0x438] sm:$0xff]
    %v178 = vld [vmem:[#allocation3 + $0x440] sm:$0xff]
    %v179 = vld [vmem:[#allocation3 + $0x448] sm:$0xff]
    %v180 = vld [vmem:[#allocation3 + $0x450] sm:$0xff]
    %v181 = vld [vmem:[#allocation3 + $0x458] sm:$0xff]
    %v182 = vld [vmem:[#allocation3 + $0x460] sm:$0xff]
    %v183 = vld [vmem:[#allocation3 + $0x468] sm:$0xff]
    %v184 = vld [vmem:[#allocation3 + $0x470] sm:$0xff]
    %v185 = vld [vmem:[#allocation3 + $0x478] sm:$0xff]
    %v186 = vld [vmem:[#allocation3 + $0x480] sm:$0xff]
    %v187 = vld [vmem:[#allocation3 + $0x488] sm:$0xff]
    %v188 = vld [vmem:[#allocation3 + $0x490] sm:$0xff]
    %v189 = vld [vmem:[#allocation3 + $0x498] sm:$0xff]
    %v190 = vld [vmem:[#allocation3 + $0x4a0] sm:$0xff]
    %v191 = vld [vmem:[#allocation3 + $0x4a8] sm:$0xff]
    %v192 = vld [vmem:[#allocation3 + $0x4b0] sm:$0xff]
    %v193 = vld [vmem:[#allocation3 + $0x4b8] sm:$0xff]
    %v194 = vld [vmem:[#allocation3 + $0x4c0] sm:$0xff]
    %v195 = vld [vmem:[#allocation3 + $0x4c8] sm:$0xff]
    %v196 = vld [vmem:[#allocation3 + $0x4d0] sm:$0xff]
    %v197 = vld [vmem:[#allocation3 + $0x4d8] sm:$0xff]
    %v198 = vld [vmem:[#allocation3 + $0x4e0] sm:$0xff]
    %v199 = vld [vmem:[#allocation3 + $0x4e8] sm:$0xff]
    %v200 = vld [vmem:[#allocation3 + $0x4f0] sm:$0xff]
    %v201 = vld [vmem:[#allocation3 + $0x4f8] sm:$0xff]
    %v202 = vld [vmem:[#allocation3 + $0x500] sm:$0xff]
    %v203 = vld [vmem:[#allocation3 + $0x508] sm:$0xff]
    %v204 = vld [vmem:[#allocation3 + $0x510] sm:$0xff]
    %v205 = vld [vmem:[#allocation3 + $0x518] sm:$0xff]
    %v206 = vld [vmem:[#allocation3 + $0x520] sm:$0xff]
    %v207 = vld [vmem:[#allocation3 + $0x528] sm:$0xff]
    %v208 = vld [vmem:[#allocation3 + $0x530] sm:$0xff]
    %v209 = vld [vmem:[#allocation3 + $0x538] sm:$0xff]
    %v210 = vld [vmem:[#allocation3 + $0x540] sm:$0xff]
    %v211 = vld [vmem:[#allocation3 + $0x548] sm:$0xff]
    %v212 = vld [vmem:[#allocation3 + $0x550] sm:$0xff]
    %v213 = vld [vmem:[#allocation3 + $0x558] sm:$0xff]
    %v214 = vld [vmem:[#allocation3 + $0x560] sm:$0xff]
    %v215 = vld [vmem:[#allocation3 + $0x568] sm:$0xff]
    %v216 = vld [vmem:[#allocation3 + $0x570] sm:$0xff]
    %v217 = vld [vmem:[#allocation3 + $0x578] sm:$0xff]
    %v218 = vld [vmem:[#allocation3 + $0x580] sm:$0xff]
    %v219 = vld [vmem:[#allocation3 + $0x588] sm:$0xff]
    %v220 = vld [vmem:[#allocation3 + $0x590] sm:$0xff]
    %v221 = vld [vmem:[#allocation3 + $0x598] sm:$0xff]
    %v222 = vld [vmem:[#allocation3 + $0x5a0] sm:$0xff]
    %v223 = vld [vmem:[#allocation3 + $0x5a8] sm:$0xff]
    %v224 = vld [vmem:[#allocation3 + $0x5b0] sm:$0xff]
    %v225 = vld [vmem:[#allocation3 + $0x5b8] sm:$0xff]
    %v226 = vld [vmem:[#allocation3 + $0x5c0] sm:$0xff]
    %v227 = vld [vmem:[#allocation3 + $0x5c8] sm:$0xff]
    %v228 = vld [vmem:[#allocation3 + $0x5d0] sm:$0xff]
    %v229 = vld [vmem:[#allocation3 + $0x5d8] sm:$0xff]
    %v230 = vld [vmem:[#allocation3 + $0x5e0] sm:$0xff]
    %v231 = vld [vmem:[#allocation3 + $0x5e8] sm:$0xff]
    %v232 = vld [vmem:[#allocation3 + $0x5f0] sm:$0xff]
    %v233 = vld [vmem:[#allocation3 + $0x5f8] sm:$0xff]
    %v234 = vld [vmem:[#allocation3 + $0x600] sm:$0xff]
    %v235 = vld [vmem:[#allocation3 + $0x608] sm:$0xff]
    %v236 = vld [vmem:[#allocation3 + $0x610] sm:$0xff]
    %v237 = vld [vmem:[#allocation3 + $0x618] sm:$0xff]
    %v238 = vld [vmem:[#allocation3 + $0x620] sm:$0xff]
    %v239 = vld [vmem:[#allocation3 + $0x628] sm:$0xff]
    %v438 = vunpack.c.l.b16 %v42
    %v439 = vunpack.c.h.b16 %v42
    %v440 = vunpack.c.l.b16 %v43
    %v441 = vunpack.c.h.b16 %v43
    %v442 = vunpack.c.l.b16 %v44
    %v443 = vunpack.c.h.b16 %v44
    %v444 = vunpack.c.l.b16 %v45
    %v445 = vunpack.c.h.b16 %v45
    %v446 = vunpack.c.l.b16 %v46
    %v447 = vunpack.c.h.b16 %v46
    %v448 = vunpack.c.l.b16 %v47
    %v449 = vunpack.c.h.b16 %v47
    %v450 = vunpack.c.l.b16 %v48
    %v451 = vunpack.c.h.b16 %v48
    %v452 = vunpack.c.l.b16 %v49
    %v453 = vunpack.c.h.b16 %v49
    %v454 = vunpack.c.l.b16 %v50
    %v455 = vunpack.c.h.b16 %v50
    %v456 = vunpack.c.l.b16 %v51
    %v457 = vunpack.c.h.b16 %v51
    %v458 = vunpack.c.l.b16 %v52
    %v459 = vunpack.c.h.b16 %v52
    %v460 = vunpack.c.l.b16 %v53
    %v461 = vunpack.c.h.b16 %v53
    %v462 = vunpack.c.l.b16 %v54
    %v463 = vunpack.c.h.b16 %v54
    %v464 = vunpack.c.l.b16 %v55
    %v465 = vunpack.c.h.b16 %v55
    %v466 = vunpack.c.l.b16 %v56
    %v467 = vunpack.c.h.b16 %v56
    %v468 = vunpack.c.l.b16 %v57
    %v469 = vunpack.c.h.b16 %v57
    %v470 = vunpack.c.l.b16 %v58
    %v471 = vunpack.c.h.b16 %v58
    %v472 = vunpack.c.l.b16 %v59
    %v473 = vunpack.c.h.b16 %v59
    %v474 = vunpack.c.l.b16 %v60
    %v475 = vunpack.c.h.b16 %v60
    %v476 = vunpack.c.l.b16 %v61
    %v477 = vunpack.c.h.b16 %v61
    %v478 = vunpack.c.l.b16 %v62
    %v479 = vunpack.c.h.b16 %v62
    %v480 = vunpack.c.l.b16 %v63
    %v481 = vunpack.c.h.b16 %v63
    %v482 = vunpack.c.l.b16 %v64
    %v483 = vunpack.c.h.b16 %v64
    %v484 = vunpack.c.l.b16 %v65
    %v485 = vunpack.c.h.b16 %v65
    %v486 = vunpack.c.l.b16 %v66
    %v487 = vunpack.c.h.b16 %v66
    %v488 = vunpack.c.l.b16 %v67
    %v489 = vunpack.c.h.b16 %v67
    %v490 = vunpack.c.l.b16 %v68
    %v491 = vunpack.c.h.b16 %v68
    %v492 = vunpack.c.l.b16 %v69
    %v493 = vunpack.c.h.b16 %v69
    %v494 = vunpack.c.l.b16 %v70
    %v495 = vunpack.c.h.b16 %v70
    %v496 = vunpack.c.l.b16 %v71
    %v497 = vunpack.c.h.b16 %v71
    %v498 = vunpack.c.l.b16 %v72
    %v499 = vunpack.c.h.b16 %v72
    %v500 = vunpack.c.l.b16 %v73
    %v501 = vunpack.c.h.b16 %v73
    %v502 = vunpack.c.l.b16 %v74
    %v503 = vunpack.c.h.b16 %v74
    %v504 = vunpack.c.l.b16 %v75
    %v505 = vunpack.c.h.b16 %v75
    %v506 = vunpack.c.l.b16 %v76
    %v507 = vunpack.c.h.b16 %v76
    %v508 = vunpack.c.l.b16 %v77
    %v509 = vunpack.c.h.b16 %v77
    %v510 = vunpack.c.l.b16 %v78
    %v511 = vunpack.c.h.b16 %v78
    %v512 = vunpack.c.l.b16 %v79
    %v513 = vunpack.c.h.b16 %v79
    %v514 = vunpack.c.l.b16 %v80
    %v515 = vunpack.c.h.b16 %v80
    %v516 = vunpack.c.l.b16 %v81
    %v517 = vunpack.c.h.b16 %v81
    %v518 = vunpack.c.l.b16 %v82
    %v519 = vunpack.c.h.b16 %v82
    %v520 = vunpack.c.l.b16 %v83
    %v521 = vunpack.c.h.b16 %v83
    %v522 = vunpack.c.l.b16 %v84
    %v523 = vunpack.c.h.b16 %v84
    %v524 = vunpack.c.l.b16 %v85
    %v525 = vunpack.c.h.b16 %v85
    %v526 = vunpack.c.l.b16 %v86
    %v527 = vunpack.c.h.b16 %v86
    %v528 = vunpack.c.l.b16 %v87
    %v529 = vunpack.c.h.b16 %v87
    %v530 = vunpack.c.l.b16 %v88
    %v531 = vunpack.c.h.b16 %v88
    %v532 = vunpack.c.l.b16 %v89
    %v533 = vunpack.c.h.b16 %v89
    %v534 = vunpack.c.l.b16 %v90
    %v535 = vunpack.c.h.b16 %v90
    %v536 = vunpack.c.l.b16 %v91
    %v537 = vunpack.c.h.b16 %v91
    %v538 = vunpack.c.l.b16 %v92
    %v539 = vunpack.c.h.b16 %v92
    %v540 = vunpack.c.l.b16 %v93
    %v541 = vunpack.c.h.b16 %v93
    %v542 = vunpack.c.l.b16 %v94
    %v543 = vunpack.c.h.b16 %v94
    %v544 = vunpack.c.l.b16 %v95
    %v545 = vunpack.c.h.b16 %v95
    %v546 = vunpack.c.l.b16 %v96
    %v547 = vunpack.c.h.b16 %v96
    %v548 = vunpack.c.l.b16 %v97
    %v549 = vunpack.c.h.b16 %v97
    %v550 = vunpack.c.l.b16 %v98
    %v551 = vunpack.c.h.b16 %v98
    %v552 = vunpack.c.l.b16 %v99
    %v553 = vunpack.c.h.b16 %v99
    %v554 = vunpack.c.l.b16 %v100
    %v555 = vunpack.c.h.b16 %v100
    %v556 = vunpack.c.l.b16 %v101
    %v557 = vunpack.c.h.b16 %v101
    %v558 = vunpack.c.l.b16 %v102
    %v559 = vunpack.c.h.b16 %v102
    %v560 = vunpack.c.l.b16 %v103
    %v561 = vunpack.c.h.b16 %v103
    %v562 = vunpack.c.l.b16 %v104
    %v563 = vunpack.c.h.b16 %v104
    %v564 = vunpack.c.l.b16 %v105
    %v565 = vunpack.c.h.b16 %v105
    %v566 = vunpack.c.l.b16 %v106
    %v567 = vunpack.c.h.b16 %v106
    %v568 = vunpack.c.l.b16 %v107
    %v569 = vunpack.c.h.b16 %v107
    %v570 = vunpack.c.l.b16 %v108
    %v571 = vunpack.c.h.b16 %v108
    %v572 = vunpack.c.l.b16 %v109
    %v573 = vunpack.c.h.b16 %v109
    %v574 = vunpack.c.l.b16 %v110
    %v575 = vunpack.c.h.b16 %v110
    %v576 = vunpack.c.l.b16 %v111
    %v577 = vunpack.c.h.b16 %v111
    %v578 = vunpack.c.l.b16 %v112
    %v579 = vunpack.c.h.b16 %v112
    %v580 = vunpack.c.l.b16 %v113
    %v581 = vunpack.c.h.b16 %v113
    %v582 = vunpack.c.l.b16 %v114
    %v583 = vunpack.c.h.b16 %v114
    %v584 = vunpack.c.l.b16 %v115
    %v585 = vunpack.c.h.b16 %v115
    %v586 = vunpack.c.l.b16 %v116
    %v587 = vunpack.c.h.b16 %v116
    %v588 = vunpack.c.l.b16 %v117
    %v589 = vunpack.c.h.b16 %v117
    %v590 = vunpack.c.l.b16 %v118
    %v591 = vunpack.c.h.b16 %v118
    %v592 = vunpack.c.l.b16 %v119
    %v593 = vunpack.c.h.b16 %v119
    %v594 = vunpack.c.l.b16 %v120
    %v595 = vunpack.c.h.b16 %v120
    %v596 = vunpack.c.l.b16 %v121
    %v597 = vunpack.c.h.b16 %v121
    %v598 = vunpack.c.l.b16 %v122
    %v599 = vunpack.c.h.b16 %v122
    %v600 = vunpack.c.l.b16 %v123
    %v601 = vunpack.c.h.b16 %v123
    %v602 = vunpack.c.l.b16 %v124
    %v603 = vunpack.c.h.b16 %v124
    %v604 = vunpack.c.l.b16 %v125
    %v605 = vunpack.c.h.b16 %v125
    %v606 = vunpack.c.l.b16 %v126
    %v607 = vunpack.c.h.b16 %v126
    %v608 = vunpack.c.l.b16 %v127
    %v609 = vunpack.c.h.b16 %v127
    %v610 = vunpack.c.l.b16 %v128
    %v611 = vunpack.c.h.b16 %v128
    %v612 = vunpack.c.l.b16 %v129
    %v613 = vunpack.c.h.b16 %v129
    %v614 = vunpack.c.l.b16 %v130
    %v615 = vunpack.c.h.b16 %v130
    %v616 = vunpack.c.l.b16 %v131
    %v617 = vunpack.c.h.b16 %v131
    %v618 = vunpack.c.l.b16 %v132
    %v619 = vunpack.c.h.b16 %v132
    %v620 = vunpack.c.l.b16 %v133
    %v621 = vunpack.c.h.b16 %v133
    %v622 = vunpack.c.l.b16 %v134
    %v623 = vunpack.c.h.b16 %v134
    %v624 = vunpack.c.l.b16 %v135
    %v625 = vunpack.c.h.b16 %v135
    %v626 = vunpack.c.l.b16 %v136
    %v627 = vunpack.c.h.b16 %v136
    %v628 = vunpack.c.l.b16 %v137
    %v629 = vunpack.c.h.b16 %v137
    %v630 = vunpack.c.l.b16 %v138
    %v631 = vunpack.c.h.b16 %v138
    %v632 = vunpack.c.l.b16 %v139
    %v633 = vunpack.c.h.b16 %v139
    %v634 = vunpack.c.l.b16 %v140
    %v635 = vunpack.c.h.b16 %v140
    %v636 = vunpack.c.l.b16 %v141
    %v637 = vunpack.c.h.b16 %v141
    %v638 = vunpack.c.l.b16 %v142
    %v639 = vunpack.c.h.b16 %v142
    %v640 = vunpack.c.l.b16 %v143
    %v641 = vunpack.c.h.b16 %v143
    %v642 = vunpack.c.l.b16 %v144
    %v643 = vunpack.c.h.b16 %v144
    %v644 = vunpack.c.l.b16 %v145
    %v645 = vunpack.c.h.b16 %v145
    %v646 = vunpack.c.l.b16 %v146
    %v647 = vunpack.c.h.b16 %v146
    %v648 = vunpack.c.l.b16 %v147
    %v649 = vunpack.c.h.b16 %v147
    %v650 = vunpack.c.l.b16 %v148
    %v651 = vunpack.c.h.b16 %v148
    %v652 = vunpack.c.l.b16 %v149
    %v653 = vunpack.c.h.b16 %v149
    %v654 = vunpack.c.l.b16 %v150
    %v655 = vunpack.c.h.b16 %v150
    %v656 = vunpack.c.l.b16 %v151
    %v657 = vunpack.c.h.b16 %v151
    %v658 = vunpack.c.l.b16 %v152
    %v659 = vunpack.c.h.b16 %v152
    %v660 = vunpack.c.l.b16 %v153
    %v661 = vunpack.c.h.b16 %v153
    %v662 = vunpack.c.l.b16 %v154
    %v663 = vunpack.c.h.b16 %v154
    %v664 = vunpack.c.l.b16 %v155
    %v665 = vunpack.c.h.b16 %v155
    %v666 = vunpack.c.l.b16 %v156
    %v667 = vunpack.c.h.b16 %v156
    %v668 = vunpack.c.l.b16 %v157
    %v669 = vunpack.c.h.b16 %v157
    %v670 = vunpack.c.l.b16 %v158
    %v671 = vunpack.c.h.b16 %v158
    %v672 = vunpack.c.l.b16 %v159
    %v673 = vunpack.c.h.b16 %v159
    %v674 = vunpack.c.l.b16 %v160
    %v675 = vunpack.c.h.b16 %v160
    %v676 = vunpack.c.l.b16 %v161
    %v677 = vunpack.c.h.b16 %v161
    %v678 = vunpack.c.l.b16 %v162
    %v679 = vunpack.c.h.b16 %v162
    %v680 = vunpack.c.l.b16 %v163
    %v681 = vunpack.c.h.b16 %v163
    %v682 = vunpack.c.l.b16 %v164
    %v683 = vunpack.c.h.b16 %v164
    %v684 = vunpack.c.l.b16 %v165
    %v685 = vunpack.c.h.b16 %v165
    %v686 = vunpack.c.l.b16 %v166
    %v687 = vunpack.c.h.b16 %v166
    %v688 = vunpack.c.l.b16 %v167
    %v689 = vunpack.c.h.b16 %v167
    %v690 = vunpack.c.l.b16 %v168
    %v691 = vunpack.c.h.b16 %v168
    %v692 = vunpack.c.l.b16 %v169
    %v693 = vunpack.c.h.b16 %v169
    %v694 = vunpack.c.l.b16 %v170
    %v695 = vunpack.c.h.b16 %v170
    %v696 = vunpack.c.l.b16 %v171
    %v697 = vunpack.c.h.b16 %v171
    %v698 = vunpack.c.l.b16 %v172
    %v699 = vunpack.c.h.b16 %v172
    %v700 = vunpack.c.l.b16 %v173
    %v701 = vunpack.c.h.b16 %v173
    %v702 = vunpack.c.l.b16 %v174
    %v703 = vunpack.c.h.b16 %v174
    %v704 = vunpack.c.l.b16 %v175
    %v705 = vunpack.c.h.b16 %v175
    %v706 = vunpack.c.l.b16 %v176
    %v707 = vunpack.c.h.b16 %v176
    %v708 = vunpack.c.l.b16 %v177
    %v709 = vunpack.c.h.b16 %v177
    %v710 = vunpack.c.l.b16 %v178
    %v711 = vunpack.c.h.b16 %v178
    %v712 = vunpack.c.l.b16 %v179
    %v713 = vunpack.c.h.b16 %v179
    %v714 = vunpack.c.l.b16 %v180
    %v715 = vunpack.c.h.b16 %v180
    %v716 = vunpack.c.l.b16 %v181
    %v717 = vunpack.c.h.b16 %v181
    %v718 = vunpack.c.l.b16 %v182
    %v719 = vunpack.c.h.b16 %v182
    %v720 = vunpack.c.l.b16 %v183
    %v721 = vunpack.c.h.b16 %v183
    %v722 = vunpack.c.l.b16 %v184
    %v723 = vunpack.c.h.b16 %v184
    %v724 = vunpack.c.l.b16 %v185
    %v725 = vunpack.c.h.b16 %v185
    %v726 = vunpack.c.l.b16 %v186
    %v727 = vunpack.c.h.b16 %v186
    %v728 = vunpack.c.l.b16 %v187
    %v729 = vunpack.c.h.b16 %v187
    %v730 = vunpack.c.l.b16 %v188
    %v731 = vunpack.c.h.b16 %v188
    %v732 = vunpack.c.l.b16 %v189
    %v733 = vunpack.c.h.b16 %v189
    %v734 = vunpack.c.l.b16 %v190
    %v735 = vunpack.c.h.b16 %v190
    %v736 = vunpack.c.l.b16 %v191
    %v737 = vunpack.c.h.b16 %v191
    %v738 = vunpack.c.l.b16 %v192
    %v739 = vunpack.c.h.b16 %v192
    %v740 = vunpack.c.l.b16 %v193
    %v741 = vunpack.c.h.b16 %v193
    %v742 = vunpack.c.l.b16 %v194
    %v743 = vunpack.c.h.b16 %v194
    %v744 = vunpack.c.l.b16 %v195
    %v745 = vunpack.c.h.b16 %v195
    %v746 = vunpack.c.l.b16 %v196
    %v747 = vunpack.c.h.b16 %v196
    %v748 = vunpack.c.l.b16 %v197
    %v749 = vunpack.c.h.b16 %v197
    %v750 = vunpack.c.l.b16 %v198
    %v751 = vunpack.c.h.b16 %v198
    %v752 = vunpack.c.l.b16 %v199
    %v753 = vunpack.c.h.b16 %v199
    %v754 = vunpack.c.l.b16 %v200
    %v755 = vunpack.c.h.b16 %v200
    %v756 = vunpack.c.l.b16 %v201
    %v757 = vunpack.c.h.b16 %v201
    %v758 = vunpack.c.l.b16 %v202
    %v759 = vunpack.c.h.b16 %v202
    %v760 = vunpack.c.l.b16 %v203
    %v761 = vunpack.c.h.b16 %v203
    %v762 = vunpack.c.l.b16 %v204
    %v763 = vunpack.c.h.b16 %v204
    %v764 = vunpack.c.l.b16 %v205
    %v765 = vunpack.c.h.b16 %v205
    %v766 = vunpack.c.l.b16 %v206
    %v767 = vunpack.c.h.b16 %v206
    %v768 = vunpack.c.l.b16 %v207
    %v769 = vunpack.c.h.b16 %v207
    %v770 = vunpack.c.l.b16 %v208
    %v771 = vunpack.c.h.b16 %v208
    %v772 = vunpack.c.l.b16 %v209
    %v773 = vunpack.c.h.b16 %v209
    %v774 = vunpack.c.l.b16 %v210
    %v775 = vunpack.c.h.b16 %v210
    %v776 = vunpack.c.l.b16 %v211
    %v777 = vunpack.c.h.b16 %v211
    %v778 = vunpack.c.l.b16 %v212
    %v779 = vunpack.c.h.b16 %v212
    %v780 = vunpack.c.l.b16 %v213
    %v781 = vunpack.c.h.b16 %v213
    %v782 = vunpack.c.l.b16 %v214
    %v783 = vunpack.c.h.b16 %v214
    %v784 = vunpack.c.l.b16 %v215
    %v785 = vunpack.c.h.b16 %v215
    %v786 = vunpack.c.l.b16 %v216
    %v787 = vunpack.c.h.b16 %v216
    %v788 = vunpack.c.l.b16 %v217
    %v789 = vunpack.c.h.b16 %v217
    %v790 = vunpack.c.l.b16 %v218
    %v791 = vunpack.c.h.b16 %v218
    %v792 = vunpack.c.l.b16 %v219
    %v793 = vunpack.c.h.b16 %v219
    %v794 = vunpack.c.l.b16 %v220
    %v795 = vunpack.c.h.b16 %v220
    %v796 = vunpack.c.l.b16 %v221
    %v797 = vunpack.c.h.b16 %v221
    %v798 = vunpack.c.l.b16 %v222
    %v799 = vunpack.c.h.b16 %v222
    %v800 = vunpack.c.l.b16 %v223
    %v801 = vunpack.c.h.b16 %v223
    %v802 = vunpack.c.l.b16 %v224
    %v803 = vunpack.c.h.b16 %v224
    %v804 = vunpack.c.l.b16 %v225
    %v805 = vunpack.c.h.b16 %v225
    %v806 = vunpack.c.l.b16 %v226
    %v807 = vunpack.c.h.b16 %v226
    %v808 = vunpack.c.l.b16 %v227
    %v809 = vunpack.c.h.b16 %v227
    %v810 = vunpack.c.l.b16 %v228
    %v811 = vunpack.c.h.b16 %v228
    %v812 = vunpack.c.l.b16 %v229
    %v813 = vunpack.c.h.b16 %v229
    %v814 = vunpack.c.l.b16 %v230
    %v815 = vunpack.c.h.b16 %v230
    %v816 = vunpack.c.l.b16 %v231
    %v817 = vunpack.c.h.b16 %v231
    %v818 = vunpack.c.l.b16 %v232
    %v819 = vunpack.c.h.b16 %v232
    %v820 = vunpack.c.l.b16 %v233
    %v821 = vunpack.c.h.b16 %v233
    %v822 = vunpack.c.l.b16 %v234
    %v823 = vunpack.c.h.b16 %v234
    %v824 = vunpack.c.l.b16 %v235
    %v825 = vunpack.c.h.b16 %v235
    %v826 = vunpack.c.l.b16 %v236
    %v827 = vunpack.c.h.b16 %v236
    %v828 = vunpack.c.l.b16 %v237
    %v829 = vunpack.c.h.b16 %v237
    %v830 = vunpack.c.l.b16 %v238
    %v831 = vunpack.c.h.b16 %v238
    %v832 = vunpack.c.l.b16 %v239
    %v833 = vunpack.c.h.b16 %v239
    %v834 = vpack.c.b16 %v450, %v438
    %v835 = vpack.c.b16 %v451, %v439
    %v836 = vpack.c.b16 %v452, %v440
    %v837 = vpack.c.b16 %v453, %v441
    %v838 = vpack.c.b16 %v454, %v442
    %v839 = vpack.c.b16 %v455, %v443
    %v840 = vpack.c.b16 %v456, %v444
    %v841 = vpack.c.b16 %v457, %v445
    %v842 = vpack.c.b16 %v458, %v446
    %v843 = vpack.c.b16 %v459, %v447
    %v844 = vpack.c.b16 %v460, %v448
    %v845 = vpack.c.b16 %v461, %v449
    %v846 = vpack.c.b16 %v474, %v462
    %v847 = vpack.c.b16 %v475, %v463
    %v848 = vpack.c.b16 %v476, %v464
    %v849 = vpack.c.b16 %v477, %v465
    %v850 = vpack.c.b16 %v478, %v466
    %v851 = vpack.c.b16 %v479, %v467
    %v852 = vpack.c.b16 %v480, %v468
    %v853 = vpack.c.b16 %v481, %v469
    %v854 = vpack.c.b16 %v482, %v470
    %v855 = vpack.c.b16 %v483, %v471
    %v856 = vpack.c.b16 %v484, %v472
    %v857 = vpack.c.b16 %v485, %v473
    %v858 = vpack.c.b16 %v498, %v486
    %v859 = vpack.c.b16 %v499, %v487
    %v860 = vpack.c.b16 %v500, %v488
    %v861 = vpack.c.b16 %v501, %v489
    %v862 = vpack.c.b16 %v502, %v490
    %v863 = vpack.c.b16 %v503, %v491
    %v864 = vpack.c.b16 %v504, %v492
    %v865 = vpack.c.b16 %v505, %v493
    %v866 = vpack.c.b16 %v506, %v494
    %v867 = vpack.c.b16 %v507, %v495
    %v868 = vpack.c.b16 %v508, %v496
    %v869 = vpack.c.b16 %v509, %v497
    %v870 = vpack.c.b16 %v522, %v510
    %v871 = vpack.c.b16 %v523, %v511
    %v872 = vpack.c.b16 %v524, %v512
    %v873 = vpack.c.b16 %v525, %v513
    %v874 = vpack.c.b16 %v526, %v514
    %v875 = vpack.c.b16 %v527, %v515
    %v876 = vpack.c.b16 %v528, %v516
    %v877 = vpack.c.b16 %v529, %v517
    %v878 = vpack.c.b16 %v530, %v518
    %v879 = vpack.c.b16 %v531, %v519
    %v880 = vpack.c.b16 %v532, %v520
    %v881 = vpack.c.b16 %v533, %v521
    %v882 = vpack.c.b16 %v546, %v534
    %v883 = vpack.c.b16 %v547, %v535
    %v884 = vpack.c.b16 %v548, %v536
    %v885 = vpack.c.b16 %v549, %v537
    %v886 = vpack.c.b16 %v550, %v538
    %v887 = vpack.c.b16 %v551, %v539
    %v888 = vpack.c.b16 %v552, %v540
    %v889 = vpack.c.b16 %v553, %v541
    %v890 = vpack.c.b16 %v554, %v542
    %v891 = vpack.c.b16 %v555, %v543
    %v892 = vpack.c.b16 %v556, %v544
    %v893 = vpack.c.b16 %v557, %v545
    %v894 = vpack.c.b16 %v570, %v558
    %v895 = vpack.c.b16 %v571, %v559
    %v896 = vpack.c.b16 %v572, %v560
    %v897 = vpack.c.b16 %v573, %v561
    %v898 = vpack.c.b16 %v574, %v562
    %v899 = vpack.c.b16 %v575, %v563
    %v900 = vpack.c.b16 %v576, %v564
    %v901 = vpack.c.b16 %v577, %v565
    %v902 = vpack.c.b16 %v578, %v566
    %v903 = vpack.c.b16 %v579, %v567
    %v904 = vpack.c.b16 %v580, %v568
    %v905 = vpack.c.b16 %v581, %v569
    %v906 = vpack.c.b16 %v594, %v582
    %v907 = vpack.c.b16 %v595, %v583
    %v908 = vpack.c.b16 %v596, %v584
    %v909 = vpack.c.b16 %v597, %v585
    %v910 = vpack.c.b16 %v598, %v586
    %v911 = vpack.c.b16 %v599, %v587
    %v912 = vpack.c.b16 %v600, %v588
    %v913 = vpack.c.b16 %v601, %v589
    %v914 = vpack.c.b16 %v602, %v590
    %v915 = vpack.c.b16 %v603, %v591
    %v916 = vpack.c.b16 %v604, %v592
    %v917 = vpack.c.b16 %v605, %v593
    %v918 = vpack.c.b16 %v618, %v606
    %v919 = vpack.c.b16 %v619, %v607
    %v920 = vpack.c.b16 %v620, %v608
    %v921 = vpack.c.b16 %v621, %v609
    %v922 = vpack.c.b16 %v622, %v610
    %v923 = vpack.c.b16 %v623, %v611
    %v924 = vpack.c.b16 %v624, %v612
    %v925 = vpack.c.b16 %v625, %v613
    %v926 = vpack.c.b16 %v626, %v614
    %v927 = vpack.c.b16 %v627, %v615
    %v928 = vpack.c.b16 %v628, %v616
    %v929 = vpack.c.b16 %v629, %v617
    %v930 = vpack.c.b16 %v642, %v630
    %v931 = vpack.c.b16 %v643, %v631
    %v932 = vpack.c.b16 %v644, %v632
    %v933 = vpack.c.b16 %v645, %v633
    %v934 = vpack.c.b16 %v646, %v634
    %v935 = vpack.c.b16 %v647, %v635
    %v936 = vpack.c.b16 %v648, %v636
    %v937 = vpack.c.b16 %v649, %v637
    %v938 = vpack.c.b16 %v650, %v638
    %v939 = vpack.c.b16 %v651, %v639
    %v940 = vpack.c.b16 %v652, %v640
    %v941 = vpack.c.b16 %v653, %v641
    %v942 = vpack.c.b16 %v666, %v654
    %v943 = vpack.c.b16 %v667, %v655
    %v944 = vpack.c.b16 %v668, %v656
    %v945 = vpack.c.b16 %v669, %v657
    %v946 = vpack.c.b16 %v670, %v658
    %v947 = vpack.c.b16 %v671, %v659
    %v948 = vpack.c.b16 %v672, %v660
    %v949 = vpack.c.b16 %v673, %v661
    %v950 = vpack.c.b16 %v674, %v662
    %v951 = vpack.c.b16 %v675, %v663
    %v952 = vpack.c.b16 %v676, %v664
    %v953 = vpack.c.b16 %v677, %v665
    %v954 = vpack.c.b16 %v690, %v678
    %v955 = vpack.c.b16 %v691, %v679
    %v956 = vpack.c.b16 %v692, %v680
    %v957 = vpack.c.b16 %v693, %v681
    %v958 = vpack.c.b16 %v694, %v682
    %v959 = vpack.c.b16 %v695, %v683
    %v960 = vpack.c.b16 %v696, %v684
    %v961 = vpack.c.b16 %v697, %v685
    %v962 = vpack.c.b16 %v698, %v686
    %v963 = vpack.c.b16 %v699, %v687
    %v964 = vpack.c.b16 %v700, %v688
    %v965 = vpack.c.b16 %v701, %v689
    %v966 = vpack.c.b16 %v714, %v702
    %v967 = vpack.c.b16 %v715, %v703
    %v968 = vpack.c.b16 %v716, %v704
    %v969 = vpack.c.b16 %v717, %v705
    %v970 = vpack.c.b16 %v718, %v706
    %v971 = vpack.c.b16 %v719, %v707
    %v972 = vpack.c.b16 %v720, %v708
    %v973 = vpack.c.b16 %v721, %v709
    %v974 = vpack.c.b16 %v722, %v710
    %v975 = vpack.c.b16 %v723, %v711
    %v976 = vpack.c.b16 %v724, %v712
    %v977 = vpack.c.b16 %v725, %v713
    %v978 = vpack.c.b16 %v738, %v726
    %v979 = vpack.c.b16 %v739, %v727
    %v980 = vpack.c.b16 %v740, %v728
    %v981 = vpack.c.b16 %v741, %v729
    %v982 = vpack.c.b16 %v742, %v730
    %v983 = vpack.c.b16 %v743, %v731
    %v984 = vpack.c.b16 %v744, %v732
    %v985 = vpack.c.b16 %v745, %v733
    %v986 = vpack.c.b16 %v746, %v734
    %v987 = vpack.c.b16 %v747, %v735
    %v988 = vpack.c.b16 %v748, %v736
    %v989 = vpack.c.b16 %v749, %v737
    %v990 = vpack.c.b16 %v762, %v750
    %v991 = vpack.c.b16 %v763, %v751
    %v992 = vpack.c.b16 %v764, %v752
    %v993 = vpack.c.b16 %v765, %v753
    %v994 = vpack.c.b16 %v766, %v754
    %v995 = vpack.c.b16 %v767, %v755
    %v996 = vpack.c.b16 %v768, %v756
    %v997 = vpack.c.b16 %v769, %v757
    %v998 = vpack.c.b16 %v770, %v758
    %v999 = vpack.c.b16 %v771, %v759
    %v1000 = vpack.c.b16 %v772, %v760
    %v1001 = vpack.c.b16 %v773, %v761
    %v1002 = vpack.c.b16 %v786, %v774
    %v1003 = vpack.c.b16 %v787, %v775
    %v1004 = vpack.c.b16 %v788, %v776
    %v1005 = vpack.c.b16 %v789, %v777
    %v1006 = vpack.c.b16 %v790, %v778
    %v1007 = vpack.c.b16 %v791, %v779
    %v1008 = vpack.c.b16 %v792, %v780
    %v1009 = vpack.c.b16 %v793, %v781
    %v1010 = vpack.c.b16 %v794, %v782
    %v1011 = vpack.c.b16 %v795, %v783
    %v1012 = vpack.c.b16 %v796, %v784
    %v1013 = vpack.c.b16 %v797, %v785
    %v1014 = vpack.c.b16 %v810, %v798
    %v1015 = vpack.c.b16 %v811, %v799
    %v1016 = vpack.c.b16 %v812, %v800
    %v1017 = vpack.c.b16 %v813, %v801
    %v1018 = vpack.c.b16 %v814, %v802
    %v1019 = vpack.c.b16 %v815, %v803
    %v1020 = vpack.c.b16 %v816, %v804
    %v1021 = vpack.c.b16 %v817, %v805
    %v1022 = vpack.c.b16 %v818, %v806
    %v1023 = vpack.c.b16 %v819, %v807
    %v1024 = vpack.c.b16 %v820, %v808
    %v1025 = vpack.c.b16 %v821, %v809
    %v1026 = vpack.c.b16 %v822, %v822
    %v1027 = vpack.c.b16 %v823, %v823
    %v1028 = vpack.c.b16 %v824, %v824
    %v1029 = vpack.c.b16 %v825, %v825
    %v1030 = vpack.c.b16 %v826, %v826
    %v1031 = vpack.c.b16 %v827, %v827
    %v1032 = vpack.c.b16 %v828, %v828
    %v1033 = vpack.c.b16 %v829, %v829
    %v1034 = vpack.c.b16 %v830, %v830
    %v1035 = vpack.c.b16 %v831, %v831
    %v1036 = vpack.c.b16 %v832, %v832
    %v1037 = vpack.c.b16 %v833, %v833
    %vm1230 = vcmask 64512
    %v1232 = vsel %vm1230, %v41, 0
    %vm1234 = vcmask 1043456
    %v1236 = vsel %vm1234, %v1026, 0
    %v1239 = vsel %vm1234, %v1027, 0
    %v1242 = vsel %vm1234, %v1028, 0
    %v1245 = vsel %vm1234, %v1029, 0
    %v1248 = vsel %vm1234, %v1030, 0
    %v1251 = vsel %vm1234, %v1031, 0
    %v1254 = vsel %vm1234, %v1032, 0
    %v1257 = vsel %vm1234, %v1033, 0
    %v1260 = vsel %vm1234, %v1034, 0
    %v1263 = vsel %vm1234, %v1035, 0
    %v1266 = vsel %vm1234, %v1036, 0
    %v1269 = vsel %vm1234, %v1037, 0
    %1271 = vmatprep.subr.bf16.mxu0 %v919
    %1272 = vmatpush1.bf16.msra.mxu0 %v918
    %1273 = vmatprep.subr.bf16.mxu0 %v907
    %1274 = vmatpush1.bf16.msra.mxu0 %v906
    %1275 = vmatprep.subr.bf16.mxu0 %v895
    %1276 = vmatpush1.bf16.msra.mxu0 %v894
    %1277 = vmatprep.subr.bf16.mxu0 %v883
    %1278 = vmatpush1.bf16.msra.mxu0 %v882
    %1279 = vmatprep.subr.bf16.mxu0 %v871
    %1280 = vmatpush1.bf16.msra.mxu0 %v870
    %1281 = vmatprep.subr.bf16.mxu0 %v859
    %1282 = vmatpush1.bf16.msra.mxu0 %v858
    %1283 = vmatprep.subr.bf16.mxu0 %v847
    %1284 = vmatpush1.bf16.msra.mxu0 %v846
    %1285 = vmatprep.subr.bf16.mxu0 %v835
    %1286 = vmatpush1.bf16.msra.mxu0 %v834
    %1287 = vmatprep.subr.bf16.mxu0 %v1015
    %1288 = vmatpush2.bf16.msra.mxu0 %v1014
    %1289 = vmatprep.subr.bf16.mxu0 %v1003
    %1290 = vmatpush2.bf16.msra.mxu0 %v1002
    %1291 = vmatprep.subr.bf16.mxu0 %v991
    %1292 = vmatpush2.bf16.msra.mxu0 %v990
    %1293 = vmatprep.subr.bf16.mxu0 %v979
    %1294 = vmatpush2.bf16.msra.mxu0 %v978
    %1295 = vmatprep.subr.bf16.mxu0 %v967
    %1296 = vmatpush2.bf16.msra.mxu0 %v966
    %1297 = vmatprep.subr.bf16.mxu0 %v955
    %1298 = vmatpush2.bf16.msra.mxu0 %v954
    %1299 = vmatprep.subr.bf16.mxu0 %v943
    %1300 = vmatpush2.bf16.msra.mxu0 %v942
    %1301 = vmatprep.subr.bf16.mxu0 %v931
    %1302 = vmatpush2.bf16.msra.mxu0 %v930
    %1303 = vmatprep.mubr.bf16.mxu0 %v40
    %1304 = vmatmul.mubr.bf16.gmra.mxu0 %v39
    %v1305 = vpop.f32.mrf.mxu0
    %v1306 = vadd.f32 0.0, %v1305
    %v1307 = vpop.f32.mrf.mxu0
    %v1308 = vadd.f32 0.0, %v1307
    %v1309 = vpop.f32.mrf.mxu0
    %v1310 = vadd.f32 0.0, %v1309
    %v1311 = vpop.f32.mrf.mxu0
    %v1312 = vadd.f32 0.0, %v1311
    %1313 = vdwg.mxu0
    %1314 = vmatprep.subr.bf16.mxu0 0
    %1315 = vmatpush1.bf16.msra.mxu0 0
    %1316 = vmatprep.subr.bf16.mxu0 0
    %1317 = vmatpush1.bf16.msra.mxu0 0
    %1318 = vmatprep.subr.bf16.mxu0 0
    %1319 = vmatpush1.bf16.msra.mxu0 0
    %1320 = vmatprep.subr.bf16.mxu0 0
    %1321 = vmatpush1.bf16.msra.mxu0 0
    %1322 = vmatprep.subr.bf16.mxu0 0
    %1323 = vmatpush1.bf16.msra.mxu0 0
    %1324 = vmatprep.subr.bf16.mxu0 0
    %1325 = vmatpush1.bf16.msra.mxu0 0
    %1326 = vmatprep.subr.bf16.mxu0 0
    %1327 = vmatpush1.bf16.msra.mxu0 0
    %1328 = vmatprep.subr.bf16.mxu0 %v1239
    %1329 = vmatpush1.bf16.msra.mxu0 %v1236
    %1330 = vmatprep.subr.bf16.mxu0 0
    %1331 = vmatpush2.bf16.msra.mxu0 0
    %1332 = vmatprep.subr.bf16.mxu0 0
    %1333 = vmatpush2.bf16.msra.mxu0 0
    %1334 = vmatprep.subr.bf16.mxu0 0
    %1335 = vmatpush2.bf16.msra.mxu0 0
    %1336 = vmatprep.subr.bf16.mxu0 0
    %1337 = vmatpush2.bf16.msra.mxu0 0
    %1338 = vmatprep.subr.bf16.mxu0 0
    %1339 = vmatpush2.bf16.msra.mxu0 0
    %1340 = vmatprep.subr.bf16.mxu0 0
    %1341 = vmatpush2.bf16.msra.mxu0 0
    %1342 = vmatprep.subr.bf16.mxu0 0
    %1343 = vmatpush2.bf16.msra.mxu0 0
    %1344 = vmatprep.subr.bf16.mxu0 0
    %1345 = vmatpush2.bf16.msra.mxu0 0
    %1346 = vmatprep.mubr.bf16.mxu0 0
    %1347 = vmatmul.mubr.bf16.gmra.mxu0 %v1232
    %v1348 = vpop.f32.mrf.mxu0
    %v1349 = vadd.f32 %v1306, %v1348
    %v1350 = vpop.f32.mrf.mxu0
    %v1351 = vadd.f32 %v1308, %v1350
    %v1352 = vpop.f32.mrf.mxu0
    %v1353 = vadd.f32 %v1310, %v1352
    %v1354 = vpop.f32.mrf.mxu0
    %v1355 = vadd.f32 %v1312, %v1354
    %1356 = vdwg.mxu0
    %1357 = vmatprep.subr.bf16.mxu0 %v921
    %1358 = vmatpush1.bf16.msra.mxu0 %v920
    %1359 = vmatprep.subr.bf16.mxu0 %v909
    %1360 = vmatpush1.bf16.msra.mxu0 %v908
    %1361 = vmatprep.subr.bf16.mxu0 %v897
    %1362 = vmatpush1.bf16.msra.mxu0 %v896
    %1363 = vmatprep.subr.bf16.mxu0 %v885
    %1364 = vmatpush1.bf16.msra.mxu0 %v884
    %1365 = vmatprep.subr.bf16.mxu0 %v873
    %1366 = vmatpush1.bf16.msra.mxu0 %v872
    %1367 = vmatprep.subr.bf16.mxu0 %v861
    %1368 = vmatpush1.bf16.msra.mxu0 %v860
    %1369 = vmatprep.subr.bf16.mxu0 %v849
    %1370 = vmatpush1.bf16.msra.mxu0 %v848
    %1371 = vmatprep.subr.bf16.mxu0 %v837
    %1372 = vmatpush1.bf16.msra.mxu0 %v836
    %1373 = vmatprep.subr.bf16.mxu0 %v1017
    %1374 = vmatpush2.bf16.msra.mxu0 %v1016
    %1375 = vmatprep.subr.bf16.mxu0 %v1005
    %1376 = vmatpush2.bf16.msra.mxu0 %v1004
    %1377 = vmatprep.subr.bf16.mxu0 %v993
    %1378 = vmatpush2.bf16.msra.mxu0 %v992
    %1379 = vmatprep.subr.bf16.mxu0 %v981
    %1380 = vmatpush2.bf16.msra.mxu0 %v980
    %1381 = vmatprep.subr.bf16.mxu0 %v969
    %1382 = vmatpush2.bf16.msra.mxu0 %v968
    %1383 = vmatprep.subr.bf16.mxu0 %v957
    %1384 = vmatpush2.bf16.msra.mxu0 %v956
    %1385 = vmatprep.subr.bf16.mxu0 %v945
    %1386 = vmatpush2.bf16.msra.mxu0 %v944
    %1387 = vmatprep.subr.bf16.mxu0 %v933
    %1388 = vmatpush2.bf16.msra.mxu0 %v932
    %1389 = vmatprep.mubr.bf16.mxu0 %v40
    %1390 = vmatmul.mubr.bf16.gmra.mxu0 %v39
    %v1391 = vpop.f32.mrf.mxu0
    %v1392 = vadd.f32 0.0, %v1391
    %v1393 = vpop.f32.mrf.mxu0
    %v1394 = vadd.f32 0.0, %v1393
    %v1395 = vpop.f32.mrf.mxu0
    %v1396 = vadd.f32 0.0, %v1395
    %v1397 = vpop.f32.mrf.mxu0
    %v1398 = vadd.f32 0.0, %v1397
    %1399 = vdwg.mxu0
    %1400 = vmatprep.subr.bf16.mxu0 0
    %1401 = vmatpush1.bf16.msra.mxu0 0
    %1402 = vmatprep.subr.bf16.mxu0 0
    %1403 = vmatpush1.bf16.msra.mxu0 0
    %1404 = vmatprep.subr.bf16.mxu0 0
    %1405 = vmatpush1.bf16.msra.mxu0 0
    %1406 = vmatprep.subr.bf16.mxu0 0
    %1407 = vmatpush1.bf16.msra.mxu0 0
    %1408 = vmatprep.subr.bf16.mxu0 0
    %1409 = vmatpush1.bf16.msra.mxu0 0
    %1410 = vmatprep.subr.bf16.mxu0 0
    %1411 = vmatpush1.bf16.msra.mxu0 0
    %1412 = vmatprep.subr.bf16.mxu0 0
    %1413 = vmatpush1.bf16.msra.mxu0 0
    %1414 = vmatprep.subr.bf16.mxu0 %v1245
    %1415 = vmatpush1.bf16.msra.mxu0 %v1242
    %1416 = vmatprep.subr.bf16.mxu0 0
    %1417 = vmatpush2.bf16.msra.mxu0 0
    %1418 = vmatprep.subr.bf16.mxu0 0
    %1419 = vmatpush2.bf16.msra.mxu0 0
    %1420 = vmatprep.subr.bf16.mxu0 0
    %1421 = vmatpush2.bf16.msra.mxu0 0
    %1422 = vmatprep.subr.bf16.mxu0 0
    %1423 = vmatpush2.bf16.msra.mxu0 0
    %1424 = vmatprep.subr.bf16.mxu0 0
    %1425 = vmatpush2.bf16.msra.mxu0 0
    %1426 = vmatprep.subr.bf16.mxu0 0
    %1427 = vmatpush2.bf16.msra.mxu0 0
    %1428 = vmatprep.subr.bf16.mxu0 0
    %1429 = vmatpush2.bf16.msra.mxu0 0
    %1430 = vmatprep.subr.bf16.mxu0 0
    %1431 = vmatpush2.bf16.msra.mxu0 0
    %1432 = vmatprep.mubr.bf16.mxu0 0
    %1433 = vmatmul.mubr.bf16.gmra.mxu0 %v1232
    %v1434 = vpop.f32.mrf.mxu0
    %v1435 = vadd.f32 %v1392, %v1434
    %v1436 = vpop.f32.mrf.mxu0
    %v1437 = vadd.f32 %v1394, %v1436
    %v1438 = vpop.f32.mrf.mxu0
    %v1439 = vadd.f32 %v1396, %v1438
    %v1440 = vpop.f32.mrf.mxu0
    %v1441 = vadd.f32 %v1398, %v1440
    %1442 = vdwg.mxu0
    %1443 = vmatprep.subr.bf16.mxu0 %v923
    %1444 = vmatpush1.bf16.msra.mxu0 %v922
    %1445 = vmatprep.subr.bf16.mxu0 %v911
    %1446 = vmatpush1.bf16.msra.mxu0 %v910
    %1447 = vmatprep.subr.bf16.mxu0 %v899
    %1448 = vmatpush1.bf16.msra.mxu0 %v898
    %1449 = vmatprep.subr.bf16.mxu0 %v887
    %1450 = vmatpush1.bf16.msra.mxu0 %v886
    %1451 = vmatprep.subr.bf16.mxu0 %v875
    %1452 = vmatpush1.bf16.msra.mxu0 %v874
    %1453 = vmatprep.subr.bf16.mxu0 %v863
    %1454 = vmatpush1.bf16.msra.mxu0 %v862
    %1455 = vmatprep.subr.bf16.mxu0 %v851
    %1456 = vmatpush1.bf16.msra.mxu0 %v850
    %1457 = vmatprep.subr.bf16.mxu0 %v839
    %1458 = vmatpush1.bf16.msra.mxu0 %v838
    %1459 = vmatprep.subr.bf16.mxu0 %v1019
    %1460 = vmatpush2.bf16.msra.mxu0 %v1018
    %1461 = vmatprep.subr.bf16.mxu0 %v1007
    %1462 = vmatpush2.bf16.msra.mxu0 %v1006
    %1463 = vmatprep.subr.bf16.mxu0 %v995
    %1464 = vmatpush2.bf16.msra.mxu0 %v994
    %1465 = vmatprep.subr.bf16.mxu0 %v983
    %1466 = vmatpush2.bf16.msra.mxu0 %v982
    %1467 = vmatprep.subr.bf16.mxu0 %v971
    %1468 = vmatpush2.bf16.msra.mxu0 %v970
    %1469 = vmatprep.subr.bf16.mxu0 %v959
    %1470 = vmatpush2.bf16.msra.mxu0 %v958
    %1471 = vmatprep.subr.bf16.mxu0 %v947
    %1472 = vmatpush2.bf16.msra.mxu0 %v946
    %1473 = vmatprep.subr.bf16.mxu0 %v935
    %1474 = vmatpush2.bf16.msra.mxu0 %v934
    %1475 = vmatprep.mubr.bf16.mxu0 %v40
    %1476 = vmatmul.mubr.bf16.gmra.mxu0 %v39
    %v1477 = vpop.f32.mrf.mxu0
    %v1478 = vadd.f32 0.0, %v1477
    %v1479 = vpop.f32.mrf.mxu0
    %v1480 = vadd.f32 0.0, %v1479
    %v1481 = vpop.f32.mrf.mxu0
    %v1482 = vadd.f32 0.0, %v1481
    %v1483 = vpop.f32.mrf.mxu0
    %v1484 = vadd.f32 0.0, %v1483
    %1485 = vdwg.mxu0
    %1486 = vmatprep.subr.bf16.mxu0 0
    %1487 = vmatpush1.bf16.msra.mxu0 0
    %1488 = vmatprep.subr.bf16.mxu0 0
    %1489 = vmatpush1.bf16.msra.mxu0 0
    %1490 = vmatprep.subr.bf16.mxu0 0
    %1491 = vmatpush1.bf16.msra.mxu0 0
    %1492 = vmatprep.subr.bf16.mxu0 0
    %1493 = vmatpush1.bf16.msra.mxu0 0
    %1494 = vmatprep.subr.bf16.mxu0 0
    %1495 = vmatpush1.bf16.msra.mxu0 0
    %1496 = vmatprep.subr.bf16.mxu0 0
    %1497 = vmatpush1.bf16.msra.mxu0 0
    %1498 = vmatprep.subr.bf16.mxu0 0
    %1499 = vmatpush1.bf16.msra.mxu0 0
    %1500 = vmatprep.subr.bf16.mxu0 %v1251
    %1501 = vmatpush1.bf16.msra.mxu0 %v1248
    %1502 = vmatprep.subr.bf16.mxu0 0
    %1503 = vmatpush2.bf16.msra.mxu0 0
    %1504 = vmatprep.subr.bf16.mxu0 0
    %1505 = vmatpush2.bf16.msra.mxu0 0
    %1506 = vmatprep.subr.bf16.mxu0 0
    %1507 = vmatpush2.bf16.msra.mxu0 0
    %1508 = vmatprep.subr.bf16.mxu0 0
    %1509 = vmatpush2.bf16.msra.mxu0 0
    %1510 = vmatprep.subr.bf16.mxu0 0
    %1511 = vmatpush2.bf16.msra.mxu0 0
    %1512 = vmatprep.subr.bf16.mxu0 0
    %1513 = vmatpush2.bf16.msra.mxu0 0
    %1514 = vmatprep.subr.bf16.mxu0 0
    %1515 = vmatpush2.bf16.msra.mxu0 0
    %1516 = vmatprep.subr.bf16.mxu0 0
    %1517 = vmatpush2.bf16.msra.mxu0 0
    %1518 = vmatprep.mubr.bf16.mxu0 0
    %1519 = vmatmul.mubr.bf16.gmra.mxu0 %v1232
    %v1520 = vpop.f32.mrf.mxu0
    %v1521 = vadd.f32 %v1478, %v1520
    %v1522 = vpop.f32.mrf.mxu0
    %v1523 = vadd.f32 %v1480, %v1522
    %v1524 = vpop.f32.mrf.mxu0
    %v1525 = vadd.f32 %v1482, %v1524
    %v1526 = vpop.f32.mrf.mxu0
    %v1527 = vadd.f32 %v1484, %v1526
    %1528 = vdwg.mxu0
    %1529 = vmatprep.subr.bf16.mxu0 %v925
    %1530 = vmatpush1.bf16.msra.mxu0 %v924
    %1531 = vmatprep.subr.bf16.mxu0 %v913
    %1532 = vmatpush1.bf16.msra.mxu0 %v912
    %1533 = vmatprep.subr.bf16.mxu0 %v901
    %1534 = vmatpush1.bf16.msra.mxu0 %v900
    %1535 = vmatprep.subr.bf16.mxu0 %v889
    %1536 = vmatpush1.bf16.msra.mxu0 %v888
    %1537 = vmatprep.subr.bf16.mxu0 %v877
    %1538 = vmatpush1.bf16.msra.mxu0 %v876
    %1539 = vmatprep.subr.bf16.mxu0 %v865
    %1540 = vmatpush1.bf16.msra.mxu0 %v864
    %1541 = vmatprep.subr.bf16.mxu0 %v853
    %1542 = vmatpush1.bf16.msra.mxu0 %v852
    %1543 = vmatprep.subr.bf16.mxu0 %v841
    %1544 = vmatpush1.bf16.msra.mxu0 %v840
    %1545 = vmatprep.subr.bf16.mxu0 %v1021
    %1546 = vmatpush2.bf16.msra.mxu0 %v1020
    %1547 = vmatprep.subr.bf16.mxu0 %v1009
    %1548 = vmatpush2.bf16.msra.mxu0 %v1008
    %1549 = vmatprep.subr.bf16.mxu0 %v997
    %1550 = vmatpush2.bf16.msra.mxu0 %v996
    %1551 = vmatprep.subr.bf16.mxu0 %v985
    %1552 = vmatpush2.bf16.msra.mxu0 %v984
    %1553 = vmatprep.subr.bf16.mxu0 %v973
    %1554 = vmatpush2.bf16.msra.mxu0 %v972
    %1555 = vmatprep.subr.bf16.mxu0 %v961
    %1556 = vmatpush2.bf16.msra.mxu0 %v960
    %1557 = vmatprep.subr.bf16.mxu0 %v949
    %1558 = vmatpush2.bf16.msra.mxu0 %v948
    %1559 = vmatprep.subr.bf16.mxu0 %v937
    %1560 = vmatpush2.bf16.msra.mxu0 %v936
    %1561 = vmatprep.mubr.bf16.mxu0 %v40
    %1562 = vmatmul.mubr.bf16.gmra.mxu0 %v39
    %v1563 = vpop.f32.mrf.mxu0
    %v1564 = vadd.f32 0.0, %v1563
    %v1565 = vpop.f32.mrf.mxu0
    %v1566 = vadd.f32 0.0, %v1565
    %v1567 = vpop.f32.mrf.mxu0
    %v1568 = vadd.f32 0.0, %v1567
    %v1569 = vpop.f32.mrf.mxu0
    %v1570 = vadd.f32 0.0, %v1569
    %1571 = vdwg.mxu0
    %1572 = vmatprep.subr.bf16.mxu0 0
    %1573 = vmatpush1.bf16.msra.mxu0 0
    %1574 = vmatprep.subr.bf16.mxu0 0
    %1575 = vmatpush1.bf16.msra.mxu0 0
    %1576 = vmatprep.subr.bf16.mxu0 0
    %1577 = vmatpush1.bf16.msra.mxu0 0
    %1578 = vmatprep.subr.bf16.mxu0 0
    %1579 = vmatpush1.bf16.msra.mxu0 0
    %1580 = vmatprep.subr.bf16.mxu0 0
    %1581 = vmatpush1.bf16.msra.mxu0 0
    %1582 = vmatprep.subr.bf16.mxu0 0
    %1583 = vmatpush1.bf16.msra.mxu0 0
    %1584 = vmatprep.subr.bf16.mxu0 0
    %1585 = vmatpush1.bf16.msra.mxu0 0
    %1586 = vmatprep.subr.bf16.mxu0 %v1257
    %1587 = vmatpush1.bf16.msra.mxu0 %v1254
    %1588 = vmatprep.subr.bf16.mxu0 0
    %1589 = vmatpush2.bf16.msra.mxu0 0
    %1590 = vmatprep.subr.bf16.mxu0 0
    %1591 = vmatpush2.bf16.msra.mxu0 0
    %1592 = vmatprep.subr.bf16.mxu0 0
    %1593 = vmatpush2.bf16.msra.mxu0 0
    %1594 = vmatprep.subr.bf16.mxu0 0
    %1595 = vmatpush2.bf16.msra.mxu0 0
    %1596 = vmatprep.subr.bf16.mxu0 0
    %1597 = vmatpush2.bf16.msra.mxu0 0
    %1598 = vmatprep.subr.bf16.mxu0 0
    %1599 = vmatpush2.bf16.msra.mxu0 0
    %1600 = vmatprep.subr.bf16.mxu0 0
    %1601 = vmatpush2.bf16.msra.mxu0 0
    %1602 = vmatprep.subr.bf16.mxu0 0
    %1603 = vmatpush2.bf16.msra.mxu0 0
    %1604 = vmatprep.mubr.bf16.mxu0 0
    %1605 = vmatmul.mubr.bf16.gmra.mxu0 %v1232
    %v1606 = vpop.f32.mrf.mxu0
    %v1607 = vadd.f32 %v1564, %v1606
    %v1608 = vpop.f32.mrf.mxu0
    %v1609 = vadd.f32 %v1566, %v1608
    %v1610 = vpop.f32.mrf.mxu0
    %v1611 = vadd.f32 %v1568, %v1610
    %v1612 = vpop.f32.mrf.mxu0
    %v1613 = vadd.f32 %v1570, %v1612
    %1614 = vdwg.mxu0
    %1615 = vmatprep.subr.bf16.mxu0 %v927
    %1616 = vmatpush1.bf16.msra.mxu0 %v926
    %1617 = vmatprep.subr.bf16.mxu0 %v915
    %1618 = vmatpush1.bf16.msra.mxu0 %v914
    %1619 = vmatprep.subr.bf16.mxu0 %v903
    %1620 = vmatpush1.bf16.msra.mxu0 %v902
    %1621 = vmatprep.subr.bf16.mxu0 %v891
    %1622 = vmatpush1.bf16.msra.mxu0 %v890
    %1623 = vmatprep.subr.bf16.mxu0 %v879
    %1624 = vmatpush1.bf16.msra.mxu0 %v878
    %1625 = vmatprep.subr.bf16.mxu0 %v867
    %1626 = vmatpush1.bf16.msra.mxu0 %v866
    %1627 = vmatprep.subr.bf16.mxu0 %v855
    %1628 = vmatpush1.bf16.msra.mxu0 %v854
    %1629 = vmatprep.subr.bf16.mxu0 %v843
    %1630 = vmatpush1.bf16.msra.mxu0 %v842
    %1631 = vmatprep.subr.bf16.mxu0 %v1023
    %1632 = vmatpush2.bf16.msra.mxu0 %v1022
    %1633 = vmatprep.subr.bf16.mxu0 %v1011
    %1634 = vmatpush2.bf16.msra.mxu0 %v1010
    %1635 = vmatprep.subr.bf16.mxu0 %v999
    %1636 = vmatpush2.bf16.msra.mxu0 %v998
    %1637 = vmatprep.subr.bf16.mxu0 %v987
    %1638 = vmatpush2.bf16.msra.mxu0 %v986
    %1639 = vmatprep.subr.bf16.mxu0 %v975
    %1640 = vmatpush2.bf16.msra.mxu0 %v974
    %1641 = vmatprep.subr.bf16.mxu0 %v963
    %1642 = vmatpush2.bf16.msra.mxu0 %v962
    %1643 = vmatprep.subr.bf16.mxu0 %v951
    %1644 = vmatpush2.bf16.msra.mxu0 %v950
    %1645 = vmatprep.subr.bf16.mxu0 %v939
    %1646 = vmatpush2.bf16.msra.mxu0 %v938
    %1647 = vmatprep.mubr.bf16.mxu0 %v40
    %1648 = vmatmul.mubr.bf16.gmra.mxu0 %v39
    %v1649 = vpop.f32.mrf.mxu0
    %v1650 = vadd.f32 0.0, %v1649
    %v1651 = vpop.f32.mrf.mxu0
    %v1652 = vadd.f32 0.0, %v1651
    %v1653 = vpop.f32.mrf.mxu0
    %v1654 = vadd.f32 0.0, %v1653
    %v1655 = vpop.f32.mrf.mxu0
    %v1656 = vadd.f32 0.0, %v1655
    %1657 = vdwg.mxu0
    %1658 = vmatprep.subr.bf16.mxu0 0
    %1659 = vmatpush1.bf16.msra.mxu0 0
    %1660 = vmatprep.subr.bf16.mxu0 0
    %1661 = vmatpush1.bf16.msra.mxu0 0
    %1662 = vmatprep.subr.bf16.mxu0 0
    %1663 = vmatpush1.bf16.msra.mxu0 0
    %1664 = vmatprep.subr.bf16.mxu0 0
    %1665 = vmatpush1.bf16.msra.mxu0 0
    %1666 = vmatprep.subr.bf16.mxu0 0
    %1667 = vmatpush1.bf16.msra.mxu0 0
    %1668 = vmatprep.subr.bf16.mxu0 0
    %1669 = vmatpush1.bf16.msra.mxu0 0
    %1670 = vmatprep.subr.bf16.mxu0 0
    %1671 = vmatpush1.bf16.msra.mxu0 0
    %1672 = vmatprep.subr.bf16.mxu0 %v1263
    %1673 = vmatpush1.bf16.msra.mxu0 %v1260
    %1674 = vmatprep.subr.bf16.mxu0 0
    %1675 = vmatpush2.bf16.msra.mxu0 0
    %1676 = vmatprep.subr.bf16.mxu0 0
    %1677 = vmatpush2.bf16.msra.mxu0 0
    %1678 = vmatprep.subr.bf16.mxu0 0
    %1679 = vmatpush2.bf16.msra.mxu0 0
    %1680 = vmatprep.subr.bf16.mxu0 0
    %1681 = vmatpush2.bf16.msra.mxu0 0
    %1682 = vmatprep.subr.bf16.mxu0 0
    %1683 = vmatpush2.bf16.msra.mxu0 0
    %1684 = vmatprep.subr.bf16.mxu0 0
    %1685 = vmatpush2.bf16.msra.mxu0 0
    %1686 = vmatprep.subr.bf16.mxu0 0
    %1687 = vmatpush2.bf16.msra.mxu0 0
    %1688 = vmatprep.subr.bf16.mxu0 0
    %1689 = vmatpush2.bf16.msra.mxu0 0
    %1690 = vmatprep.mubr.bf16.mxu0 0
    %1691 = vmatmul.mubr.bf16.gmra.mxu0 %v1232
    %v1692 = vpop.f32.mrf.mxu0
    %v1693 = vadd.f32 %v1650, %v1692
    %v1694 = vpop.f32.mrf.mxu0
    %v1695 = vadd.f32 %v1652, %v1694
    %v1696 = vpop.f32.mrf.mxu0
    %v1697 = vadd.f32 %v1654, %v1696
    %v1698 = vpop.f32.mrf.mxu0
    %v1699 = vadd.f32 %v1656, %v1698
    %1700 = vdwg.mxu0
    %1701 = vmatprep.subr.bf16.mxu0 %v929
    %1702 = vmatpush1.bf16.msra.mxu0 %v928
    %1703 = vmatprep.subr.bf16.mxu0 %v917
    %1704 = vmatpush1.bf16.msra.mxu0 %v916
    %1705 = vmatprep.subr.bf16.mxu0 %v905
    %1706 = vmatpush1.bf16.msra.mxu0 %v904
    %1707 = vmatprep.subr.bf16.mxu0 %v893
    %1708 = vmatpush1.bf16.msra.mxu0 %v892
    %1709 = vmatprep.subr.bf16.mxu0 %v881
    %1710 = vmatpush1.bf16.msra.mxu0 %v880
    %1711 = vmatprep.subr.bf16.mxu0 %v869
    %1712 = vmatpush1.bf16.msra.mxu0 %v868
    %1713 = vmatprep.subr.bf16.mxu0 %v857
    %1714 = vmatpush1.bf16.msra.mxu0 %v856
    %1715 = vmatprep.subr.bf16.mxu0 %v845
    %1716 = vmatpush1.bf16.msra.mxu0 %v844
    %1717 = vmatprep.subr.bf16.mxu0 %v1025
    %1718 = vmatpush2.bf16.msra.mxu0 %v1024
    %1719 = vmatprep.subr.bf16.mxu0 %v1013
    %1720 = vmatpush2.bf16.msra.mxu0 %v1012
    %1721 = vmatprep.subr.bf16.mxu0 %v1001
    %1722 = vmatpush2.bf16.msra.mxu0 %v1000
    %1723 = vmatprep.subr.bf16.mxu0 %v989
    %1724 = vmatpush2.bf16.msra.mxu0 %v988
    %1725 = vmatprep.subr.bf16.mxu0 %v977
    %1726 = vmatpush2.bf16.msra.mxu0 %v976
    %1727 = vmatprep.subr.bf16.mxu0 %v965
    %1728 = vmatpush2.bf16.msra.mxu0 %v964
    %1729 = vmatprep.subr.bf16.mxu0 %v953
    %1730 = vmatpush2.bf16.msra.mxu0 %v952
    %1731 = vmatprep.subr.bf16.mxu0 %v941
    %1732 = vmatpush2.bf16.msra.mxu0 %v940
    %1733 = vmatprep.mubr.bf16.mxu0 %v40
    %1734 = vmatmul.mubr.bf16.gmra.mxu0 %v39
    %v1735 = vpop.f32.mrf.mxu0
    %v1736 = vadd.f32 0.0, %v1735
    %v1737 = vpop.f32.mrf.mxu0
    %v1738 = vadd.f32 0.0, %v1737
    %v1739 = vpop.f32.mrf.mxu0
    %v1740 = vadd.f32 0.0, %v1739
    %v1741 = vpop.f32.mrf.mxu0
    %v1742 = vadd.f32 0.0, %v1741
    %1743 = vdwg.mxu0
    %1744 = vmatprep.subr.bf16.mxu0 0
    %1745 = vmatpush1.bf16.msra.mxu0 0
    %1746 = vmatprep.subr.bf16.mxu0 0
    %1747 = vmatpush1.bf16.msra.mxu0 0
    %1748 = vmatprep.subr.bf16.mxu0 0
    %1749 = vmatpush1.bf16.msra.mxu0 0
    %1750 = vmatprep.subr.bf16.mxu0 0
    %1751 = vmatpush1.bf16.msra.mxu0 0
    %1752 = vmatprep.subr.bf16.mxu0 0
    %1753 = vmatpush1.bf16.msra.mxu0 0
    %1754 = vmatprep.subr.bf16.mxu0 0
    %1755 = vmatpush1.bf16.msra.mxu0 0
    %1756 = vmatprep.subr.bf16.mxu0 0
    %1757 = vmatpush1.bf16.msra.mxu0 0
    %1758 = vmatprep.subr.bf16.mxu0 %v1269
    %1759 = vmatpush1.bf16.msra.mxu0 %v1266
    %1760 = vmatprep.subr.bf16.mxu0 0
    %1761 = vmatpush2.bf16.msra.mxu0 0
    %1762 = vmatprep.subr.bf16.mxu0 0
    %1763 = vmatpush2.bf16.msra.mxu0 0
    %1764 = vmatprep.subr.bf16.mxu0 0
    %1765 = vmatpush2.bf16.msra.mxu0 0
    %1766 = vmatprep.subr.bf16.mxu0 0
    %1767 = vmatpush2.bf16.msra.mxu0 0
    %1768 = vmatprep.subr.bf16.mxu0 0
    %1769 = vmatpush2.bf16.msra.mxu0 0
    %1770 = vmatprep.subr.bf16.mxu0 0
    %1771 = vmatpush2.bf16.msra.mxu0 0
    %1772 = vmatprep.subr.bf16.mxu0 0
    %1773 = vmatpush2.bf16.msra.mxu0 0
    %1774 = vmatprep.subr.bf16.mxu0 0
    %1775 = vmatpush2.bf16.msra.mxu0 0
    %1776 = vmatprep.mubr.bf16.mxu0 0
    %1777 = vmatmul.mubr.bf16.gmra.mxu0 %v1232
    %v1778 = vpop.f32.mrf.mxu0
    %v1779 = vadd.f32 %v1736, %v1778
    %v1780 = vpop.f32.mrf.mxu0
    %v1781 = vadd.f32 %v1738, %v1780
    %v1782 = vpop.f32.mrf.mxu0
    %v1783 = vadd.f32 %v1740, %v1782
    %v1784 = vpop.f32.mrf.mxu0
    %v1785 = vadd.f32 %v1742, %v1784
    %1786 = vdwg.mxu0
    %v1787 = vpack.c.bf16 %v1353, %v1349
    %v1788 = vpack.c.bf16 %v1355, %v1351
    %v1789 = vpack.c.bf16 %v1439, %v1435
    %v1790 = vpack.c.bf16 %v1441, %v1437
    %v1791 = vpack.c.bf16 %v1525, %v1521
    %v1792 = vpack.c.bf16 %v1527, %v1523
    %v1793 = vpack.c.bf16 %v1611, %v1607
    %v1794 = vpack.c.bf16 %v1613, %v1609
    %v1795 = vpack.c.bf16 %v1697, %v1693
    %v1796 = vpack.c.bf16 %v1699, %v1695
    %v1797 = vpack.c.bf16 %v1783, %v1779
    %v1798 = vpack.c.bf16 %v1785, %v1781
    %v1811 = vunpack.c.l.b16 %v1787
    %v1812 = vunpack.c.l.b16 %v1788
    %v1813 = vunpack.c.l.b16 %v1789
    %v1814 = vunpack.c.l.b16 %v1790
    %v1815 = vunpack.c.l.b16 %v1791
    %v1816 = vunpack.c.l.b16 %v1792
    %v1817 = vunpack.c.l.b16 %v1793
    %v1818 = vunpack.c.l.b16 %v1794
    %v1819 = vunpack.c.l.b16 %v1795
    %v1820 = vunpack.c.l.b16 %v1796
    %v1821 = vunpack.c.l.b16 %v1797
    %v1822 = vunpack.c.l.b16 %v1798
    %v1823 = vunpack.c.h.b16 %v1787
    %v1824 = vunpack.c.h.b16 %v1788
    %v1825 = vunpack.c.h.b16 %v1789
    %v1826 = vunpack.c.h.b16 %v1790
    %v1827 = vunpack.c.h.b16 %v1791
    %v1828 = vunpack.c.h.b16 %v1792
    %v1829 = vunpack.c.h.b16 %v1793
    %v1830 = vunpack.c.h.b16 %v1794
    %v1831 = vunpack.c.h.b16 %v1795
    %v1832 = vunpack.c.h.b16 %v1796
    %v1833 = vunpack.c.h.b16 %v1797
    %v1834 = vunpack.c.h.b16 %v1798
    %v1835 = vpack.c.b16 %v1812, %v1811
    %v1836 = vpack.c.b16 %v1814, %v1813
    %v1837 = vpack.c.b16 %v1816, %v1815
    %v1838 = vpack.c.b16 %v1818, %v1817
    %v1839 = vpack.c.b16 %v1820, %v1819
    %v1840 = vpack.c.b16 %v1822, %v1821
    %v1841 = vpack.c.b16 %v1824, %v1823
    %v1842 = vpack.c.b16 %v1826, %v1825
    %v1843 = vpack.c.b16 %v1828, %v1827
    %v1844 = vpack.c.b16 %v1830, %v1829
    %v1845 = vpack.c.b16 %v1832, %v1831
    %v1846 = vpack.c.b16 %v1834, %v1833
    %1859 = vst [vmem:[#allocation2] sm:$0xff] %v1835
    %1860 = vst [vmem:[#allocation2 + $0x8] sm:$0xff] %v1836
    %1861 = vst [vmem:[#allocation2 + $0x10] sm:$0xff] %v1837
    %1862 = vst [vmem:[#allocation2 + $0x18] sm:$0xff] %v1838
    %1863 = vst [vmem:[#allocation2 + $0x20] sm:$0xff] %v1839
    %1864 = vst [vmem:[#allocation2 + $0x28] sm:$0xff] %v1840
    %1865 = vst [vmem:[#allocation2 + $0x30] sm:$0xff] %v1841
    %1866 = vst [vmem:[#allocation2 + $0x38] sm:$0xff] %v1842
    %1867 = vst [vmem:[#allocation2 + $0x40] sm:$0xff] %v1843
    %1868 = vst [vmem:[#allocation2 + $0x48] sm:$0xff] %v1844
    %1869 = vst [vmem:[#allocation2 + $0x50] sm:$0xff] %v1845
    %1870 = vst [vmem:[#allocation2 + $0x58] sm:$0xff] %v1846
    %v1871 = vlaneseq
    %v1872 = vshrl.u32 %v1871, 7
    %v1873 = vlaneseq
    %v1874 = vand.u32 %v1873, 127
    %vm1875 = vcmp.le.s32.totalorder %v1874, %v1872
    %v1876 = vsel %vm1875, 0.0, -1e+30
    %v1877 = vld [vmem:[%s2] sm:$0xff]
    %v1878 = vld [vmem:[%s2 + $0x8] sm:$0xf]
    %v1879 = vld [vmem:[%s2 + $0xc] sm:$0xff]
    %v1880 = vld [vmem:[%s2 + $0x14] sm:$0xf]
    %v1881 = vld [vmem:[%s2 + $0x18] sm:$0xff]
    %v1882 = vld [vmem:[%s2 + $0x20] sm:$0xf]
    %v1883 = vld [vmem:[%s2 + $0x24] sm:$0xff]
    %v1884 = vld [vmem:[%s2 + $0x2c] sm:$0xf]
    %v1885 = vld [vmem:[%s2 + $0x30] sm:$0xff]
    %v1886 = vld [vmem:[%s2 + $0x38] sm:$0xf]
    %v1887 = vld [vmem:[%s2 + $0x3c] sm:$0xff]
    %v1888 = vld [vmem:[%s2 + $0x44] sm:$0xf]
    %v1889 = vld [vmem:[%s2 + $0x48] sm:$0xff]
    %v1890 = vld [vmem:[%s2 + $0x50] sm:$0xf]
    %v1891 = vld [vmem:[%s2 + $0x54] sm:$0xff]
    %v1892 = vld [vmem:[%s2 + $0x5c] sm:$0xf]
    %v1893 = vld [vmem:[%s2 + $0x60] sm:$0xff]
    %v1894 = vld [vmem:[%s2 + $0x68] sm:$0xf]
    %v1895 = vld [vmem:[%s2 + $0x6c] sm:$0xff]
    %v1896 = vld [vmem:[%s2 + $0x74] sm:$0xf]
    %v1897 = vld [vmem:[%s2 + $0x78] sm:$0xff]
    %v1898 = vld [vmem:[%s2 + $0x80] sm:$0xf]
    %v1899 = vld [vmem:[%s2 + $0x84] sm:$0xff]
    %v1900 = vld [vmem:[%s2 + $0x8c] sm:$0xf]
    %v1901 = vld [vmem:[%s2 + $0x90] sm:$0xff]
    %v1902 = vld [vmem:[%s2 + $0x98] sm:$0xf]
    %v1903 = vld [vmem:[%s2 + $0x9c] sm:$0xff]
    %v1904 = vld [vmem:[%s2 + $0xa4] sm:$0xf]
    %v1905 = vld [vmem:[%s2 + $0xa8] sm:$0xff]
    %v1906 = vld [vmem:[%s2 + $0xb0] sm:$0xf]
    %v1907 = vld [vmem:[%s2 + $0xb4] sm:$0xff]
    %v1908 = vld [vmem:[%s2 + $0xbc] sm:$0xf]
    %v1909 = vld [vmem:[%s2 + $0xc0] sm:$0xff]
    %v1910 = vld [vmem:[%s2 + $0xc8] sm:$0xf]
    %v1911 = vld [vmem:[%s2 + $0xcc] sm:$0xff]
    %v1912 = vld [vmem:[%s2 + $0xd4] sm:$0xf]
    %v1913 = vld [vmem:[%s2 + $0xd8] sm:$0xff]
    %v1914 = vld [vmem:[%s2 + $0xe0] sm:$0xf]
    %v1915 = vld [vmem:[%s2 + $0xe4] sm:$0xff]
    %v1916 = vld [vmem:[%s2 + $0xec] sm:$0xf]
    %v1917 = vld [vmem:[%s2 + $0xf0] sm:$0xff]
    %v1918 = vld [vmem:[%s2 + $0xf8] sm:$0xf]
    %v1919 = vld [vmem:[%s2 + $0xfc] sm:$0xff]
    %v1920 = vld [vmem:[%s2 + $0x104] sm:$0xf]
    %v1921 = vld [vmem:[%s2 + $0x108] sm:$0xff]
    %v1922 = vld [vmem:[%s2 + $0x110] sm:$0xf]
    %v1923 = vld [vmem:[%s2 + $0x114] sm:$0xff]
    %v1924 = vld [vmem:[%s2 + $0x11c] sm:$0xf]
    %v1925 = vld [vmem:[%s2 + $0x120] sm:$0xff]
    %v1926 = vld [vmem:[%s2 + $0x128] sm:$0xf]
    %v1927 = vld [vmem:[%s2 + $0x12c] sm:$0xff]
    %v1928 = vld [vmem:[%s2 + $0x134] sm:$0xf]
    %v1929 = vld [vmem:[%s2 + $0x138] sm:$0xff]
    %v1930 = vld [vmem:[%s2 + $0x140] sm:$0xf]
    %v1931 = vld [vmem:[%s2 + $0x144] sm:$0xff]
    %v1932 = vld [vmem:[%s2 + $0x14c] sm:$0xf]
    %v1933 = vld [vmem:[%s2 + $0x150] sm:$0xff]
    %v1934 = vld [vmem:[%s2 + $0x158] sm:$0xf]
    %v1935 = vld [vmem:[%s2 + $0x15c] sm:$0xff]
    %v1936 = vld [vmem:[%s2 + $0x164] sm:$0xf]
    %v1937 = vld [vmem:[%s2 + $0x168] sm:$0xff]
    %v1938 = vld [vmem:[%s2 + $0x170] sm:$0xf]
    %v1939 = vld [vmem:[%s2 + $0x174] sm:$0xff]
    %v1940 = vld [vmem:[%s2 + $0x17c] sm:$0xf]
    %v1941 = vld [vmem:[%s2 + $0x180] sm:$0xff]
    %v1942 = vld [vmem:[%s2 + $0x188] sm:$0xf]
    %v1943 = vld [vmem:[%s2 + $0x18c] sm:$0xff]
    %v1944 = vld [vmem:[%s2 + $0x194] sm:$0xf]
    %v1945 = vld [vmem:[%s2 + $0x198] sm:$0xff]
    %v1946 = vld [vmem:[%s2 + $0x1a0] sm:$0xf]
    %v1947 = vld [vmem:[%s2 + $0x1a4] sm:$0xff]
    %v1948 = vld [vmem:[%s2 + $0x1ac] sm:$0xf]
    %v1949 = vld [vmem:[%s2 + $0x1b0] sm:$0xff]
    %v1950 = vld [vmem:[%s2 + $0x1b8] sm:$0xf]
    %v1951 = vld [vmem:[%s2 + $0x1bc] sm:$0xff]
    %v1952 = vld [vmem:[%s2 + $0x1c4] sm:$0xf]
    %v1953 = vld [vmem:[%s2 + $0x1c8] sm:$0xff]
    %v1954 = vld [vmem:[%s2 + $0x1d0] sm:$0xf]
    %v1955 = vld [vmem:[%s2 + $0x1d4] sm:$0xff]
    %v1956 = vld [vmem:[%s2 + $0x1dc] sm:$0xf]
    %v1957 = vld [vmem:[%s2 + $0x1e0] sm:$0xff]
    %v1958 = vld [vmem:[%s2 + $0x1e8] sm:$0xf]
    %v1959 = vld [vmem:[%s2 + $0x1ec] sm:$0xff]
    %v1960 = vld [vmem:[%s2 + $0x1f4] sm:$0xf]
    %v1961 = vld [vmem:[%s2 + $0x1f8] sm:$0xff]
    %v1962 = vld [vmem:[%s2 + $0x200] sm:$0xf]
    %v1963 = vld [vmem:[%s2 + $0x204] sm:$0xff]
    %v1964 = vld [vmem:[%s2 + $0x20c] sm:$0xf]
    %v1965 = vld [vmem:[%s2 + $0x210] sm:$0xff]
    %v1966 = vld [vmem:[%s2 + $0x218] sm:$0xf]
    %v1967 = vld [vmem:[%s2 + $0x21c] sm:$0xff]
    %v1968 = vld [vmem:[%s2 + $0x224] sm:$0xf]
    %v1969 = vld [vmem:[%s2 + $0x228] sm:$0xff]
    %v1970 = vld [vmem:[%s2 + $0x230] sm:$0xf]
    %v1971 = vld [vmem:[%s2 + $0x234] sm:$0xff]
    %v1972 = vld [vmem:[%s2 + $0x23c] sm:$0xf]
    %v1973 = vld [vmem:[%s2 + $0x240] sm:$0xff]
    %v1974 = vld [vmem:[%s2 + $0x248] sm:$0xf]
    %v1975 = vld [vmem:[%s2 + $0x24c] sm:$0xff]
    %v1976 = vld [vmem:[%s2 + $0x254] sm:$0xf]
    %v1977 = vld [vmem:[%s2 + $0x258] sm:$0xff]
    %v1978 = vld [vmem:[%s2 + $0x260] sm:$0xf]
    %v1979 = vld [vmem:[%s2 + $0x264] sm:$0xff]
    %v1980 = vld [vmem:[%s2 + $0x26c] sm:$0xf]
    %v1981 = vld [vmem:[%s2 + $0x270] sm:$0xff]
    %v1982 = vld [vmem:[%s2 + $0x278] sm:$0xf]
    %v1983 = vld [vmem:[%s2 + $0x27c] sm:$0xff]
    %v1984 = vld [vmem:[%s2 + $0x284] sm:$0xf]
    %v1985 = vld [vmem:[%s2 + $0x288] sm:$0xff]
    %v1986 = vld [vmem:[%s2 + $0x290] sm:$0xf]
    %v1987 = vld [vmem:[%s2 + $0x294] sm:$0xff]
    %v1988 = vld [vmem:[%s2 + $0x29c] sm:$0xf]
    %v1989 = vld [vmem:[%s2 + $0x2a0] sm:$0xff]
    %v1990 = vld [vmem:[%s2 + $0x2a8] sm:$0xf]
    %v1991 = vld [vmem:[%s2 + $0x2ac] sm:$0xff]
    %v1992 = vld [vmem:[%s2 + $0x2b4] sm:$0xf]
    %v1993 = vld [vmem:[%s2 + $0x2b8] sm:$0xff]
    %v1994 = vld [vmem:[%s2 + $0x2c0] sm:$0xf]
    %v1995 = vld [vmem:[%s2 + $0x2c4] sm:$0xff]
    %v1996 = vld [vmem:[%s2 + $0x2cc] sm:$0xf]
    %v1997 = vld [vmem:[%s2 + $0x2d0] sm:$0xff]
    %v1998 = vld [vmem:[%s2 + $0x2d8] sm:$0xf]
    %v1999 = vld [vmem:[%s2 + $0x2dc] sm:$0xff]
    %v2000 = vld [vmem:[%s2 + $0x2e4] sm:$0xf]
    %v2001 = vld [vmem:[%s2 + $0x2e8] sm:$0xff]
    %v2002 = vld [vmem:[%s2 + $0x2f0] sm:$0xf]
    %v2003 = vld [vmem:[%s2 + $0x2f4] sm:$0xff]
    %v2004 = vld [vmem:[%s2 + $0x2fc] sm:$0xf]
    %v2005 = vld [vmem:[%s3] sm:$0x7]
    %v2006 = vld [vmem:[#allocation2] sm:$0xff]
    %v2007 = vld [vmem:[#allocation2 + $0x8] sm:$0xff]
    %v2008 = vld [vmem:[#allocation2 + $0x10] sm:$0xff]
    %v2009 = vld [vmem:[#allocation2 + $0x18] sm:$0xff]
    %v2010 = vld [vmem:[#allocation2 + $0x20] sm:$0xff]
    %v2011 = vld [vmem:[#allocation2 + $0x28] sm:$0xff]
    %2012 = vmatprep.subr.bf16.mxu0 0
    %2013 = vmatpush1.bf16.xpose.msra.mxu0 0
    %2014 = vmatprep.subr.bf16.mxu0 0
    %2015 = vmatpush1.bf16.xpose.msra.mxu0 0
    %2016 = vmatprep.subr.bf16.mxu0 0
    %2017 = vmatpush1.bf16.xpose.msra.mxu0 0
    %2018 = vmatprep.subr.bf16.mxu0 0
    %2019 = vmatpush1.bf16.xpose.msra.mxu0 0
    %2020 = vmatprep.subr.bf16.mxu0 0
    %2021 = vmatpush1.bf16.xpose.msra.mxu0 0
    %2022 = vmatprep.subr.bf16.mxu0 0
    %2023 = vmatpush1.bf16.xpose.msra.mxu0 0
    %2024 = vmatprep.subr.bf16.mxu0 0
    %2025 = vmatpush1.bf16.xpose.msra.mxu0 0
    %2026 = vmatprep.subr.bf16.mxu0 0
    %2027 = vmatpush1.bf16.xpose.msra.mxu0 %v2008
    %2028 = vmatprep.subr.bf16.mxu0 0
    %2029 = vmatpush2.bf16.xpose.msra.mxu0 0
    %2030 = vmatprep.subr.bf16.mxu0 0
    %2031 = vmatpush2.bf16.xpose.msra.mxu0 0
    %2032 = vmatprep.subr.bf16.mxu0 0
    %2033 = vmatpush2.bf16.xpose.msra.mxu0 0
    %2034 = vmatprep.subr.bf16.mxu0 0
    %2035 = vmatpush2.bf16.xpose.msra.mxu0 0
    %2036 = vmatprep.subr.bf16.mxu0 0
    %2037 = vmatpush2.bf16.xpose.msra.mxu0 0
    %2038 = vmatprep.subr.bf16.mxu0 0
    %2039 = vmatpush2.bf16.xpose.msra.mxu0 0
    %2040 = vmatprep.subr.bf16.mxu0 0
    %2041 = vmatpush2.bf16.xpose.msra.mxu0 0
    %2042 = vmatprep.subr.bf16.mxu0 0
    %2043 = vmatpush2.bf16.xpose.msra.mxu0 0
    %2044 = vmatprep.mubr.bf16.mxu0 0
    %2045 = vmatmul.mubr.bf16.gmra.mxu0 %v2006
    %v2046 = vpop.f32.mrf.mxu0
    %v2047 = vadd.f32 %v1876, %v2046
    %v2048 = vpop.f32.mrf.mxu0
    %v2049 = vpop.f32.mrf.mxu0
    %v2050 = vpop.f32.mrf.mxu0
    %2051 = vdwg.mxu0
    %v2052 = vsel %vm1230, %v2047, -inf
    %2053 = vmax.xlane.f32.xlu0 %v2052
    %v2054 = vpop.xlane.xlu0 %2053
    %v2055 = vsub.f32 %v2047, %v2054
    %v2056 = vmul.f32 %v2055, 1.442695
    %v2057 = vpow.pop %v2056
    %v2058 = vsel %vm1230, %v2057, 0.0
    %2059 = vadd.xlane.f32.xlu0 %v2058
    %v2060 = vpop.xlane.xlu0 %2059
    %v2061 = vrcp.pop %v2060
    %v2062 = vmul.f32 %v2057, %v2061
    %v2063 = vpack.c.bf16 %v2062, %v2062
    %v2065 = vsel %vm1230, %v2063, 0
    %v2068 = vsel %vm1234, %v2010, 0
    %2070 = vmatprep.subr.bf16.mxu0 0
    %2071 = vmatpush1.bf16.msra.mxu0 0
    %2072 = vmatprep.subr.bf16.mxu0 0
    %2073 = vmatpush1.bf16.msra.mxu0 0
    %2074 = vmatprep.subr.bf16.mxu0 0
    %2075 = vmatpush1.bf16.msra.mxu0 0
    %2076 = vmatprep.subr.bf16.mxu0 0
    %2077 = vmatpush1.bf16.msra.mxu0 0
    %2078 = vmatprep.subr.bf16.mxu0 0
    %2079 = vmatpush1.bf16.msra.mxu0 0
    %2080 = vmatprep.subr.bf16.mxu0 0
    %2081 = vmatpush1.bf16.msra.mxu0 0
    %2082 = vmatprep.subr.bf16.mxu0 0
    %2083 = vmatpush1.bf16.msra.mxu0 0
    %2084 = vmatprep.subr.bf16.mxu0 0
    %2085 = vmatpush1.bf16.msra.mxu0 %v2068
    %2086 = vmatprep.subr.bf16.mxu0 0
    %2087 = vmatpush2.bf16.msra.mxu0 0
    %2088 = vmatprep.subr.bf16.mxu0 0
    %2089 = vmatpush2.bf16.msra.mxu0 0
    %2090 = vmatprep.subr.bf16.mxu0 0
    %2091 = vmatpush2.bf16.msra.mxu0 0
    %2092 = vmatprep.subr.bf16.mxu0 0
    %2093 = vmatpush2.bf16.msra.mxu0 0
    %2094 = vmatprep.subr.bf16.mxu0 0
    %2095 = vmatpush2.bf16.msra.mxu0 0
    %2096 = vmatprep.subr.bf16.mxu0 0
    %2097 = vmatpush2.bf16.msra.mxu0 0
    %2098 = vmatprep.subr.bf16.mxu0 0
    %2099 = vmatpush2.bf16.msra.mxu0 0
    %2100 = vmatprep.subr.bf16.mxu0 0
    %2101 = vmatpush2.bf16.msra.mxu0 0
    %2102 = vmatprep.mubr.bf16.mxu0 0
    %2103 = vmatmul.mubr.bf16.gmra.mxu0 %v2065
    %v2104 = vpop.f32.mrf.mxu0
    %v2105 = vadd.f32 0.0, %v2104
    %v2106 = vpop.f32.mrf.mxu0
    %v2107 = vpop.f32.mrf.mxu0
    %v2108 = vpop.f32.mrf.mxu0
    %2109 = vdwg.mxu0
    %v2111 = vunpack.c.h.b16 %v2006
    %v2112 = vpack.c.b16 %v2111, %v2111
    %v2115 = vunpack.c.h.b16 %v2008
    %v2116 = vpack.c.b16 %v2115, %v2115
    %2118 = vmatprep.subr.bf16.mxu0 0
    %2119 = vmatpush1.bf16.xpose.msra.mxu0 0
    %2120 = vmatprep.subr.bf16.mxu0 0
    %2121 = vmatpush1.bf16.xpose.msra.mxu0 0
    %2122 = vmatprep.subr.bf16.mxu0 0
    %2123 = vmatpush1.bf16.xpose.msra.mxu0 0
    %2124 = vmatprep.subr.bf16.mxu0 0
    %2125 = vmatpush1.bf16.xpose.msra.mxu0 0
    %2126 = vmatprep.subr.bf16.mxu0 0
    %2127 = vmatpush1.bf16.xpose.msra.mxu0 0
    %2128 = vmatprep.subr.bf16.mxu0 0
    %2129 = vmatpush1.bf16.xpose.msra.mxu0 0
    %2130 = vmatprep.subr.bf16.mxu0 0
    %2131 = vmatpush1.bf16.xpose.msra.mxu0 0
    %2132 = vmatprep.subr.bf16.mxu0 0
    %2133 = vmatpush1.bf16.xpose.msra.mxu0 %v2116
    %2134 = vmatprep.subr.bf16.mxu0 0
    %2135 = vmatpush2.bf16.xpose.msra.mxu0 0
    %2136 = vmatprep.subr.bf16.mxu0 0
    %2137 = vmatpush2.bf16.xpose.msra.mxu0 0
    %2138 = vmatprep.subr.bf16.mxu0 0
    %2139 = vmatpush2.bf16.xpose.msra.mxu0 0
    %2140 = vmatprep.subr.bf16.mxu0 0
    %2141 = vmatpush2.bf16.xpose.msra.mxu0 0
    %2142 = vmatprep.subr.bf16.mxu0 0
    %2143 = vmatpush2.bf16.xpose.msra.mxu0 0
    %2144 = vmatprep.subr.bf16.mxu0 0
    %2145 = vmatpush2.bf16.xpose.msra.mxu0 0
    %2146 = vmatprep.subr.bf16.mxu0 0
    %2147 = vmatpush2.bf16.xpose.msra.mxu0 0
    %2148 = vmatprep.subr.bf16.mxu0 0
    %2149 = vmatpush2.bf16.xpose.msra.mxu0 0
    %2150 = vmatprep.mubr.bf16.mxu0 0
    %2151 = vmatmul.mubr.bf16.gmra.mxu0 %v2112
    %v2152 = vpop.f32.mrf.mxu0
    %v2153 = vadd.f32 %v1876, %v2152
    %v2154 = vpop.f32.mrf.mxu0
    %v2155 = vpop.f32.mrf.mxu0
    %v2156 = vpop.f32.mrf.mxu0
    %2157 = vdwg.mxu0
    %v2158 = vsel %vm1230, %v2153, -inf
    %2159 = vmax.xlane.f32.xlu0 %v2158
    %v2160 = vpop.xlane.xlu0 %2159
    %v2161 = vsub.f32 %v2153, %v2160
    %v2162 = vmul.f32 %v2161, 1.442695
    %v2163 = vpow.pop %v2162
    %v2164 = vsel %vm1230, %v2163, 0.0
    %2165 = vadd.xlane.f32.xlu0 %v2164
    %v2166 = vpop.xlane.xlu0 %2165
    %v2167 = vrcp.pop %v2166
    %v2168 = vmul.f32 %v2163, %v2167
    %v2169 = vpack.c.bf16 %v2168, %v2168
    %v2171 = vunpack.c.h.b16 %v2010
    %v2172 = vpack.c.b16 %v2171, %v2171
    %v2174 = vsel %vm1230, %v2169, 0
    %v2177 = vsel %vm1234, %v2172, 0
    %2179 = vmatprep.subr.bf16.mxu0 0
    %2180 = vmatpush1.bf16.msra.mxu0 0
    %2181 = vmatprep.subr.bf16.mxu0 0
    %2182 = vmatpush1.bf16.msra.mxu0 0
    %2183 = vmatprep.subr.bf16.mxu0 0
    %2184 = vmatpush1.bf16.msra.mxu0 0
    %2185 = vmatprep.subr.bf16.mxu0 0
    %2186 = vmatpush1.bf16.msra.mxu0 0
    %2187 = vmatprep.subr.bf16.mxu0 0
    %2188 = vmatpush1.bf16.msra.mxu0 0
    %2189 = vmatprep.subr.bf16.mxu0 0
    %2190 = vmatpush1.bf16.msra.mxu0 0
    %2191 = vmatprep.subr.bf16.mxu0 0
    %2192 = vmatpush1.bf16.msra.mxu0 0
    %2193 = vmatprep.subr.bf16.mxu0 0
    %2194 = vmatpush1.bf16.msra.mxu0 %v2177
    %2195 = vmatprep.subr.bf16.mxu0 0
    %2196 = vmatpush2.bf16.msra.mxu0 0
    %2197 = vmatprep.subr.bf16.mxu0 0
    %2198 = vmatpush2.bf16.msra.mxu0 0
    %2199 = vmatprep.subr.bf16.mxu0 0
    %2200 = vmatpush2.bf16.msra.mxu0 0
    %2201 = vmatprep.subr.bf16.mxu0 0
    %2202 = vmatpush2.bf16.msra.mxu0 0
    %2203 = vmatprep.subr.bf16.mxu0 0
    %2204 = vmatpush2.bf16.msra.mxu0 0
    %2205 = vmatprep.subr.bf16.mxu0 0
    %2206 = vmatpush2.bf16.msra.mxu0 0
    %2207 = vmatprep.subr.bf16.mxu0 0
    %2208 = vmatpush2.bf16.msra.mxu0 0
    %2209 = vmatprep.subr.bf16.mxu0 0
    %2210 = vmatpush2.bf16.msra.mxu0 0
    %2211 = vmatprep.mubr.bf16.mxu0 0
    %2212 = vmatmul.mubr.bf16.gmra.mxu0 %v2174
    %v2213 = vpop.f32.mrf.mxu0
    %v2214 = vadd.f32 0.0, %v2213
    %v2215 = vpop.f32.mrf.mxu0
    %v2216 = vpop.f32.mrf.mxu0
    %v2217 = vpop.f32.mrf.mxu0
    %2218 = vdwg.mxu0
    %2219 = vmatprep.subr.bf16.mxu0 0
    %2220 = vmatpush1.bf16.xpose.msra.mxu0 0
    %2221 = vmatprep.subr.bf16.mxu0 0
    %2222 = vmatpush1.bf16.xpose.msra.mxu0 0
    %2223 = vmatprep.subr.bf16.mxu0 0
    %2224 = vmatpush1.bf16.xpose.msra.mxu0 0
    %2225 = vmatprep.subr.bf16.mxu0 0
    %2226 = vmatpush1.bf16.xpose.msra.mxu0 0
    %2227 = vmatprep.subr.bf16.mxu0 0
    %2228 = vmatpush1.bf16.xpose.msra.mxu0 0
    %2229 = vmatprep.subr.bf16.mxu0 0
    %2230 = vmatpush1.bf16.xpose.msra.mxu0 0
    %2231 = vmatprep.subr.bf16.mxu0 0
    %2232 = vmatpush1.bf16.xpose.msra.mxu0 0
    %2233 = vmatprep.subr.bf16.mxu0 0
    %2234 = vmatpush1.bf16.xpose.msra.mxu0 %v2009
    %2235 = vmatprep.subr.bf16.mxu0 0
    %2236 = vmatpush2.bf16.xpose.msra.mxu0 0
    %2237 = vmatprep.subr.bf16.mxu0 0
    %2238 = vmatpush2.bf16.xpose.msra.mxu0 0
    %2239 = vmatprep.subr.bf16.mxu0 0
    %2240 = vmatpush2.bf16.xpose.msra.mxu0 0
    %2241 = vmatprep.subr.bf16.mxu0 0
    %2242 = vmatpush2.bf16.xpose.msra.mxu0 0
    %2243 = vmatprep.subr.bf16.mxu0 0
    %2244 = vmatpush2.bf16.xpose.msra.mxu0 0
    %2245 = vmatprep.subr.bf16.mxu0 0
    %2246 = vmatpush2.bf16.xpose.msra.mxu0 0
    %2247 = vmatprep.subr.bf16.mxu0 0
    %2248 = vmatpush2.bf16.xpose.msra.mxu0 0
    %2249 = vmatprep.subr.bf16.mxu0 0
    %2250 = vmatpush2.bf16.xpose.msra.mxu0 0
    %2251 = vmatprep.mubr.bf16.mxu0 0
    %2252 = vmatmul.mubr.bf16.gmra.mxu0 %v2007
    %v2253 = vpop.f32.mrf.mxu0
    %v2254 = vadd.f32 %v1876, %v2253
    %v2255 = vpop.f32.mrf.mxu0
    %v2256 = vpop.f32.mrf.mxu0
    %v2257 = vpop.f32.mrf.mxu0
    %2258 = vdwg.mxu0
    %v2259 = vsel %vm1230, %v2254, -inf
    %2260 = vmax.xlane.f32.xlu0 %v2259
    %v2261 = vpop.xlane.xlu0 %2260
    %v2262 = vsub.f32 %v2254, %v2261
    %v2263 = vmul.f32 %v2262, 1.442695
    %v2264 = vpow.pop %v2263
    %v2265 = vsel %vm1230, %v2264, 0.0
    %2266 = vadd.xlane.f32.xlu0 %v2265
    %v2267 = vpop.xlane.xlu0 %2266
    %v2268 = vrcp.pop %v2267
    %v2269 = vmul.f32 %v2264, %v2268
    %v2270 = vpack.c.bf16 %v2269, %v2269
    %v2272 = vsel %vm1230, %v2270, 0
    %v2275 = vsel %vm1234, %v2011, 0
    %2277 = vmatprep.subr.bf16.mxu0 0
    %2278 = vmatpush1.bf16.msra.mxu0 0
    %2279 = vmatprep.subr.bf16.mxu0 0
    %2280 = vmatpush1.bf16.msra.mxu0 0
    %2281 = vmatprep.subr.bf16.mxu0 0
    %2282 = vmatpush1.bf16.msra.mxu0 0
    %2283 = vmatprep.subr.bf16.mxu0 0
    %2284 = vmatpush1.bf16.msra.mxu0 0
    %2285 = vmatprep.subr.bf16.mxu0 0
    %2286 = vmatpush1.bf16.msra.mxu0 0
    %2287 = vmatprep.subr.bf16.mxu0 0
    %2288 = vmatpush1.bf16.msra.mxu0 0
    %2289 = vmatprep.subr.bf16.mxu0 0
    %2290 = vmatpush1.bf16.msra.mxu0 0
    %2291 = vmatprep.subr.bf16.mxu0 0
    %2292 = vmatpush1.bf16.msra.mxu0 %v2275
    %2293 = vmatprep.subr.bf16.mxu0 0
    %2294 = vmatpush2.bf16.msra.mxu0 0
    %2295 = vmatprep.subr.bf16.mxu0 0
    %2296 = vmatpush2.bf16.msra.mxu0 0
    %2297 = vmatprep.subr.bf16.mxu0 0
    %2298 = vmatpush2.bf16.msra.mxu0 0
    %2299 = vmatprep.subr.bf16.mxu0 0
    %2300 = vmatpush2.bf16.msra.mxu0 0
    %2301 = vmatprep.subr.bf16.mxu0 0
    %2302 = vmatpush2.bf16.msra.mxu0 0
    %2303 = vmatprep.subr.bf16.mxu0 0
    %2304 = vmatpush2.bf16.msra.mxu0 0
    %2305 = vmatprep.subr.bf16.mxu0 0
    %2306 = vmatpush2.bf16.msra.mxu0 0
    %2307 = vmatprep.subr.bf16.mxu0 0
    %2308 = vmatpush2.bf16.msra.mxu0 0
    %2309 = vmatprep.mubr.bf16.mxu0 0
    %2310 = vmatmul.mubr.bf16.gmra.mxu0 %v2272
    %v2311 = vpop.f32.mrf.mxu0
    %v2312 = vadd.f32 0.0, %v2311
    %v2313 = vpop.f32.mrf.mxu0
    %v2314 = vpop.f32.mrf.mxu0
    %v2315 = vpop.f32.mrf.mxu0
    %2316 = vdwg.mxu0
    %v2318 = vunpack.c.h.b16 %v2007
    %v2319 = vpack.c.b16 %v2318, %v2318
    %v2322 = vunpack.c.h.b16 %v2009
    %v2323 = vpack.c.b16 %v2322, %v2322
    %2325 = vmatprep.subr.bf16.mxu0 0
    %2326 = vmatpush1.bf16.xpose.msra.mxu0 0
    %2327 = vmatprep.subr.bf16.mxu0 0
    %2328 = vmatpush1.bf16.xpose.msra.mxu0 0
    %2329 = vmatprep.subr.bf16.mxu0 0
    %2330 = vmatpush1.bf16.xpose.msra.mxu0 0
    %2331 = vmatprep.subr.bf16.mxu0 0
    %2332 = vmatpush1.bf16.xpose.msra.mxu0 0
    %2333 = vmatprep.subr.bf16.mxu0 0
    %2334 = vmatpush1.bf16.xpose.msra.mxu0 0
    %2335 = vmatprep.subr.bf16.mxu0 0
    %2336 = vmatpush1.bf16.xpose.msra.mxu0 0
    %2337 = vmatprep.subr.bf16.mxu0 0
    %2338 = vmatpush1.bf16.xpose.msra.mxu0 0
    %2339 = vmatprep.subr.bf16.mxu0 0
    %2340 = vmatpush1.bf16.xpose.msra.mxu0 %v2323
    %2341 = vmatprep.subr.bf16.mxu0 0
    %2342 = vmatpush2.bf16.xpose.msra.mxu0 0
    %2343 = vmatprep.subr.bf16.mxu0 0
    %2344 = vmatpush2.bf16.xpose.msra.mxu0 0
    %2345 = vmatprep.subr.bf16.mxu0 0
    %2346 = vmatpush2.bf16.xpose.msra.mxu0 0
    %2347 = vmatprep.subr.bf16.mxu0 0
    %2348 = vmatpush2.bf16.xpose.msra.mxu0 0
    %2349 = vmatprep.subr.bf16.mxu0 0
    %2350 = vmatpush2.bf16.xpose.msra.mxu0 0
    %2351 = vmatprep.subr.bf16.mxu0 0
    %2352 = vmatpush2.bf16.xpose.msra.mxu0 0
    %2353 = vmatprep.subr.bf16.mxu0 0
    %2354 = vmatpush2.bf16.xpose.msra.mxu0 0
    %2355 = vmatprep.subr.bf16.mxu0 0
    %2356 = vmatpush2.bf16.xpose.msra.mxu0 0
    %2357 = vmatprep.mubr.bf16.mxu0 0
    %2358 = vmatmul.mubr.bf16.gmra.mxu0 %v2319
    %v2359 = vpop.f32.mrf.mxu0
    %v2360 = vadd.f32 %v1876, %v2359
    %v2361 = vpop.f32.mrf.mxu0
    %v2362 = vpop.f32.mrf.mxu0
    %v2363 = vpop.f32.mrf.mxu0
    %2364 = vdwg.mxu0
    %v2365 = vsel %vm1230, %v2360, -inf
    %2366 = vmax.xlane.f32.xlu0 %v2365
    %v2367 = vpop.xlane.xlu0 %2366
    %v2368 = vsub.f32 %v2360, %v2367
    %v2369 = vmul.f32 %v2368, 1.442695
    %v2370 = vpow.pop %v2369
    %v2371 = vsel %vm1230, %v2370, 0.0
    %2372 = vadd.xlane.f32.xlu0 %v2371
    %v2373 = vpop.xlane.xlu0 %2372
    %v2374 = vrcp.pop %v2373
    %v2375 = vmul.f32 %v2370, %v2374
    %v2376 = vpack.c.bf16 %v2375, %v2375
    %v2378 = vunpack.c.h.b16 %v2011
    %v2379 = vpack.c.b16 %v2378, %v2378
    %v2381 = vsel %vm1230, %v2376, 0
    %v2384 = vsel %vm1234, %v2379, 0
    %2386 = vmatprep.subr.bf16.mxu0 0
    %2387 = vmatpush1.bf16.msra.mxu0 0
    %2388 = vmatprep.subr.bf16.mxu0 0
    %2389 = vmatpush1.bf16.msra.mxu0 0
    %2390 = vmatprep.subr.bf16.mxu0 0
    %2391 = vmatpush1.bf16.msra.mxu0 0
    %2392 = vmatprep.subr.bf16.mxu0 0
    %2393 = vmatpush1.bf16.msra.mxu0 0
    %2394 = vmatprep.subr.bf16.mxu0 0
    %2395 = vmatpush1.bf16.msra.mxu0 0
    %2396 = vmatprep.subr.bf16.mxu0 0
    %2397 = vmatpush1.bf16.msra.mxu0 0
    %2398 = vmatprep.subr.bf16.mxu0 0
    %2399 = vmatpush1.bf16.msra.mxu0 0
    %2400 = vmatprep.subr.bf16.mxu0 0
    %2401 = vmatpush1.bf16.msra.mxu0 %v2384
    %2402 = vmatprep.subr.bf16.mxu0 0
    %2403 = vmatpush2.bf16.msra.mxu0 0
    %2404 = vmatprep.subr.bf16.mxu0 0
    %2405 = vmatpush2.bf16.msra.mxu0 0
    %2406 = vmatprep.subr.bf16.mxu0 0
    %2407 = vmatpush2.bf16.msra.mxu0 0
    %2408 = vmatprep.subr.bf16.mxu0 0
    %2409 = vmatpush2.bf16.msra.mxu0 0
    %2410 = vmatprep.subr.bf16.mxu0 0
    %2411 = vmatpush2.bf16.msra.mxu0 0
    %2412 = vmatprep.subr.bf16.mxu0 0
    %2413 = vmatpush2.bf16.msra.mxu0 0
    %2414 = vmatprep.subr.bf16.mxu0 0
    %2415 = vmatpush2.bf16.msra.mxu0 0
    %2416 = vmatprep.subr.bf16.mxu0 0
    %2417 = vmatpush2.bf16.msra.mxu0 0
    %2418 = vmatprep.mubr.bf16.mxu0 0
    %2419 = vmatmul.mubr.bf16.gmra.mxu0 %v2381
    %v2420 = vpop.f32.mrf.mxu0
    %v2421 = vadd.f32 0.0, %v2420
    %v2422 = vpop.f32.mrf.mxu0
    %v2423 = vpop.f32.mrf.mxu0
    %v2424 = vpop.f32.mrf.mxu0
    %2425 = vdwg.mxu0
    %v2426 = vpack.c.bf16 %v2105, %v2105
    %v2427 = vpack.c.bf16 %v2214, %v2214
    %v2428 = vpack.c.bf16 %v2312, %v2312
    %v2429 = vpack.c.bf16 %v2421, %v2421
    %v2431 = vlaneseq
    %v2432 = vshrl.u32 %v2431, 7
    %v2433 = vsub.s32 0, %v2432
    %v2434 = vrot.slane %v2005, %v2433
    %v2435 = vlaneseq
    %v2436 = vshrl.u32 %v2435, 7
    %v2437 = vsub.s32 1, %v2436
    %v2438 = vrot.slane %v2005, %v2437
    %v2439 = vlaneseq
    %v2440 = vshrl.u32 %v2439, 7
    %v2441 = vsub.s32 2, %v2440
    %v2442 = vrot.slane %v2005, %v2441
    %v2574 = vunpack.c.l.b16 %v1877
    %v2575 = vunpack.c.h.b16 %v1877
    %v2576 = vunpack.c.l.b16 %v1878
    %v2577 = vunpack.c.l.b16 %v1879
    %v2578 = vunpack.c.h.b16 %v1879
    %v2579 = vunpack.c.l.b16 %v1880
    %v2580 = vunpack.c.l.b16 %v1881
    %v2581 = vunpack.c.h.b16 %v1881
    %v2582 = vunpack.c.l.b16 %v1882
    %v2583 = vunpack.c.l.b16 %v1883
    %v2584 = vunpack.c.h.b16 %v1883
    %v2585 = vunpack.c.l.b16 %v1884
    %v2586 = vunpack.c.l.b16 %v1885
    %v2587 = vunpack.c.h.b16 %v1885
    %v2588 = vunpack.c.l.b16 %v1886
    %v2589 = vunpack.c.l.b16 %v1887
    %v2590 = vunpack.c.h.b16 %v1887
    %v2591 = vunpack.c.l.b16 %v1888
    %v2592 = vunpack.c.l.b16 %v1889
    %v2593 = vunpack.c.h.b16 %v1889
    %v2594 = vunpack.c.l.b16 %v1890
    %v2595 = vunpack.c.l.b16 %v1891
    %v2596 = vunpack.c.h.b16 %v1891
    %v2597 = vunpack.c.l.b16 %v1892
    %v2598 = vunpack.c.l.b16 %v1893
    %v2599 = vunpack.c.h.b16 %v1893
    %v2600 = vunpack.c.l.b16 %v1894
    %v2601 = vunpack.c.l.b16 %v1895
    %v2602 = vunpack.c.h.b16 %v1895
    %v2603 = vunpack.c.l.b16 %v1896
    %v2604 = vunpack.c.l.b16 %v1897
    %v2605 = vunpack.c.h.b16 %v1897
    %v2606 = vunpack.c.l.b16 %v1898
    %v2607 = vunpack.c.l.b16 %v1899
    %v2608 = vunpack.c.h.b16 %v1899
    %v2609 = vunpack.c.l.b16 %v1900
    %v2610 = vunpack.c.l.b16 %v1901
    %v2611 = vunpack.c.h.b16 %v1901
    %v2612 = vunpack.c.l.b16 %v1902
    %v2613 = vunpack.c.l.b16 %v1903
    %v2614 = vunpack.c.h.b16 %v1903
    %v2615 = vunpack.c.l.b16 %v1904
    %v2616 = vunpack.c.l.b16 %v1905
    %v2617 = vunpack.c.h.b16 %v1905
    %v2618 = vunpack.c.l.b16 %v1906
    %v2619 = vunpack.c.l.b16 %v1907
    %v2620 = vunpack.c.h.b16 %v1907
    %v2621 = vunpack.c.l.b16 %v1908
    %v2622 = vunpack.c.l.b16 %v1909
    %v2623 = vunpack.c.h.b16 %v1909
    %v2624 = vunpack.c.l.b16 %v1910
    %v2625 = vunpack.c.l.b16 %v1911
    %v2626 = vunpack.c.h.b16 %v1911
    %v2627 = vunpack.c.l.b16 %v1912
    %v2628 = vunpack.c.l.b16 %v1913
    %v2629 = vunpack.c.h.b16 %v1913
    %v2630 = vunpack.c.l.b16 %v1914
    %v2631 = vunpack.c.l.b16 %v1915
    %v2632 = vunpack.c.h.b16 %v1915
    %v2633 = vunpack.c.l.b16 %v1916
    %v2634 = vunpack.c.l.b16 %v1917
    %v2635 = vunpack.c.h.b16 %v1917
    %v2636 = vunpack.c.l.b16 %v1918
    %v2637 = vunpack.c.l.b16 %v1919
    %v2638 = vunpack.c.h.b16 %v1919
    %v2639 = vunpack.c.l.b16 %v1920
    %v2640 = vunpack.c.l.b16 %v1921
    %v2641 = vunpack.c.h.b16 %v1921
    %v2642 = vunpack.c.l.b16 %v1922
    %v2643 = vunpack.c.l.b16 %v1923
    %v2644 = vunpack.c.h.b16 %v1923
    %v2645 = vunpack.c.l.b16 %v1924
    %v2646 = vunpack.c.l.b16 %v1925
    %v2647 = vunpack.c.h.b16 %v1925
    %v2648 = vunpack.c.l.b16 %v1926
    %v2649 = vunpack.c.l.b16 %v1927
    %v2650 = vunpack.c.h.b16 %v1927
    %v2651 = vunpack.c.l.b16 %v1928
    %v2652 = vunpack.c.l.b16 %v1929
    %v2653 = vunpack.c.h.b16 %v1929
    %v2654 = vunpack.c.l.b16 %v1930
    %v2655 = vunpack.c.l.b16 %v1931
    %v2656 = vunpack.c.h.b16 %v1931
    %v2657 = vunpack.c.l.b16 %v1932
    %v2658 = vunpack.c.l.b16 %v1933
    %v2659 = vunpack.c.h.b16 %v1933
    %v2660 = vunpack.c.l.b16 %v1934
    %v2661 = vunpack.c.l.b16 %v1935
    %v2662 = vunpack.c.h.b16 %v1935
    %v2663 = vunpack.c.l.b16 %v1936
    %v2664 = vunpack.c.l.b16 %v1937
    %v2665 = vunpack.c.h.b16 %v1937
    %v2666 = vunpack.c.l.b16 %v1938
    %v2667 = vunpack.c.l.b16 %v1939
    %v2668 = vunpack.c.h.b16 %v1939
    %v2669 = vunpack.c.l.b16 %v1940
    %v2670 = vunpack.c.l.b16 %v1941
    %v2671 = vunpack.c.h.b16 %v1941
    %v2672 = vunpack.c.l.b16 %v1942
    %v2673 = vunpack.c.l.b16 %v1943
    %v2674 = vunpack.c.h.b16 %v1943
    %v2675 = vunpack.c.l.b16 %v1944
    %v2676 = vunpack.c.l.b16 %v1945
    %v2677 = vunpack.c.h.b16 %v1945
    %v2678 = vunpack.c.l.b16 %v1946
    %v2679 = vunpack.c.l.b16 %v1947
    %v2680 = vunpack.c.h.b16 %v1947
    %v2681 = vunpack.c.l.b16 %v1948
    %v2682 = vunpack.c.l.b16 %v1949
    %v2683 = vunpack.c.h.b16 %v1949
    %v2684 = vunpack.c.l.b16 %v1950
    %v2685 = vunpack.c.l.b16 %v1951
    %v2686 = vunpack.c.h.b16 %v1951
    %v2687 = vunpack.c.l.b16 %v1952
    %v2688 = vunpack.c.l.b16 %v1953
    %v2689 = vunpack.c.h.b16 %v1953
    %v2690 = vunpack.c.l.b16 %v1954
    %v2691 = vunpack.c.l.b16 %v1955
    %v2692 = vunpack.c.h.b16 %v1955
    %v2693 = vunpack.c.l.b16 %v1956
    %v2694 = vunpack.c.l.b16 %v1957
    %v2695 = vunpack.c.h.b16 %v1957
    %v2696 = vunpack.c.l.b16 %v1958
    %v2697 = vunpack.c.l.b16 %v1959
    %v2698 = vunpack.c.h.b16 %v1959
    %v2699 = vunpack.c.l.b16 %v1960
    %v2700 = vunpack.c.l.b16 %v1961
    %v2701 = vunpack.c.h.b16 %v1961
    %v2702 = vunpack.c.l.b16 %v1962
    %v2703 = vunpack.c.l.b16 %v1963
    %v2704 = vunpack.c.h.b16 %v1963
    %v2705 = vunpack.c.l.b16 %v1964
    %v2706 = vunpack.c.l.b16 %v1965
    %v2707 = vunpack.c.h.b16 %v1965
    %v2708 = vunpack.c.l.b16 %v1966
    %v2709 = vunpack.c.l.b16 %v1967
    %v2710 = vunpack.c.h.b16 %v1967
    %v2711 = vunpack.c.l.b16 %v1968
    %v2712 = vunpack.c.l.b16 %v1969
    %v2713 = vunpack.c.h.b16 %v1969
    %v2714 = vunpack.c.l.b16 %v1970
    %v2715 = vunpack.c.l.b16 %v1971
    %v2716 = vunpack.c.h.b16 %v1971
    %v2717 = vunpack.c.l.b16 %v1972
    %v2718 = vunpack.c.l.b16 %v1973
    %v2719 = vunpack.c.h.b16 %v1973
    %v2720 = vunpack.c.l.b16 %v1974
    %v2721 = vunpack.c.l.b16 %v1975
    %v2722 = vunpack.c.h.b16 %v1975
    %v2723 = vunpack.c.l.b16 %v1976
    %v2724 = vunpack.c.l.b16 %v1977
    %v2725 = vunpack.c.h.b16 %v1977
    %v2726 = vunpack.c.l.b16 %v1978
    %v2727 = vunpack.c.l.b16 %v1979
    %v2728 = vunpack.c.h.b16 %v1979
    %v2729 = vunpack.c.l.b16 %v1980
    %v2730 = vunpack.c.l.b16 %v1981
    %v2731 = vunpack.c.h.b16 %v1981
    %v2732 = vunpack.c.l.b16 %v1982
    %v2733 = vunpack.c.l.b16 %v1983
    %v2734 = vunpack.c.h.b16 %v1983
    %v2735 = vunpack.c.l.b16 %v1984
    %v2736 = vunpack.c.l.b16 %v1985
    %v2737 = vunpack.c.h.b16 %v1985
    %v2738 = vunpack.c.l.b16 %v1986
    %v2739 = vunpack.c.l.b16 %v1987
    %v2740 = vunpack.c.h.b16 %v1987
    %v2741 = vunpack.c.l.b16 %v1988
    %v2742 = vunpack.c.l.b16 %v1989
    %v2743 = vunpack.c.h.b16 %v1989
    %v2744 = vunpack.c.l.b16 %v1990
    %v2745 = vunpack.c.l.b16 %v1991
    %v2746 = vunpack.c.h.b16 %v1991
    %v2747 = vunpack.c.l.b16 %v1992
    %v2748 = vunpack.c.l.b16 %v1993
    %v2749 = vunpack.c.h.b16 %v1993
    %v2750 = vunpack.c.l.b16 %v1994
    %v2751 = vunpack.c.l.b16 %v1995
    %v2752 = vunpack.c.h.b16 %v1995
    %v2753 = vunpack.c.l.b16 %v1996
    %v2754 = vunpack.c.l.b16 %v1997
    %v2755 = vunpack.c.h.b16 %v1997
    %v2756 = vunpack.c.l.b16 %v1998
    %v2757 = vunpack.c.l.b16 %v1999
    %v2758 = vunpack.c.h.b16 %v1999
    %v2759 = vunpack.c.l.b16 %v2000
    %v2760 = vunpack.c.l.b16 %v2001
    %v2761 = vunpack.c.h.b16 %v2001
    %v2762 = vunpack.c.l.b16 %v2002
    %v2763 = vunpack.c.l.b16 %v2003
    %v2764 = vunpack.c.h.b16 %v2003
    %v2765 = vunpack.c.l.b16 %v2004
    %v2766 = vpack.c.b16 %v2577, %v2574
    %v2767 = vpack.c.b16 %v2578, %v2575
    %v2768 = vpack.c.b16 %v2579, %v2576
    %v2769 = vpack.c.b16 %v2583, %v2580
    %v2770 = vpack.c.b16 %v2584, %v2581
    %v2771 = vpack.c.b16 %v2585, %v2582
    %v2772 = vpack.c.b16 %v2589, %v2586
    %v2773 = vpack.c.b16 %v2590, %v2587
    %v2774 = vpack.c.b16 %v2591, %v2588
    %v2775 = vpack.c.b16 %v2595, %v2592
    %v2776 = vpack.c.b16 %v2596, %v2593
    %v2777 = vpack.c.b16 %v2597, %v2594
    %v2778 = vpack.c.b16 %v2601, %v2598
    %v2779 = vpack.c.b16 %v2602, %v2599
    %v2780 = vpack.c.b16 %v2603, %v2600
    %v2781 = vpack.c.b16 %v2607, %v2604
    %v2782 = vpack.c.b16 %v2608, %v2605
    %v2783 = vpack.c.b16 %v2609, %v2606
    %v2784 = vpack.c.b16 %v2613, %v2610
    %v2785 = vpack.c.b16 %v2614, %v2611
    %v2786 = vpack.c.b16 %v2615, %v2612
    %v2787 = vpack.c.b16 %v2619, %v2616
    %v2788 = vpack.c.b16 %v2620, %v2617
    %v2789 = vpack.c.b16 %v2621, %v2618
    %v2790 = vpack.c.b16 %v2625, %v2622
    %v2791 = vpack.c.b16 %v2626, %v2623
    %v2792 = vpack.c.b16 %v2627, %v2624
    %v2793 = vpack.c.b16 %v2631, %v2628
    %v2794 = vpack.c.b16 %v2632, %v2629
    %v2795 = vpack.c.b16 %v2633, %v2630
    %v2796 = vpack.c.b16 %v2637, %v2634
    %v2797 = vpack.c.b16 %v2638, %v2635
    %v2798 = vpack.c.b16 %v2639, %v2636
    %v2799 = vpack.c.b16 %v2643, %v2640
    %v2800 = vpack.c.b16 %v2644, %v2641
    %v2801 = vpack.c.b16 %v2645, %v2642
    %v2802 = vpack.c.b16 %v2649, %v2646
    %v2803 = vpack.c.b16 %v2650, %v2647
    %v2804 = vpack.c.b16 %v2651, %v2648
    %v2805 = vpack.c.b16 %v2655, %v2652
    %v2806 = vpack.c.b16 %v2656, %v2653
    %v2807 = vpack.c.b16 %v2657, %v2654
    %v2808 = vpack.c.b16 %v2661, %v2658
    %v2809 = vpack.c.b16 %v2662, %v2659
    %v2810 = vpack.c.b16 %v2663, %v2660
    %v2811 = vpack.c.b16 %v2667, %v2664
    %v2812 = vpack.c.b16 %v2668, %v2665
    %v2813 = vpack.c.b16 %v2669, %v2666
    %v2814 = vpack.c.b16 %v2673, %v2670
    %v2815 = vpack.c.b16 %v2674, %v2671
    %v2816 = vpack.c.b16 %v2675, %v2672
    %v2817 = vpack.c.b16 %v2679, %v2676
    %v2818 = vpack.c.b16 %v2680, %v2677
    %v2819 = vpack.c.b16 %v2681, %v2678
    %v2820 = vpack.c.b16 %v2685, %v2682
    %v2821 = vpack.c.b16 %v2686, %v2683
    %v2822 = vpack.c.b16 %v2687, %v2684
    %v2823 = vpack.c.b16 %v2691, %v2688
    %v2824 = vpack.c.b16 %v2692, %v2689
    %v2825 = vpack.c.b16 %v2693, %v2690
    %v2826 = vpack.c.b16 %v2697, %v2694
    %v2827 = vpack.c.b16 %v2698, %v2695
    %v2828 = vpack.c.b16 %v2699, %v2696
    %v2829 = vpack.c.b16 %v2703, %v2700
    %v2830 = vpack.c.b16 %v2704, %v2701
    %v2831 = vpack.c.b16 %v2705, %v2702
    %v2832 = vpack.c.b16 %v2709, %v2706
    %v2833 = vpack.c.b16 %v2710, %v2707
    %v2834 = vpack.c.b16 %v2711, %v2708
    %v2835 = vpack.c.b16 %v2715, %v2712
    %v2836 = vpack.c.b16 %v2716, %v2713
    %v2837 = vpack.c.b16 %v2717, %v2714
    %v2838 = vpack.c.b16 %v2721, %v2718
    %v2839 = vpack.c.b16 %v2722, %v2719
    %v2840 = vpack.c.b16 %v2723, %v2720
    %v2841 = vpack.c.b16 %v2727, %v2724
    %v2842 = vpack.c.b16 %v2728, %v2725
    %v2843 = vpack.c.b16 %v2729, %v2726
    %v2844 = vpack.c.b16 %v2733, %v2730
    %v2845 = vpack.c.b16 %v2734, %v2731
    %v2846 = vpack.c.b16 %v2735, %v2732
    %v2847 = vpack.c.b16 %v2739, %v2736
    %v2848 = vpack.c.b16 %v2740, %v2737
    %v2849 = vpack.c.b16 %v2741, %v2738
    %v2850 = vpack.c.b16 %v2745, %v2742
    %v2851 = vpack.c.b16 %v2746, %v2743
    %v2852 = vpack.c.b16 %v2747, %v2744
    %v2853 = vpack.c.b16 %v2751, %v2748
    %v2854 = vpack.c.b16 %v2752, %v2749
    %v2855 = vpack.c.b16 %v2753, %v2750
    %v2856 = vpack.c.b16 %v2757, %v2754
    %v2857 = vpack.c.b16 %v2758, %v2755
    %v2858 = vpack.c.b16 %v2759, %v2756
    %v2859 = vpack.c.b16 %v2763, %v2760
    %v2860 = vpack.c.b16 %v2764, %v2761
    %v2861 = vpack.c.b16 %v2765, %v2762
    %2958 = vmatprep.subr.bf16.mxu0 %v2788
    %2959 = vmatpush1.bf16.msra.mxu0 %v2787
    %2960 = vmatprep.subr.bf16.mxu0 %v2785
    %2961 = vmatpush1.bf16.msra.mxu0 %v2784
    %2962 = vmatprep.subr.bf16.mxu0 %v2782
    %2963 = vmatpush1.bf16.msra.mxu0 %v2781
    %2964 = vmatprep.subr.bf16.mxu0 %v2779
    %2965 = vmatpush1.bf16.msra.mxu0 %v2778
    %2966 = vmatprep.subr.bf16.mxu0 %v2776
    %2967 = vmatpush1.bf16.msra.mxu0 %v2775
    %2968 = vmatprep.subr.bf16.mxu0 %v2773
    %2969 = vmatpush1.bf16.msra.mxu0 %v2772
    %2970 = vmatprep.subr.bf16.mxu0 %v2770
    %2971 = vmatpush1.bf16.msra.mxu0 %v2769
    %2972 = vmatprep.subr.bf16.mxu0 %v2767
    %2973 = vmatpush1.bf16.msra.mxu0 %v2766
    %2974 = vmatprep.subr.bf16.mxu0 %v2812
    %2975 = vmatpush2.bf16.msra.mxu0 %v2811
    %2976 = vmatprep.subr.bf16.mxu0 %v2809
    %2977 = vmatpush2.bf16.msra.mxu0 %v2808
    %2978 = vmatprep.subr.bf16.mxu0 %v2806
    %2979 = vmatpush2.bf16.msra.mxu0 %v2805
    %2980 = vmatprep.subr.bf16.mxu0 %v2803
    %2981 = vmatpush2.bf16.msra.mxu0 %v2802
    %2982 = vmatprep.subr.bf16.mxu0 %v2800
    %2983 = vmatpush2.bf16.msra.mxu0 %v2799
    %2984 = vmatprep.subr.bf16.mxu0 %v2797
    %2985 = vmatpush2.bf16.msra.mxu0 %v2796
    %2986 = vmatprep.subr.bf16.mxu0 %v2794
    %2987 = vmatpush2.bf16.msra.mxu0 %v2793
    %2988 = vmatprep.subr.bf16.mxu0 %v2791
    %2989 = vmatpush2.bf16.msra.mxu0 %v2790
    %2990 = vmatprep.mubr.bf16.mxu0 %v2427
    %2991 = vmatmul.mubr.bf16.gmra.mxu0 %v2426
    %v2992 = vpop.f32.mrf.mxu0
    %v2993 = vadd.f32 %v2434, %v2992
    %v2994 = vpop.f32.mrf.mxu0
    %v2995 = vadd.f32 %v2438, %v2994
    %v2996 = vpop.f32.mrf.mxu0
    %v2997 = vpop.f32.mrf.mxu0
    %2998 = vdwg.mxu0
    %2999 = vmatprep.subr.bf16.mxu0 %v2836
    %3000 = vmatpush1.bf16.msra.mxu0 %v2835
    %3001 = vmatprep.subr.bf16.mxu0 %v2833
    %3002 = vmatpush1.bf16.msra.mxu0 %v2832
    %3003 = vmatprep.subr.bf16.mxu0 %v2830
    %3004 = vmatpush1.bf16.msra.mxu0 %v2829
    %3005 = vmatprep.subr.bf16.mxu0 %v2827
    %3006 = vmatpush1.bf16.msra.mxu0 %v2826
    %3007 = vmatprep.subr.bf16.mxu0 %v2824
    %3008 = vmatpush1.bf16.msra.mxu0 %v2823
    %3009 = vmatprep.subr.bf16.mxu0 %v2821
    %3010 = vmatpush1.bf16.msra.mxu0 %v2820
    %3011 = vmatprep.subr.bf16.mxu0 %v2818
    %3012 = vmatpush1.bf16.msra.mxu0 %v2817
    %3013 = vmatprep.subr.bf16.mxu0 %v2815
    %3014 = vmatpush1.bf16.msra.mxu0 %v2814
    %3015 = vmatprep.subr.bf16.mxu0 %v2860
    %3016 = vmatpush2.bf16.msra.mxu0 %v2859
    %3017 = vmatprep.subr.bf16.mxu0 %v2857
    %3018 = vmatpush2.bf16.msra.mxu0 %v2856
    %3019 = vmatprep.subr.bf16.mxu0 %v2854
    %3020 = vmatpush2.bf16.msra.mxu0 %v2853
    %3021 = vmatprep.subr.bf16.mxu0 %v2851
    %3022 = vmatpush2.bf16.msra.mxu0 %v2850
    %3023 = vmatprep.subr.bf16.mxu0 %v2848
    %3024 = vmatpush2.bf16.msra.mxu0 %v2847
    %3025 = vmatprep.subr.bf16.mxu0 %v2845
    %3026 = vmatpush2.bf16.msra.mxu0 %v2844
    %3027 = vmatprep.subr.bf16.mxu0 %v2842
    %3028 = vmatpush2.bf16.msra.mxu0 %v2841
    %3029 = vmatprep.subr.bf16.mxu0 %v2839
    %3030 = vmatpush2.bf16.msra.mxu0 %v2838
    %3031 = vmatprep.mubr.bf16.mxu0 %v2429
    %3032 = vmatmul.mubr.bf16.gmra.mxu0 %v2428
    %v3033 = vpop.f32.mrf.mxu0
    %v3034 = vadd.f32 %v2993, %v3033
    %v3035 = vpop.f32.mrf.mxu0
    %v3036 = vadd.f32 %v2995, %v3035
    %v3037 = vpop.f32.mrf.mxu0
    %v3038 = vpop.f32.mrf.mxu0
    %3039 = vdwg.mxu0
    %3040 = vmatprep.subr.bf16.mxu0 0
    %3041 = vmatpush1.bf16.msra.mxu0 %v2789
    %3042 = vmatprep.subr.bf16.mxu0 0
    %3043 = vmatpush1.bf16.msra.mxu0 %v2786
    %3044 = vmatprep.subr.bf16.mxu0 0
    %3045 = vmatpush1.bf16.msra.mxu0 %v2783
    %3046 = vmatprep.subr.bf16.mxu0 0
    %3047 = vmatpush1.bf16.msra.mxu0 %v2780
    %3048 = vmatprep.subr.bf16.mxu0 0
    %3049 = vmatpush1.bf16.msra.mxu0 %v2777
    %3050 = vmatprep.subr.bf16.mxu0 0
    %3051 = vmatpush1.bf16.msra.mxu0 %v2774
    %3052 = vmatprep.subr.bf16.mxu0 0
    %3053 = vmatpush1.bf16.msra.mxu0 %v2771
    %3054 = vmatprep.subr.bf16.mxu0 0
    %3055 = vmatpush1.bf16.msra.mxu0 %v2768
    %3056 = vmatprep.subr.bf16.mxu0 0
    %3057 = vmatpush2.bf16.msra.mxu0 %v2813
    %3058 = vmatprep.subr.bf16.mxu0 0
    %3059 = vmatpush2.bf16.msra.mxu0 %v2810
    %3060 = vmatprep.subr.bf16.mxu0 0
    %3061 = vmatpush2.bf16.msra.mxu0 %v2807
    %3062 = vmatprep.subr.bf16.mxu0 0
    %3063 = vmatpush2.bf16.msra.mxu0 %v2804
    %3064 = vmatprep.subr.bf16.mxu0 0
    %3065 = vmatpush2.bf16.msra.mxu0 %v2801
    %3066 = vmatprep.subr.bf16.mxu0 0
    %3067 = vmatpush2.bf16.msra.mxu0 %v2798
    %3068 = vmatprep.subr.bf16.mxu0 0
    %3069 = vmatpush2.bf16.msra.mxu0 %v2795
    %3070 = vmatprep.subr.bf16.mxu0 0
    %3071 = vmatpush2.bf16.msra.mxu0 %v2792
    %3072 = vmatprep.mubr.bf16.mxu0 %v2427
    %3073 = vmatmul.mubr.bf16.gmra.mxu0 %v2426
    %v3074 = vpop.f32.mrf.mxu0
    %v3075 = vadd.f32 %v2442, %v3074
    %v3076 = vpop.f32.mrf.mxu0
    %v3077 = vpop.f32.mrf.mxu0
    %v3078 = vpop.f32.mrf.mxu0
    %3079 = vdwg.mxu0
    %3080 = vmatprep.subr.bf16.mxu0 0
    %3081 = vmatpush1.bf16.msra.mxu0 %v2837
    %3082 = vmatprep.subr.bf16.mxu0 0
    %3083 = vmatpush1.bf16.msra.mxu0 %v2834
    %3084 = vmatprep.subr.bf16.mxu0 0
    %3085 = vmatpush1.bf16.msra.mxu0 %v2831
    %3086 = vmatprep.subr.bf16.mxu0 0
    %3087 = vmatpush1.bf16.msra.mxu0 %v2828
    %3088 = vmatprep.subr.bf16.mxu0 0
    %3089 = vmatpush1.bf16.msra.mxu0 %v2825
    %3090 = vmatprep.subr.bf16.mxu0 0
    %3091 = vmatpush1.bf16.msra.mxu0 %v2822
    %3092 = vmatprep.subr.bf16.mxu0 0
    %3093 = vmatpush1.bf16.msra.mxu0 %v2819
    %3094 = vmatprep.subr.bf16.mxu0 0
    %3095 = vmatpush1.bf16.msra.mxu0 %v2816
    %3096 = vmatprep.subr.bf16.mxu0 0
    %3097 = vmatpush2.bf16.msra.mxu0 %v2861
    %3098 = vmatprep.subr.bf16.mxu0 0
    %3099 = vmatpush2.bf16.msra.mxu0 %v2858
    %3100 = vmatprep.subr.bf16.mxu0 0
    %3101 = vmatpush2.bf16.msra.mxu0 %v2855
    %3102 = vmatprep.subr.bf16.mxu0 0
    %3103 = vmatpush2.bf16.msra.mxu0 %v2852
    %3104 = vmatprep.subr.bf16.mxu0 0
    %3105 = vmatpush2.bf16.msra.mxu0 %v2849
    %3106 = vmatprep.subr.bf16.mxu0 0
    %3107 = vmatpush2.bf16.msra.mxu0 %v2846
    %3108 = vmatprep.subr.bf16.mxu0 0
    %3109 = vmatpush2.bf16.msra.mxu0 %v2843
    %3110 = vmatprep.subr.bf16.mxu0 0
    %3111 = vmatpush2.bf16.msra.mxu0 %v2840
    %3112 = vmatprep.mubr.bf16.mxu0 %v2429
    %3113 = vmatmul.mubr.bf16.gmra.mxu0 %v2428
    %v3114 = vpop.f32.mrf.mxu0
    %v3115 = vadd.f32 %v3075, %v3114
    %v3116 = vpop.f32.mrf.mxu0
    %v3117 = vpop.f32.mrf.mxu0
    %v3118 = vpop.f32.mrf.mxu0
    %3119 = vdwg.mxu0
    %3120 = vst [vmem:[#allocation6] sm:$0xff] %v3034
    %3121 = vst [vmem:[#allocation6 + $0x8] sm:$0xff] %v3036
    %3122 = vst.msk [vmem:[#allocation6 + $0x10] sm:$0xff] %vm1230, %v3115
    %v3123 = vld [vmem:[#allocation2 + $0x30] sm:$0xff]
    %v3124 = vld [vmem:[#allocation2 + $0x38] sm:$0xff]
    %v3125 = vld [vmem:[#allocation2 + $0x40] sm:$0xff]
    %v3126 = vld [vmem:[#allocation2 + $0x48] sm:$0xff]
    %v3127 = vld [vmem:[#allocation2 + $0x50] sm:$0xff]
    %v3128 = vld [vmem:[#allocation2 + $0x58] sm:$0xff]
    %3129 = vmatprep.subr.bf16.mxu0 0
    %3130 = vmatpush1.bf16.xpose.msra.mxu0 0
    %3131 = vmatprep.subr.bf16.mxu0 0
    %3132 = vmatpush1.bf16.xpose.msra.mxu0 0
    %3133 = vmatprep.subr.bf16.mxu0 0
    %3134 = vmatpush1.bf16.xpose.msra.mxu0 0
    %3135 = vmatprep.subr.bf16.mxu0 0
    %3136 = vmatpush1.bf16.xpose.msra.mxu0 0
    %3137 = vmatprep.subr.bf16.mxu0 0
    %3138 = vmatpush1.bf16.xpose.msra.mxu0 0
    %3139 = vmatprep.subr.bf16.mxu0 0
    %3140 = vmatpush1.bf16.xpose.msra.mxu0 0
    %3141 = vmatprep.subr.bf16.mxu0 0
    %3142 = vmatpush1.bf16.xpose.msra.mxu0 0
    %3143 = vmatprep.subr.bf16.mxu0 0
    %3144 = vmatpush1.bf16.xpose.msra.mxu0 %v3125
    %3145 = vmatprep.subr.bf16.mxu0 0
    %3146 = vmatpush2.bf16.xpose.msra.mxu0 0
    %3147 = vmatprep.subr.bf16.mxu0 0
    %3148 = vmatpush2.bf16.xpose.msra.mxu0 0
    %3149 = vmatprep.subr.bf16.mxu0 0
    %3150 = vmatpush2.bf16.xpose.msra.mxu0 0
    %3151 = vmatprep.subr.bf16.mxu0 0
    %3152 = vmatpush2.bf16.xpose.msra.mxu0 0
    %3153 = vmatprep.subr.bf16.mxu0 0
    %3154 = vmatpush2.bf16.xpose.msra.mxu0 0
    %3155 = vmatprep.subr.bf16.mxu0 0
    %3156 = vmatpush2.bf16.xpose.msra.mxu0 0
    %3157 = vmatprep.subr.bf16.mxu0 0
    %3158 = vmatpush2.bf16.xpose.msra.mxu0 0
    %3159 = vmatprep.subr.bf16.mxu0 0
    %3160 = vmatpush2.bf16.xpose.msra.mxu0 0
    %3161 = vmatprep.mubr.bf16.mxu0 0
    %3162 = vmatmul.mubr.bf16.gmra.mxu0 %v3123
    %v3163 = vpop.f32.mrf.mxu0
    %v3164 = vadd.f32 %v1876, %v3163
    %v3165 = vpop.f32.mrf.mxu0
    %v3166 = vpop.f32.mrf.mxu0
    %v3167 = vpop.f32.mrf.mxu0
    %3168 = vdwg.mxu0
    %v3169 = vsel %vm1230, %v3164, -inf
    %3170 = vmax.xlane.f32.xlu0 %v3169
    %v3171 = vpop.xlane.xlu0 %3170
    %v3172 = vsub.f32 %v3164, %v3171
    %v3173 = vmul.f32 %v3172, 1.442695
    %v3174 = vpow.pop %v3173
    %v3175 = vsel %vm1230, %v3174, 0.0
    %3176 = vadd.xlane.f32.xlu0 %v3175
    %v3177 = vpop.xlane.xlu0 %3176
    %v3178 = vrcp.pop %v3177
    %v3179 = vmul.f32 %v3174, %v3178
    %v3180 = vpack.c.bf16 %v3179, %v3179
    %v3182 = vsel %vm1230, %v3180, 0
    %v3185 = vsel %vm1234, %v3127, 0
    %3187 = vmatprep.subr.bf16.mxu0 0
    %3188 = vmatpush1.bf16.msra.mxu0 0
    %3189 = vmatprep.subr.bf16.mxu0 0
    %3190 = vmatpush1.bf16.msra.mxu0 0
    %3191 = vmatprep.subr.bf16.mxu0 0
    %3192 = vmatpush1.bf16.msra.mxu0 0
    %3193 = vmatprep.subr.bf16.mxu0 0
    %3194 = vmatpush1.bf16.msra.mxu0 0
    %3195 = vmatprep.subr.bf16.mxu0 0
    %3196 = vmatpush1.bf16.msra.mxu0 0
    %3197 = vmatprep.subr.bf16.mxu0 0
    %3198 = vmatpush1.bf16.msra.mxu0 0
    %3199 = vmatprep.subr.bf16.mxu0 0
    %3200 = vmatpush1.bf16.msra.mxu0 0
    %3201 = vmatprep.subr.bf16.mxu0 0
    %3202 = vmatpush1.bf16.msra.mxu0 %v3185
    %3203 = vmatprep.subr.bf16.mxu0 0
    %3204 = vmatpush2.bf16.msra.mxu0 0
    %3205 = vmatprep.subr.bf16.mxu0 0
    %3206 = vmatpush2.bf16.msra.mxu0 0
    %3207 = vmatprep.subr.bf16.mxu0 0
    %3208 = vmatpush2.bf16.msra.mxu0 0
    %3209 = vmatprep.subr.bf16.mxu0 0
    %3210 = vmatpush2.bf16.msra.mxu0 0
    %3211 = vmatprep.subr.bf16.mxu0 0
    %3212 = vmatpush2.bf16.msra.mxu0 0
    %3213 = vmatprep.subr.bf16.mxu0 0
    %3214 = vmatpush2.bf16.msra.mxu0 0
    %3215 = vmatprep.subr.bf16.mxu0 0
    %3216 = vmatpush2.bf16.msra.mxu0 0
    %3217 = vmatprep.subr.bf16.mxu0 0
    %3218 = vmatpush2.bf16.msra.mxu0 0
    %3219 = vmatprep.mubr.bf16.mxu0 0
    %3220 = vmatmul.mubr.bf16.gmra.mxu0 %v3182
    %v3221 = vpop.f32.mrf.mxu0
    %v3222 = vadd.f32 0.0, %v3221
    %v3223 = vpop.f32.mrf.mxu0
    %v3224 = vpop.f32.mrf.mxu0
    %v3225 = vpop.f32.mrf.mxu0
    %3226 = vdwg.mxu0
    %v3228 = vunpack.c.h.b16 %v3123
    %v3229 = vpack.c.b16 %v3228, %v3228
    %v3232 = vunpack.c.h.b16 %v3125
    %v3233 = vpack.c.b16 %v3232, %v3232
    %3235 = vmatprep.subr.bf16.mxu0 0
    %3236 = vmatpush1.bf16.xpose.msra.mxu0 0
    %3237 = vmatprep.subr.bf16.mxu0 0
    %3238 = vmatpush1.bf16.xpose.msra.mxu0 0
    %3239 = vmatprep.subr.bf16.mxu0 0
    %3240 = vmatpush1.bf16.xpose.msra.mxu0 0
    %3241 = vmatprep.subr.bf16.mxu0 0
    %3242 = vmatpush1.bf16.xpose.msra.mxu0 0
    %3243 = vmatprep.subr.bf16.mxu0 0
    %3244 = vmatpush1.bf16.xpose.msra.mxu0 0
    %3245 = vmatprep.subr.bf16.mxu0 0
    %3246 = vmatpush1.bf16.xpose.msra.mxu0 0
    %3247 = vmatprep.subr.bf16.mxu0 0
    %3248 = vmatpush1.bf16.xpose.msra.mxu0 0
    %3249 = vmatprep.subr.bf16.mxu0 0
    %3250 = vmatpush1.bf16.xpose.msra.mxu0 %v3233
    %3251 = vmatprep.subr.bf16.mxu0 0
    %3252 = vmatpush2.bf16.xpose.msra.mxu0 0
    %3253 = vmatprep.subr.bf16.mxu0 0
    %3254 = vmatpush2.bf16.xpose.msra.mxu0 0
    %3255 = vmatprep.subr.bf16.mxu0 0
    %3256 = vmatpush2.bf16.xpose.msra.mxu0 0
    %3257 = vmatprep.subr.bf16.mxu0 0
    %3258 = vmatpush2.bf16.xpose.msra.mxu0 0
    %3259 = vmatprep.subr.bf16.mxu0 0
    %3260 = vmatpush2.bf16.xpose.msra.mxu0 0
    %3261 = vmatprep.subr.bf16.mxu0 0
    %3262 = vmatpush2.bf16.xpose.msra.mxu0 0
    %3263 = vmatprep.subr.bf16.mxu0 0
    %3264 = vmatpush2.bf16.xpose.msra.mxu0 0
    %3265 = vmatprep.subr.bf16.mxu0 0
    %3266 = vmatpush2.bf16.xpose.msra.mxu0 0
    %3267 = vmatprep.mubr.bf16.mxu0 0
    %3268 = vmatmul.mubr.bf16.gmra.mxu0 %v3229
    %v3269 = vpop.f32.mrf.mxu0
    %v3270 = vadd.f32 %v1876, %v3269
    %v3271 = vpop.f32.mrf.mxu0
    %v3272 = vpop.f32.mrf.mxu0
    %v3273 = vpop.f32.mrf.mxu0
    %3274 = vdwg.mxu0
    %v3275 = vsel %vm1230, %v3270, -inf
    %3276 = vmax.xlane.f32.xlu0 %v3275
    %v3277 = vpop.xlane.xlu0 %3276
    %v3278 = vsub.f32 %v3270, %v3277
    %v3279 = vmul.f32 %v3278, 1.442695
    %v3280 = vpow.pop %v3279
    %v3281 = vsel %vm1230, %v3280, 0.0
    %3282 = vadd.xlane.f32.xlu0 %v3281
    %v3283 = vpop.xlane.xlu0 %3282
    %v3284 = vrcp.pop %v3283
    %v3285 = vmul.f32 %v3280, %v3284
    %v3286 = vpack.c.bf16 %v3285, %v3285
    %v3288 = vunpack.c.h.b16 %v3127
    %v3289 = vpack.c.b16 %v3288, %v3288
    %v3291 = vsel %vm1230, %v3286, 0
    %v3294 = vsel %vm1234, %v3289, 0
    %3296 = vmatprep.subr.bf16.mxu0 0
    %3297 = vmatpush1.bf16.msra.mxu0 0
    %3298 = vmatprep.subr.bf16.mxu0 0
    %3299 = vmatpush1.bf16.msra.mxu0 0
    %3300 = vmatprep.subr.bf16.mxu0 0
    %3301 = vmatpush1.bf16.msra.mxu0 0
    %3302 = vmatprep.subr.bf16.mxu0 0
    %3303 = vmatpush1.bf16.msra.mxu0 0
    %3304 = vmatprep.subr.bf16.mxu0 0
    %3305 = vmatpush1.bf16.msra.mxu0 0
    %3306 = vmatprep.subr.bf16.mxu0 0
    %3307 = vmatpush1.bf16.msra.mxu0 0
    %3308 = vmatprep.subr.bf16.mxu0 0
    %3309 = vmatpush1.bf16.msra.mxu0 0
    %3310 = vmatprep.subr.bf16.mxu0 0
    %3311 = vmatpush1.bf16.msra.mxu0 %v3294
    %3312 = vmatprep.subr.bf16.mxu0 0
    %3313 = vmatpush2.bf16.msra.mxu0 0
    %3314 = vmatprep.subr.bf16.mxu0 0
    %3315 = vmatpush2.bf16.msra.mxu0 0
    %3316 = vmatprep.subr.bf16.mxu0 0
    %3317 = vmatpush2.bf16.msra.mxu0 0
    %3318 = vmatprep.subr.bf16.mxu0 0
    %3319 = vmatpush2.bf16.msra.mxu0 0
    %3320 = vmatprep.subr.bf16.mxu0 0
    %3321 = vmatpush2.bf16.msra.mxu0 0
    %3322 = vmatprep.subr.bf16.mxu0 0
    %3323 = vmatpush2.bf16.msra.mxu0 0
    %3324 = vmatprep.subr.bf16.mxu0 0
    %3325 = vmatpush2.bf16.msra.mxu0 0
    %3326 = vmatprep.subr.bf16.mxu0 0
    %3327 = vmatpush2.bf16.msra.mxu0 0
    %3328 = vmatprep.mubr.bf16.mxu0 0
    %3329 = vmatmul.mubr.bf16.gmra.mxu0 %v3291
    %v3330 = vpop.f32.mrf.mxu0
    %v3331 = vadd.f32 0.0, %v3330
    %v3332 = vpop.f32.mrf.mxu0
    %v3333 = vpop.f32.mrf.mxu0
    %v3334 = vpop.f32.mrf.mxu0
    %3335 = vdwg.mxu0
    %3336 = vmatprep.subr.bf16.mxu0 0
    %3337 = vmatpush1.bf16.xpose.msra.mxu0 0
    %3338 = vmatprep.subr.bf16.mxu0 0
    %3339 = vmatpush1.bf16.xpose.msra.mxu0 0
    %3340 = vmatprep.subr.bf16.mxu0 0
    %3341 = vmatpush1.bf16.xpose.msra.mxu0 0
    %3342 = vmatprep.subr.bf16.mxu0 0
    %3343 = vmatpush1.bf16.xpose.msra.mxu0 0
    %3344 = vmatprep.subr.bf16.mxu0 0
    %3345 = vmatpush1.bf16.xpose.msra.mxu0 0
    %3346 = vmatprep.subr.bf16.mxu0 0
    %3347 = vmatpush1.bf16.xpose.msra.mxu0 0
    %3348 = vmatprep.subr.bf16.mxu0 0
    %3349 = vmatpush1.bf16.xpose.msra.mxu0 0
    %3350 = vmatprep.subr.bf16.mxu0 0
    %3351 = vmatpush1.bf16.xpose.msra.mxu0 %v3126
    %3352 = vmatprep.subr.bf16.mxu0 0
    %3353 = vmatpush2.bf16.xpose.msra.mxu0 0
    %3354 = vmatprep.subr.bf16.mxu0 0
    %3355 = vmatpush2.bf16.xpose.msra.mxu0 0
    %3356 = vmatprep.subr.bf16.mxu0 0
    %3357 = vmatpush2.bf16.xpose.msra.mxu0 0
    %3358 = vmatprep.subr.bf16.mxu0 0
    %3359 = vmatpush2.bf16.xpose.msra.mxu0 0
    %3360 = vmatprep.subr.bf16.mxu0 0
    %3361 = vmatpush2.bf16.xpose.msra.mxu0 0
    %3362 = vmatprep.subr.bf16.mxu0 0
    %3363 = vmatpush2.bf16.xpose.msra.mxu0 0
    %3364 = vmatprep.subr.bf16.mxu0 0
    %3365 = vmatpush2.bf16.xpose.msra.mxu0 0
    %3366 = vmatprep.subr.bf16.mxu0 0
    %3367 = vmatpush2.bf16.xpose.msra.mxu0 0
    %3368 = vmatprep.mubr.bf16.mxu0 0
    %3369 = vmatmul.mubr.bf16.gmra.mxu0 %v3124
    %v3370 = vpop.f32.mrf.mxu0
    %v3371 = vadd.f32 %v1876, %v3370
    %v3372 = vpop.f32.mrf.mxu0
    %v3373 = vpop.f32.mrf.mxu0
    %v3374 = vpop.f32.mrf.mxu0
    %3375 = vdwg.mxu0
    %v3376 = vsel %vm1230, %v3371, -inf
    %3377 = vmax.xlane.f32.xlu0 %v3376
    %v3378 = vpop.xlane.xlu0 %3377
    %v3379 = vsub.f32 %v3371, %v3378
    %v3380 = vmul.f32 %v3379, 1.442695
    %v3381 = vpow.pop %v3380
    %v3382 = vsel %vm1230, %v3381, 0.0
    %3383 = vadd.xlane.f32.xlu0 %v3382
    %v3384 = vpop.xlane.xlu0 %3383
    %v3385 = vrcp.pop %v3384
    %v3386 = vmul.f32 %v3381, %v3385
    %v3387 = vpack.c.bf16 %v3386, %v3386
    %v3389 = vsel %vm1230, %v3387, 0
    %v3392 = vsel %vm1234, %v3128, 0
    %3394 = vmatprep.subr.bf16.mxu0 0
    %3395 = vmatpush1.bf16.msra.mxu0 0
    %3396 = vmatprep.subr.bf16.mxu0 0
    %3397 = vmatpush1.bf16.msra.mxu0 0
    %3398 = vmatprep.subr.bf16.mxu0 0
    %3399 = vmatpush1.bf16.msra.mxu0 0
    %3400 = vmatprep.subr.bf16.mxu0 0
    %3401 = vmatpush1.bf16.msra.mxu0 0
    %3402 = vmatprep.subr.bf16.mxu0 0
    %3403 = vmatpush1.bf16.msra.mxu0 0
    %3404 = vmatprep.subr.bf16.mxu0 0
    %3405 = vmatpush1.bf16.msra.mxu0 0
    %3406 = vmatprep.subr.bf16.mxu0 0
    %3407 = vmatpush1.bf16.msra.mxu0 0
    %3408 = vmatprep.subr.bf16.mxu0 0
    %3409 = vmatpush1.bf16.msra.mxu0 %v3392
    %3410 = vmatprep.subr.bf16.mxu0 0
    %3411 = vmatpush2.bf16.msra.mxu0 0
    %3412 = vmatprep.subr.bf16.mxu0 0
    %3413 = vmatpush2.bf16.msra.mxu0 0
    %3414 = vmatprep.subr.bf16.mxu0 0
    %3415 = vmatpush2.bf16.msra.mxu0 0
    %3416 = vmatprep.subr.bf16.mxu0 0
    %3417 = vmatpush2.bf16.msra.mxu0 0
    %3418 = vmatprep.subr.bf16.mxu0 0
    %3419 = vmatpush2.bf16.msra.mxu0 0
    %3420 = vmatprep.subr.bf16.mxu0 0
    %3421 = vmatpush2.bf16.msra.mxu0 0
    %3422 = vmatprep.subr.bf16.mxu0 0
    %3423 = vmatpush2.bf16.msra.mxu0 0
    %3424 = vmatprep.subr.bf16.mxu0 0
    %3425 = vmatpush2.bf16.msra.mxu0 0
    %3426 = vmatprep.mubr.bf16.mxu0 0
    %3427 = vmatmul.mubr.bf16.gmra.mxu0 %v3389
    %v3428 = vpop.f32.mrf.mxu0
    %v3429 = vadd.f32 0.0, %v3428
    %v3430 = vpop.f32.mrf.mxu0
    %v3431 = vpop.f32.mrf.mxu0
    %v3432 = vpop.f32.mrf.mxu0
    %3433 = vdwg.mxu0
    %v3435 = vunpack.c.h.b16 %v3124
    %v3436 = vpack.c.b16 %v3435, %v3435
    %v3439 = vunpack.c.h.b16 %v3126
    %v3440 = vpack.c.b16 %v3439, %v3439
    %3442 = vmatprep.subr.bf16.mxu0 0
    %3443 = vmatpush1.bf16.xpose.msra.mxu0 0
    %3444 = vmatprep.subr.bf16.mxu0 0
    %3445 = vmatpush1.bf16.xpose.msra.mxu0 0
    %3446 = vmatprep.subr.bf16.mxu0 0
    %3447 = vmatpush1.bf16.xpose.msra.mxu0 0
    %3448 = vmatprep.subr.bf16.mxu0 0
    %3449 = vmatpush1.bf16.xpose.msra.mxu0 0
    %3450 = vmatprep.subr.bf16.mxu0 0
    %3451 = vmatpush1.bf16.xpose.msra.mxu0 0
    %3452 = vmatprep.subr.bf16.mxu0 0
    %3453 = vmatpush1.bf16.xpose.msra.mxu0 0
    %3454 = vmatprep.subr.bf16.mxu0 0
    %3455 = vmatpush1.bf16.xpose.msra.mxu0 0
    %3456 = vmatprep.subr.bf16.mxu0 0
    %3457 = vmatpush1.bf16.xpose.msra.mxu0 %v3440
    %3458 = vmatprep.subr.bf16.mxu0 0
    %3459 = vmatpush2.bf16.xpose.msra.mxu0 0
    %3460 = vmatprep.subr.bf16.mxu0 0
    %3461 = vmatpush2.bf16.xpose.msra.mxu0 0
    %3462 = vmatprep.subr.bf16.mxu0 0
    %3463 = vmatpush2.bf16.xpose.msra.mxu0 0
    %3464 = vmatprep.subr.bf16.mxu0 0
    %3465 = vmatpush2.bf16.xpose.msra.mxu0 0
    %3466 = vmatprep.subr.bf16.mxu0 0
    %3467 = vmatpush2.bf16.xpose.msra.mxu0 0
    %3468 = vmatprep.subr.bf16.mxu0 0
    %3469 = vmatpush2.bf16.xpose.msra.mxu0 0
    %3470 = vmatprep.subr.bf16.mxu0 0
    %3471 = vmatpush2.bf16.xpose.msra.mxu0 0
    %3472 = vmatprep.subr.bf16.mxu0 0
    %3473 = vmatpush2.bf16.xpose.msra.mxu0 0
    %3474 = vmatprep.mubr.bf16.mxu0 0
    %3475 = vmatmul.mubr.bf16.gmra.mxu0 %v3436
    %v3476 = vpop.f32.mrf.mxu0
    %v3477 = vadd.f32 %v1876, %v3476
    %v3478 = vpop.f32.mrf.mxu0
    %v3479 = vpop.f32.mrf.mxu0
    %v3480 = vpop.f32.mrf.mxu0
    %3481 = vdwg.mxu0
    %v3482 = vsel %vm1230, %v3477, -inf
    %3483 = vmax.xlane.f32.xlu0 %v3482
    %v3484 = vpop.xlane.xlu0 %3483
    %v3485 = vsub.f32 %v3477, %v3484
    %v3486 = vmul.f32 %v3485, 1.442695
    %v3487 = vpow.pop %v3486
    %v3488 = vsel %vm1230, %v3487, 0.0
    %3489 = vadd.xlane.f32.xlu0 %v3488
    %v3490 = vpop.xlane.xlu0 %3489
    %v3491 = vrcp.pop %v3490
    %v3492 = vmul.f32 %v3487, %v3491
    %v3493 = vpack.c.bf16 %v3492, %v3492
    %v3495 = vunpack.c.h.b16 %v3128
    %v3496 = vpack.c.b16 %v3495, %v3495
    %v3498 = vsel %vm1230, %v3493, 0
    %v3501 = vsel %vm1234, %v3496, 0
    %3503 = vmatprep.subr.bf16.mxu0 0
    %3504 = vmatpush1.bf16.msra.mxu0 0
    %3505 = vmatprep.subr.bf16.mxu0 0
    %3506 = vmatpush1.bf16.msra.mxu0 0
    %3507 = vmatprep.subr.bf16.mxu0 0
    %3508 = vmatpush1.bf16.msra.mxu0 0
    %3509 = vmatprep.subr.bf16.mxu0 0
    %3510 = vmatpush1.bf16.msra.mxu0 0
    %3511 = vmatprep.subr.bf16.mxu0 0
    %3512 = vmatpush1.bf16.msra.mxu0 0
    %3513 = vmatprep.subr.bf16.mxu0 0
    %3514 = vmatpush1.bf16.msra.mxu0 0
    %3515 = vmatprep.subr.bf16.mxu0 0
    %3516 = vmatpush1.bf16.msra.mxu0 0
    %3517 = vmatprep.subr.bf16.mxu0 0
    %3518 = vmatpush1.bf16.msra.mxu0 %v3501
    %3519 = vmatprep.subr.bf16.mxu0 0
    %3520 = vmatpush2.bf16.msra.mxu0 0
    %3521 = vmatprep.subr.bf16.mxu0 0
    %3522 = vmatpush2.bf16.msra.mxu0 0
    %3523 = vmatprep.subr.bf16.mxu0 0
    %3524 = vmatpush2.bf16.msra.mxu0 0
    %3525 = vmatprep.subr.bf16.mxu0 0
    %3526 = vmatpush2.bf16.msra.mxu0 0
    %3527 = vmatprep.subr.bf16.mxu0 0
    %3528 = vmatpush2.bf16.msra.mxu0 0
    %3529 = vmatprep.subr.bf16.mxu0 0
    %3530 = vmatpush2.bf16.msra.mxu0 0
    %3531 = vmatprep.subr.bf16.mxu0 0
    %3532 = vmatpush2.bf16.msra.mxu0 0
    %3533 = vmatprep.subr.bf16.mxu0 0
    %3534 = vmatpush2.bf16.msra.mxu0 0
    %3535 = vmatprep.mubr.bf16.mxu0 0
    %3536 = vmatmul.mubr.bf16.gmra.mxu0 %v3498
    %v3537 = vpop.f32.mrf.mxu0
    %v3538 = vadd.f32 0.0, %v3537
    %v3539 = vpop.f32.mrf.mxu0
    %v3540 = vpop.f32.mrf.mxu0
    %v3541 = vpop.f32.mrf.mxu0
    %3542 = vdwg.mxu0
    %v3543 = vpack.c.bf16 %v3222, %v3222
    %v3544 = vpack.c.bf16 %v3331, %v3331
    %v3545 = vpack.c.bf16 %v3429, %v3429
    %v3546 = vpack.c.bf16 %v3538, %v3538
    %3547 = vmatprep.subr.bf16.mxu0 %v2788
    %3548 = vmatpush1.bf16.msra.mxu0 %v2787
    %3549 = vmatprep.subr.bf16.mxu0 %v2785
    %3550 = vmatpush1.bf16.msra.mxu0 %v2784
    %3551 = vmatprep.subr.bf16.mxu0 %v2782
    %3552 = vmatpush1.bf16.msra.mxu0 %v2781
    %3553 = vmatprep.subr.bf16.mxu0 %v2779
    %3554 = vmatpush1.bf16.msra.mxu0 %v2778
    %3555 = vmatprep.subr.bf16.mxu0 %v2776
    %3556 = vmatpush1.bf16.msra.mxu0 %v2775
    %3557 = vmatprep.subr.bf16.mxu0 %v2773
    %3558 = vmatpush1.bf16.msra.mxu0 %v2772
    %3559 = vmatprep.subr.bf16.mxu0 %v2770
    %3560 = vmatpush1.bf16.msra.mxu0 %v2769
    %3561 = vmatprep.subr.bf16.mxu0 %v2767
    %3562 = vmatpush1.bf16.msra.mxu0 %v2766
    %3563 = vmatprep.subr.bf16.mxu0 %v2812
    %3564 = vmatpush2.bf16.msra.mxu0 %v2811
    %3565 = vmatprep.subr.bf16.mxu0 %v2809
    %3566 = vmatpush2.bf16.msra.mxu0 %v2808
    %3567 = vmatprep.subr.bf16.mxu0 %v2806
    %3568 = vmatpush2.bf16.msra.mxu0 %v2805
    %3569 = vmatprep.subr.bf16.mxu0 %v2803
    %3570 = vmatpush2.bf16.msra.mxu0 %v2802
    %3571 = vmatprep.subr.bf16.mxu0 %v2800
    %3572 = vmatpush2.bf16.msra.mxu0 %v2799
    %3573 = vmatprep.subr.bf16.mxu0 %v2797
    %3574 = vmatpush2.bf16.msra.mxu0 %v2796
    %3575 = vmatprep.subr.bf16.mxu0 %v2794
    %3576 = vmatpush2.bf16.msra.mxu0 %v2793
    %3577 = vmatprep.subr.bf16.mxu0 %v2791
    %3578 = vmatpush2.bf16.msra.mxu0 %v2790
    %3579 = vmatprep.mubr.bf16.mxu0 %v3544
    %3580 = vmatmul.mubr.bf16.gmra.mxu0 %v3543
    %v3581 = vpop.f32.mrf.mxu0
    %v3582 = vadd.f32 %v2434, %v3581
    %v3583 = vpop.f32.mrf.mxu0
    %v3584 = vadd.f32 %v2438, %v3583
    %v3585 = vpop.f32.mrf.mxu0
    %v3586 = vpop.f32.mrf.mxu0
    %3587 = vdwg.mxu0
    %3588 = vmatprep.subr.bf16.mxu0 %v2836
    %3589 = vmatpush1.bf16.msra.mxu0 %v2835
    %3590 = vmatprep.subr.bf16.mxu0 %v2833
    %3591 = vmatpush1.bf16.msra.mxu0 %v2832
    %3592 = vmatprep.subr.bf16.mxu0 %v2830
    %3593 = vmatpush1.bf16.msra.mxu0 %v2829
    %3594 = vmatprep.subr.bf16.mxu0 %v2827
    %3595 = vmatpush1.bf16.msra.mxu0 %v2826
    %3596 = vmatprep.subr.bf16.mxu0 %v2824
    %3597 = vmatpush1.bf16.msra.mxu0 %v2823
    %3598 = vmatprep.subr.bf16.mxu0 %v2821
    %3599 = vmatpush1.bf16.msra.mxu0 %v2820
    %3600 = vmatprep.subr.bf16.mxu0 %v2818
    %3601 = vmatpush1.bf16.msra.mxu0 %v2817
    %3602 = vmatprep.subr.bf16.mxu0 %v2815
    %3603 = vmatpush1.bf16.msra.mxu0 %v2814
    %3604 = vmatprep.subr.bf16.mxu0 %v2860
    %3605 = vmatpush2.bf16.msra.mxu0 %v2859
    %3606 = vmatprep.subr.bf16.mxu0 %v2857
    %3607 = vmatpush2.bf16.msra.mxu0 %v2856
    %3608 = vmatprep.subr.bf16.mxu0 %v2854
    %3609 = vmatpush2.bf16.msra.mxu0 %v2853
    %3610 = vmatprep.subr.bf16.mxu0 %v2851
    %3611 = vmatpush2.bf16.msra.mxu0 %v2850
    %3612 = vmatprep.subr.bf16.mxu0 %v2848
    %3613 = vmatpush2.bf16.msra.mxu0 %v2847
    %3614 = vmatprep.subr.bf16.mxu0 %v2845
    %3615 = vmatpush2.bf16.msra.mxu0 %v2844
    %3616 = vmatprep.subr.bf16.mxu0 %v2842
    %3617 = vmatpush2.bf16.msra.mxu0 %v2841
    %3618 = vmatprep.subr.bf16.mxu0 %v2839
    %3619 = vmatpush2.bf16.msra.mxu0 %v2838
    %3620 = vmatprep.mubr.bf16.mxu0 %v3546
    %3621 = vmatmul.mubr.bf16.gmra.mxu0 %v3545
    %v3622 = vpop.f32.mrf.mxu0
    %v3623 = vadd.f32 %v3582, %v3622
    %v3624 = vpop.f32.mrf.mxu0
    %v3625 = vadd.f32 %v3584, %v3624
    %v3626 = vpop.f32.mrf.mxu0
    %v3627 = vpop.f32.mrf.mxu0
    %3628 = vdwg.mxu0
    %3629 = vmatprep.subr.bf16.mxu0 0
    %3630 = vmatpush1.bf16.msra.mxu0 %v2789
    %3631 = vmatprep.subr.bf16.mxu0 0
    %3632 = vmatpush1.bf16.msra.mxu0 %v2786
    %3633 = vmatprep.subr.bf16.mxu0 0
    %3634 = vmatpush1.bf16.msra.mxu0 %v2783
    %3635 = vmatprep.subr.bf16.mxu0 0
    %3636 = vmatpush1.bf16.msra.mxu0 %v2780
    %3637 = vmatprep.subr.bf16.mxu0 0
    %3638 = vmatpush1.bf16.msra.mxu0 %v2777
    %3639 = vmatprep.subr.bf16.mxu0 0
    %3640 = vmatpush1.bf16.msra.mxu0 %v2774
    %3641 = vmatprep.subr.bf16.mxu0 0
    %3642 = vmatpush1.bf16.msra.mxu0 %v2771
    %3643 = vmatprep.subr.bf16.mxu0 0
    %3644 = vmatpush1.bf16.msra.mxu0 %v2768
    %3645 = vmatprep.subr.bf16.mxu0 0
    %3646 = vmatpush2.bf16.msra.mxu0 %v2813
    %3647 = vmatprep.subr.bf16.mxu0 0
    %3648 = vmatpush2.bf16.msra.mxu0 %v2810
    %3649 = vmatprep.subr.bf16.mxu0 0
    %3650 = vmatpush2.bf16.msra.mxu0 %v2807
    %3651 = vmatprep.subr.bf16.mxu0 0
    %3652 = vmatpush2.bf16.msra.mxu0 %v2804
    %3653 = vmatprep.subr.bf16.mxu0 0
    %3654 = vmatpush2.bf16.msra.mxu0 %v2801
    %3655 = vmatprep.subr.bf16.mxu0 0
    %3656 = vmatpush2.bf16.msra.mxu0 %v2798
    %3657 = vmatprep.subr.bf16.mxu0 0
    %3658 = vmatpush2.bf16.msra.mxu0 %v2795
    %3659 = vmatprep.subr.bf16.mxu0 0
    %3660 = vmatpush2.bf16.msra.mxu0 %v2792
    %3661 = vmatprep.mubr.bf16.mxu0 %v3544
    %3662 = vmatmul.mubr.bf16.gmra.mxu0 %v3543
    %v3663 = vpop.f32.mrf.mxu0
    %v3664 = vadd.f32 %v2442, %v3663
    %v3665 = vpop.f32.mrf.mxu0
    %v3666 = vpop.f32.mrf.mxu0
    %v3667 = vpop.f32.mrf.mxu0
    %3668 = vdwg.mxu0
    %3669 = vmatprep.subr.bf16.mxu0 0
    %3670 = vmatpush1.bf16.msra.mxu0 %v2837
    %3671 = vmatprep.subr.bf16.mxu0 0
    %3672 = vmatpush1.bf16.msra.mxu0 %v2834
    %3673 = vmatprep.subr.bf16.mxu0 0
    %3674 = vmatpush1.bf16.msra.mxu0 %v2831
    %3675 = vmatprep.subr.bf16.mxu0 0
    %3676 = vmatpush1.bf16.msra.mxu0 %v2828
    %3677 = vmatprep.subr.bf16.mxu0 0
    %3678 = vmatpush1.bf16.msra.mxu0 %v2825
    %3679 = vmatprep.subr.bf16.mxu0 0
    %3680 = vmatpush1.bf16.msra.mxu0 %v2822
    %3681 = vmatprep.subr.bf16.mxu0 0
    %3682 = vmatpush1.bf16.msra.mxu0 %v2819
    %3683 = vmatprep.subr.bf16.mxu0 0
    %3684 = vmatpush1.bf16.msra.mxu0 %v2816
    %3685 = vmatprep.subr.bf16.mxu0 0
    %3686 = vmatpush2.bf16.msra.mxu0 %v2861
    %3687 = vmatprep.subr.bf16.mxu0 0
    %3688 = vmatpush2.bf16.msra.mxu0 %v2858
    %3689 = vmatprep.subr.bf16.mxu0 0
    %3690 = vmatpush2.bf16.msra.mxu0 %v2855
    %3691 = vmatprep.subr.bf16.mxu0 0
    %3692 = vmatpush2.bf16.msra.mxu0 %v2852
    %3693 = vmatprep.subr.bf16.mxu0 0
    %3694 = vmatpush2.bf16.msra.mxu0 %v2849
    %3695 = vmatprep.subr.bf16.mxu0 0
    %3696 = vmatpush2.bf16.msra.mxu0 %v2846
    %3697 = vmatprep.subr.bf16.mxu0 0
    %3698 = vmatpush2.bf16.msra.mxu0 %v2843
    %3699 = vmatprep.subr.bf16.mxu0 0
    %3700 = vmatpush2.bf16.msra.mxu0 %v2840
    %3701 = vmatprep.mubr.bf16.mxu0 %v3546
    %3702 = vmatmul.mubr.bf16.gmra.mxu0 %v3545
    %v3703 = vpop.f32.mrf.mxu0
    %v3704 = vadd.f32 %v3664, %v3703
    %v3705 = vpop.f32.mrf.mxu0
    %v3706 = vpop.f32.mrf.mxu0
    %v3707 = vpop.f32.mrf.mxu0
    %3708 = vdwg.mxu0
    %s3709 = scalar_lea.vmem [#allocation6], 24
    %3710 = vst [vmem:[%s3709] sm:$0xff] %v3623
    %3711 = vst [vmem:[%s3709 + $0x8] sm:$0xff] %v3625
    %3712 = vst.msk [vmem:[%s3709 + $0x10] sm:$0xff] %vm1230, %v3704
    // Predicated region
    $region22: #{tpu_custom_call.1} parent=1 // pred_check
      _
    $region23: #{tpu_custom_call.1} parent=1 // pred_check_branch
      %3714 = sbr.rel (0) target = $region25
    $region24: #{tpu_custom_call.1} parent=1 // pred_region
      %s3716 = ssub.s32 768, 768
      %3717 = vsyncadd [#allocation5], %s3716
      %s3718 = sshll.u32 [#allocation6], 4
      %s3719 = int_to_ptr.vmem [resolvable:$true] %s3718
      %3724 = dma.vmem_to_hbm [thread:$0]  %s3719, 768, %s4, [#allocation5], 384, 384, 24
    $region25: #{tpu_custom_call.1} parent=1 // pred_fallthru
      _
    // Predicated region
    $region26: #{tpu_custom_call.1} parent=1 // pred_check
      _
    $region27: #{tpu_custom_call.1} parent=1 // pred_check_branch
      %3726 = sbr.rel (0) target = $region29
    $region28: #{tpu_custom_call.1} parent=1 // pred_region
      %3727 = dma.done [#allocation5], 768
    $region29: #{tpu_custom_call.1} parent=1 // pred_fallthru
      _
    %3728 = vsyncpa [#allocation4], 1
    %3729 = vsyncpa [#allocation5], 1

</llo_original>
